<compile_context>
chip_gen: v7x
topology: tpu7x:2x2x1
jax: 0.10.0
libtpu: 0.0.40
codegen_flags: <defaults>
</compile_context>

<pallas_src>
import math

import jax
import jax.numpy as jnp
import numpy as np
from jax import lax
from jax.experimental import pallas as pl
from jax.experimental.pallas import tpu as pltpu

# ----------------------------- config (small) -------------------------------
BATCH = 2
SEQ = 8
R = BATCH * SEQ            # 16 flattened (batch*seq) rows
HIDDEN = 32                # bert hidden_size == classifier_hidden_dim
NUM_HEADS = 2
HEAD_DIM = HIDDEN // NUM_HEADS
INTERMEDIATE = 64
NUM_LAYERS = 2
VOCAB = 50
VOCAB_PAD = 64             # vocab padded for the one-hot matmul
MAX_POS = 16
DRUG_DIM = 16              # drug_features_dim
LN_EPS = 1e-12
OUT_PAD = 128              # lane-dense padded width of the final 1-wide output
OUT_ROWS = 8               # sublane-padded output rows -> full (8,128) store

# ---- packed-slab layout constants (all row offsets are multiples of 8) ------
WROWS = 320                # rows per layer in the 2-D weight slab
WLANES = 64
W_Q = lambda h: h * 96             # (HIDDEN, HEAD_DIM)
W_K = lambda h: h * 96 + 32
W_V = lambda h: h * 96 + 64
W_O = lambda h: 192 + h * 16       # (HEAD_DIM, HIDDEN)
W_I = 224                          # (HIDDEN, INTERMEDIATE)
W_F = 256                          # (INTERMEDIATE, HIDDEN)

PB_ROWS = 16                       # per-layer 1-D param rows in pslab
P_BQ = lambda h: 3 * h
P_BK = lambda h: 3 * h + 1
P_BV = lambda h: 3 * h + 2
P_BO, P_LN1G, P_LN1B, P_BI, P_BF, P_LN2G, P_LN2B = 6, 7, 8, 9, 10, 11, 12
HBROW = NUM_LAYERS * PB_ROWS       # head block starts here (= 32)
P_GMU_W1 = HBROW                   # 32 rows  (HIDDEN, HIDDEN)
P_GMU_W2 = HBROW + 32              # 16 rows  (DRUG_DIM, HIDDEN)
P_WC1 = HBROW + 48                 # 32 rows  (HIDDEN, HIDDEN)
P_WC2 = HBROW + 80                 # 32 rows x 128 lanes (lane-padded Linear(.,1))
P_CROSS = HBROW + 112              # 16 rows x R lanes: 0 same-batch / -1e9 cross
P_WZ1 = HBROW + 128
P_WZ2 = HBROW + 129
P_BC1 = HBROW + 130
P_BC2 = HBROW + 131
P_ELNG = HBROW + 132
P_ELNB = HBROW + 133
PROWS = 168                        # padded to a sublane multiple


# ------------------------------ kernel helpers ------------------------------
def _layernorm(x, g, b):
    mu = jnp.mean(x, axis=-1, keepdims=True)
    var = jnp.mean((x - mu) ** 2, axis=-1, keepdims=True)
    return (x - mu) * lax.rsqrt(var + LN_EPS) * g + b


def _gelu(x):
    # TODO(synk): PyTorch nn.GELU / HF BERT use exact erf-GELU; tanh approx used here.
    return jax.nn.gelu(x, approximate=True)


# ------------------------------- fused kernel -------------------------------
def fused_forward_kernel(ids_ref, mask_ref, drug_ref, emb_ref, w_ref, p_ref, o_ref):
    f32 = jnp.float32

    # ---- BERT embeddings, fully in-kernel ----------------------------------
    # word-embedding gather as a one-hot matmul on the otherwise-idle MXU
    ids = ids_ref[...]                                               # (R, 1) int32
    onehot = (ids == lax.broadcasted_iota(jnp.int32, (R, VOCAB_PAD), 1)).astype(f32)
    emb = jnp.dot(onehot, emb_ref[0:VOCAB_PAD, :], preferred_element_type=f32)
    emb = emb + emb_ref[VOCAB_PAD:VOCAB_PAD + R, :]                  # + pos + token-type
    x = _layernorm(emb,
                   p_ref[P_ELNG:P_ELNG + 1, 0:HIDDEN],
                   p_ref[P_ELNB:P_ELNB + 1, 0:HIDDEN])               # (R, H)

    # ---- additive attention bias, built in-kernel --------------------------
    # constant block-diagonal (cross-batch = -1e9) part from the slab,
    # padding part from the (1, R) mask row (exp underflow -> exact 0).
    bias = (p_ref[P_CROSS:P_CROSS + R, 0:R]
            + (1.0 - mask_ref[...]) * (-1e9))                        # (R, R)

    scale = 1.0 / math.sqrt(HEAD_DIM)

    for L in range(NUM_LAYERS):                                      # static 2-layer loop
        wb = L * WROWS
        pb = L * PB_ROWS

        def W(r0, rows, cols):                                       # static ref views
            return w_ref[wb + r0:wb + r0 + rows, 0:cols]

        def P(r, cols):
            return p_ref[pb + r:pb + r + 1, 0:cols]

        # per-head q/k/v straight out of (R,H)@(H,HD) matmuls (no lane slicing)
        scores, values = [], []
        for h in range(NUM_HEADS):                                   # static head loop
            q = jnp.dot(x, W(W_Q(h), HIDDEN, HEAD_DIM),
                        preferred_element_type=f32) + P(P_BQ(h), HEAD_DIM)
            k = jnp.dot(x, W(W_K(h), HIDDEN, HEAD_DIM),
                        preferred_element_type=f32) + P(P_BK(h), HEAD_DIM)
            v = jnp.dot(x, W(W_V(h), HIDDEN, HEAD_DIM),
                        preferred_element_type=f32) + P(P_BV(h), HEAD_DIM)
            # scores = q @ k^T without materializing a transpose
            s = lax.dot_general(q, k, (((1,), (1,)), ((), ())),
                                preferred_element_type=f32) * scale + bias
            scores.append(s)
            values.append(v)

        # both heads' softmax batched along the sublane axis: one max/exp/sum
        s_all = jnp.concatenate(scores, axis=0)                      # (NH*R, R)
        s_all = s_all - jnp.max(s_all, axis=-1, keepdims=True)
        p_all = jnp.exp(s_all)
        p_all = p_all / jnp.sum(p_all, axis=-1, keepdims=True)

        # attn = bo + sum_h (p_h @ v_h) @ Wo_h  (accumulation; no lane concat)
        attn = P(P_BO, HIDDEN)
        for h in range(NUM_HEADS):
            ctx = jnp.dot(p_all[h * R:(h + 1) * R, :], values[h],
                          preferred_element_type=f32)
            attn = attn + jnp.dot(ctx, W(W_O(h), HEAD_DIM, HIDDEN),
                                  preferred_element_type=f32)

        h1 = _layernorm(attn + x, P(P_LN1G, HIDDEN), P(P_LN1B, HIDDEN))
        ff = _gelu(jnp.dot(h1, W(W_I, HIDDEN, INTERMEDIATE),
                           preferred_element_type=f32) + P(P_BI, INTERMEDIATE))
        ff = jnp.dot(ff, W(W_F, INTERMEDIATE, HIDDEN),
                     preferred_element_type=f32) + P(P_BF, HIDDEN)
        x = _layernorm(ff + h1, P(P_LN2G, HIDDEN), P(P_LN2B, HIDDEN))

    # ---- CLS gather (rows b*SEQ) via a tiny selection matmul; rows >= BATCH -> 0
    sel = (lax.broadcasted_iota(jnp.int32, (OUT_ROWS, R), 1)
           == SEQ * lax.broadcasted_iota(jnp.int32, (OUT_ROWS, R), 0)).astype(f32)
    cls = jnp.dot(sel, x, preferred_element_type=f32)                # (OUT_ROWS, H)

    # ---- GatedMultimodalLayer ----------------------------------------------
    hm1 = jnp.tanh(jnp.dot(cls, p_ref[P_GMU_W1:P_GMU_W1 + HIDDEN, 0:HIDDEN],
                           preferred_element_type=f32))
    hm2 = jnp.tanh(jnp.dot(drug_ref[...], p_ref[P_GMU_W2:P_GMU_W2 + DRUG_DIM, 0:HIDDEN],
                           preferred_element_type=f32))
    # sigmoid(concat(h1,h2) @ Wz) == sigmoid(sum(h1*wz1) + sum(h2*wz2))
    z = jax.nn.sigmoid(
        jnp.sum(hm1 * p_ref[P_WZ1:P_WZ1 + 1, 0:HIDDEN], axis=-1, keepdims=True)
        + jnp.sum(hm2 * p_ref[P_WZ2:P_WZ2 + 1, 0:HIDDEN], axis=-1, keepdims=True))
    m = z * hm1 + (1.0 - z) * hm2

    # classifier: Dropout(id) -> GELU -> Linear -> Dropout(id) -> GELU -> Linear(.,1)
    y = (jnp.dot(_gelu(m), p_ref[P_WC1:P_WC1 + HIDDEN, 0:HIDDEN],
                 preferred_element_type=f32) + p_ref[P_BC1:P_BC1 + 1, 0:HIDDEN])
    # final Linear(.,1) is lane-padded to OUT_PAD and row-padded to OUT_ROWS:
    # a single full unmasked (8,128) store; the wrapper slices [:BATCH, :1].
    o_ref[...] = (jnp.dot(_gelu(y), p_ref[P_WC2:P_WC2 + HIDDEN, :],
                          preferred_element_type=f32) + p_ref[P_BC2:P_BC2 + 1, :])


# ------------------------------ parameters ----------------------------------
def init_params(key):
    keys = jax.random.split(key, 64)
    it = iter(keys)

    def nrm(shape):
        return 0.02 * jax.random.normal(next(it), shape, jnp.float32)

    params = {
        "word_emb": nrm((VOCAB, HIDDEN)),
        "pos_emb": nrm((MAX_POS, HIDDEN)),
        "type_emb": nrm((2, HIDDEN)),
        "emb_ln_g": jnp.ones((HIDDEN,), jnp.float32),
        "emb_ln_b": jnp.zeros((HIDDEN,), jnp.float32),
    }

    layers = []
    for _ in range(NUM_LAYERS):
        layers.append((
            nrm((HIDDEN, 3 * HIDDEN)), nrm((3 * HIDDEN,)),      # fused wqkv, bqkv
            nrm((HIDDEN, HIDDEN)), nrm((HIDDEN,)),              # wo, bo
            jnp.ones((HIDDEN,), jnp.float32), jnp.zeros((HIDDEN,), jnp.float32),  # ln1
            nrm((HIDDEN, INTERMEDIATE)), nrm((INTERMEDIATE,)),  # wi, bi
            nrm((INTERMEDIATE, HIDDEN)), nrm((HIDDEN,)),        # wf, bf
            jnp.ones((HIDDEN,), jnp.float32), jnp.zeros((HIDDEN,), jnp.float32),  # ln2
        ))
    params["layers"] = layers

    # GatedMultimodalLayer (all Linear(..., bias=False))
    params["gmu_w1"] = nrm((HIDDEN, HIDDEN))
    params["gmu_w2"] = nrm((DRUG_DIM, HIDDEN))
    wz = nrm((2 * HIDDEN, 1))
    params["gmu_wz1"] = wz[:HIDDEN, 0][None, :]                 # (1, H)
    params["gmu_wz2"] = wz[HIDDEN:, 0][None, :]                 # (1, H)

    # classifier head
    params["wc1"] = nrm((HIDDEN, HIDDEN))
    params["bc1"] = nrm((HIDDEN,))
    params["wc2"] = nrm((HIDDEN, 1))
    params["bc2"] = nrm((1,))
    return params


def pack_params(params):
    """One-time packing of all weights into 3 slabs (setup cost, not per call)."""
    H, HD, I = HIDDEN, HEAD_DIM, INTERMEDIATE

    # embedding slab: zero-padded word-embedding table + precomputed (pos+type) rows
    emb_slab = jnp.zeros((VOCAB_PAD + R, H), jnp.float32)
    emb_slab = emb_slab.at[:VOCAB, :].set(params["word_emb"])
    pos_type = params["pos_emb"][:SEQ] + params["type_emb"][0][None, :]
    emb_slab = emb_slab.at[VOCAB_PAD:, :].set(jnp.tile(pos_type, (BATCH, 1)))

    wslab = jnp.zeros((NUM_LAYERS * WROWS, WLANES), jnp.float32)
    pslab = jnp.zeros((PROWS, OUT_PAD), jnp.float32)

    for L, (wqkv, bqkv, wo, bo, g1, be1, wi, bi, wf, bf, g2, be2) in enumerate(
            params["layers"]):
        wb, pb = L * WROWS, L * PB_ROWS
        for h in range(NUM_HEADS):
            wslab = wslab.at[wb + W_Q(h):wb + W_Q(h) + H, :HD].set(
                wqkv[:, h * HD:(h + 1) * HD])
            wslab = wslab.at[wb + W_K(h):wb + W_K(h) + H, :HD].set(
                wqkv[:, H + h * HD:H + (h + 1) * HD])
            wslab = wslab.at[wb + W_V(h):wb + W_V(h) + H, :HD].set(
                wqkv[:, 2 * H + h * HD:2 * H + (h + 1) * HD])
            wslab = wslab.at[wb + W_O(h):wb + W_O(h) + HD, :H].set(
                wo[h * HD:(h + 1) * HD, :])
            pslab = pslab.at[pb + P_BQ(h), :HD].set(bqkv[h * HD:(h + 1) * HD])
            pslab = pslab.at[pb + P_BK(h), :HD].set(bqkv[H + h * HD:H + (h + 1) * HD])
            pslab = pslab.at[pb + P_BV(h), :HD].set(
                bqkv[2 * H + h * HD:2 * H + (h + 1) * HD])
        wslab = wslab.at[wb + W_I:wb + W_I + H, :I].set(wi)
        wslab = wslab.at[wb + W_F:wb + W_F + I, :H].set(wf)
        pslab = pslab.at[pb + P_BO, :H].set(bo)
        pslab = pslab.at[pb + P_LN1G, :H].set(g1)
        pslab = pslab.at[pb + P_LN1B, :H].set(be1)
        pslab = pslab.at[pb + P_BI, :I].set(bi)
        pslab = pslab.at[pb + P_BF, :H].set(bf)
        pslab = pslab.at[pb + P_LN2G, :H].set(g2)
        pslab = pslab.at[pb + P_LN2B, :H].set(be2)

    pslab = pslab.at[P_GMU_W1:P_GMU_W1 + H, :H].set(params["gmu_w1"])
    pslab = pslab.at[P_GMU_W2:P_GMU_W2 + DRUG_DIM, :H].set(params["gmu_w2"])
    pslab = pslab.at[P_WC1:P_WC1 + H, :H].set(params["wc1"])
    pslab = pslab.at[P_WC2:P_WC2 + H, :1].set(params["wc2"])
    # constant cross-batch (block-diagonal) part of the attention bias
    batch_idx = jnp.repeat(jnp.arange(BATCH), SEQ)
    cross = jnp.where(batch_idx[:, None] == batch_idx[None, :], 0.0, -1e9)
    pslab = pslab.at[P_CROSS:P_CROSS + R, :R].set(cross.astype(jnp.float32))
    pslab = pslab.at[P_WZ1, :H].set(params["gmu_wz1"][0])
    pslab = pslab.at[P_WZ2, :H].set(params["gmu_wz2"][0])
    pslab = pslab.at[P_BC1, :H].set(params["bc1"])
    pslab = pslab.at[P_BC2, :1].set(params["bc2"])
    pslab = pslab.at[P_ELNG, :H].set(params["emb_ln_g"])
    pslab = pslab.at[P_ELNB, :H].set(params["emb_ln_b"])

    return {"emb_slab": emb_slab, "wslab": wslab, "pslab": pslab}


# ------------------------------ forward (Pallas) ----------------------------
def forward(packed, input_ids, attention_mask, drug_features):
    # Only trivial layout glue here; all real work happens inside the kernel.
    ids_col = input_ids.reshape(R, 1).astype(jnp.int32)
    mask_row = attention_mask.reshape(1, R).astype(jnp.float32)
    drug8 = jnp.zeros((OUT_ROWS, DRUG_DIM), jnp.float32).at[:BATCH, :].set(
        drug_features.astype(jnp.float32))

    vmem = lambda: pl.BlockSpec(memory_space=pltpu.MemorySpace.VMEM)
    out = pl.pallas_call(
        fused_forward_kernel,
        out_shape=jax.ShapeDtypeStruct((OUT_ROWS, OUT_PAD), jnp.float32),
        in_specs=[vmem() for _ in range(6)],
        out_specs=vmem(),
    )(ids_col, mask_row, drug8,
      packed["emb_slab"], packed["wslab"], packed["pslab"])
    return out[:BATCH, :1]


# ------------------------------ pure-JAX reference --------------------------
def forward_ref(params, input_ids, attention_mask, drug_features):
    def ln(x, g, b):
        mu = x.mean(-1, keepdims=True)
        var = ((x - mu) ** 2).mean(-1, keepdims=True)
        return (x - mu) / jnp.sqrt(var + LN_EPS) * g + b

    gelu = lambda x: jax.nn.gelu(x, approximate=True)

    pos_ids = jnp.arange(SEQ)
    x = (params["word_emb"][input_ids] + params["pos_emb"][pos_ids][None]
         + params["type_emb"][0][None, None])
    x = ln(x, params["emb_ln_g"], params["emb_ln_b"])
    bias = (1.0 - attention_mask.astype(jnp.float32)) * -1e9
    for (wqkv, bqkv, wo, bo, g1, be1, wi, bi, wf, bf, g2, be2) in params["layers"]:
        wq, wk, wv = (wqkv[:, :HIDDEN], wqkv[:, HIDDEN:2 * HIDDEN], wqkv[:, 2 * HIDDEN:])
        bq, bk, bv = (bqkv[:HIDDEN], bqkv[HIDDEN:2 * HIDDEN], bqkv[2 * HIDDEN:])
        q = x @ wq + bq
        k = x @ wk + bk
        v = x @ wv + bv
        B, S, H = x.shape
        qh = q.reshape(B, S, NUM_HEADS, HEAD_DIM).transpose(0, 2, 1, 3)
        kh = k.reshape(B, S, NUM_HEADS, HEAD_DIM).transpose(0, 2, 1, 3)
        vh = v.reshape(B, S, NUM_HEADS, HEAD_DIM).transpose(0, 2, 1, 3)
        s = jnp.einsum('bhqd,bhkd->bhqk', qh, kh) / math.sqrt(HEAD_DIM)
        s = s + bias[:, None, None, :]
        p = jax.nn.softmax(s, axis=-1)
        ctx = jnp.einsum('bhqk,bhkd->bhqd', p, vh).transpose(0, 2, 1, 3).reshape(B, S, H)
        attn = ctx @ wo + bo
        h1 = ln(attn + x, g1, be1)
        ff = gelu(h1 @ wi + bi) @ wf + bf
        x = ln(ff + h1, g2, be2)
    cls_emb = x[:, 0, :]
    h1 = jnp.tanh(cls_emb @ params["gmu_w1"])
    h2 = jnp.tanh(drug_features @ params["gmu_w2"])
    wz = jnp.concatenate([params["gmu_wz1"].T, params["gmu_wz2"].T], axis=0)
    z = jax.nn.sigmoid(jnp.concatenate([h1, h2], axis=-1) @ wz)
    m = z * h1 + (1.0 - z) * h2
    y = gelu(m) @ params["wc1"] + params["bc1"]
    return gelu(y) @ params["wc2"] + params["bc2"]


# ---------------------------------- main -------------------------------------
if __name__ == "__main__":
    key = jax.random.PRNGKey(0)
    kp, kid, kdrug = jax.random.split(key, 3)
    params = init_params(kp)
    packed = pack_params(params)          # one-time packing into 3 slabs

    input_ids = jax.random.randint(kid, (BATCH, SEQ), 0, VOCAB)
    attention_mask = jnp.ones((BATCH, SEQ), jnp.int32).at[1, -2:].set(0)
    drug_features = jax.random.normal(kdrug, (BATCH, DRUG_DIM), jnp.float32)

    out = forward(packed, input_ids, attention_mask, drug_features)
    out = jax.block_until_ready(out)
    assert out.shape == (BATCH, 1)

    ref = forward_ref(params, input_ids, attention_mask, drug_features)
    np.testing.assert_allclose(np.asarray(out), np.asarray(ref), rtol=1e-2, atol=1e-2)

    print("KERNEL_OK")
</pallas_src>

<mosaic_0001>
module attributes {stable_mosaic.version = 11 : i64} {
  func.func @fused_forward_kernel(%arg0: memref<16x1xi32, #tpu.memory_space<vmem>>, %arg1: memref<1x16xf32, #tpu.memory_space<vmem>>, %arg2: memref<8x16xf32, #tpu.memory_space<vmem>>, %arg3: memref<80x32xf32, #tpu.memory_space<vmem>>, %arg4: memref<640x64xf32, #tpu.memory_space<vmem>>, %arg5: memref<168x128xf32, #tpu.memory_space<vmem>>, %arg6: memref<8x128xf32, #tpu.memory_space<vmem>>) attributes {dimension_semantics = [], scalar_prefetch = 0 : i64, scratch_operands = 0 : i64, tpu.core_type = #tpu.core_type<tc>} {
    %c0 = arith.constant 0 : index
    %c0_0 = arith.constant 0 : index
    %0 = vector.load %arg0[%c0, %c0_0] : memref<16x1xi32, #tpu.memory_space<vmem>>, vector<16x1xi32>
    %1 = tpu.iota {dimensions = array<i32: 1>} : vector<16x64xi32>
    %2 = vector.broadcast %0 : vector<16x1xi32> to vector<16x64xi32>
    %3 = arith.cmpi eq, %2, %1 : vector<16x64xi32>
    %4 = arith.extui %3 : vector<16x64xi1> to vector<16x64xi32>
    %5 = arith.sitofp %4 : vector<16x64xi32> to vector<16x64xf32>
    %c0_1 = arith.constant 0 : index
    %c0_2 = arith.constant 0 : index
    %6 = vector.load %arg3[%c0_1, %c0_2] : memref<80x32xf32, #tpu.memory_space<vmem>>, vector<64x32xf32>
    %cst = arith.constant dense<0.000000e+00> : vector<16x32xf32>
    %7 = tpu.matmul %5, %6, %cst {dimension_numbers = #tpu.dot_dimension_numbers<[1], [0], [0], [1], [0, 0, 1, 1], [], []>} : vector<16x64xf32>, vector<64x32xf32>, vector<16x32xf32> -> vector<16x32xf32>
    %c64 = arith.constant 64 : index
    %c0_3 = arith.constant 0 : index
    %8 = vector.load %arg3[%c64, %c0_3] : memref<80x32xf32, #tpu.memory_space<vmem>>, vector<16x32xf32>
    %9 = arith.addf %7, %8 : vector<16x32xf32>
    %c164 = arith.constant 164 : index
    %c0_4 = arith.constant 0 : index
    %10 = vector.load %arg5[%c164, %c0_4] : memref<168x128xf32, #tpu.memory_space<vmem>>, vector<1x32xf32>
    %c165 = arith.constant 165 : index
    %c0_5 = arith.constant 0 : index
    %11 = vector.load %arg5[%c165, %c0_5] : memref<168x128xf32, #tpu.memory_space<vmem>>, vector<1x32xf32>
    %cst_6 = arith.constant dense<0.000000e+00> : vector<16xf32>
    %12 = vector.multi_reduction <add>, %9, %cst_6 [1] : vector<16x32xf32> to vector<16xf32>
    %13 = vector.shape_cast %12 : vector<16xf32> to vector<16x1xf32>
    %cst_7 = arith.constant 3.200000e+01 : f32
    %14 = vector.broadcast %cst_7 : f32 to vector<16x1xf32>
    %15 = arith.divf %13, %14 : vector<16x1xf32>
    %16 = vector.broadcast %15 : vector<16x1xf32> to vector<16x32xf32>
    %17 = arith.subf %9, %16 : vector<16x32xf32>
    %18 = arith.mulf %17, %17 : vector<16x32xf32>
    %cst_8 = arith.constant dense<0.000000e+00> : vector<16xf32>
    %19 = vector.multi_reduction <add>, %18, %cst_8 [1] : vector<16x32xf32> to vector<16xf32>
    %20 = vector.shape_cast %19 : vector<16xf32> to vector<16x1xf32>
    %cst_9 = arith.constant 3.200000e+01 : f32
    %21 = vector.broadcast %cst_9 : f32 to vector<16x1xf32>
    %22 = arith.divf %20, %21 : vector<16x1xf32>
    %23 = vector.broadcast %15 : vector<16x1xf32> to vector<16x32xf32>
    %24 = arith.subf %9, %23 : vector<16x32xf32>
    %cst_10 = arith.constant 9.99999996E-13 : f32
    %25 = vector.broadcast %cst_10 : f32 to vector<16x1xf32>
    %26 = arith.addf %22, %25 : vector<16x1xf32>
    %27 = math.rsqrt %26 : vector<16x1xf32>
    %28 = vector.broadcast %27 : vector<16x1xf32> to vector<16x32xf32>
    %29 = arith.mulf %24, %28 : vector<16x32xf32>
    %30 = vector.broadcast %10 : vector<1x32xf32> to vector<16x32xf32>
    %31 = arith.mulf %29, %30 : vector<16x32xf32>
    %32 = vector.broadcast %11 : vector<1x32xf32> to vector<16x32xf32>
    %33 = arith.addf %31, %32 : vector<16x32xf32>
    %c144 = arith.constant 144 : index
    %c0_11 = arith.constant 0 : index
    %34 = vector.load %arg5[%c144, %c0_11] : memref<168x128xf32, #tpu.memory_space<vmem>>, vector<16x16xf32>
    %c0_12 = arith.constant 0 : index
    %c0_13 = arith.constant 0 : index
    %35 = vector.load %arg1[%c0_12, %c0_13] : memref<1x16xf32, #tpu.memory_space<vmem>>, vector<1x16xf32>
    %cst_14 = arith.constant 1.000000e+00 : f32
    %36 = vector.broadcast %cst_14 : f32 to vector<1x16xf32>
    %37 = arith.subf %36, %35 : vector<1x16xf32>
    %cst_15 = arith.constant -1.000000e+09 : f32
    %38 = vector.broadcast %cst_15 : f32 to vector<1x16xf32>
    %39 = arith.mulf %37, %38 : vector<1x16xf32>
    %40 = vector.broadcast %39 : vector<1x16xf32> to vector<16x16xf32>
    %41 = arith.addf %34, %40 : vector<16x16xf32>
    %c0_16 = arith.constant 0 : index
    %c0_17 = arith.constant 0 : index
    %42 = vector.load %arg4[%c0_16, %c0_17] : memref<640x64xf32, #tpu.memory_space<vmem>>, vector<32x16xf32>
    %cst_18 = arith.constant dense<0.000000e+00> : vector<16x16xf32>
    %43 = tpu.matmul %33, %42, %cst_18 {dimension_numbers = #tpu.dot_dimension_numbers<[1], [0], [0], [1], [0, 0, 1, 1], [], []>} : vector<16x32xf32>, vector<32x16xf32>, vector<16x16xf32> -> vector<16x16xf32>
    %c0_19 = arith.constant 0 : index
    %c0_20 = arith.constant 0 : index
    %44 = vector.load %arg5[%c0_19, %c0_20] : memref<168x128xf32, #tpu.memory_space<vmem>>, vector<1x16xf32>
    %45 = vector.broadcast %44 : vector<1x16xf32> to vector<16x16xf32>
    %46 = arith.addf %43, %45 : vector<16x16xf32>
    %c32 = arith.constant 32 : index
    %c0_21 = arith.constant 0 : index
    %47 = vector.load %arg4[%c32, %c0_21] : memref<640x64xf32, #tpu.memory_space<vmem>>, vector<32x16xf32>
    %cst_22 = arith.constant dense<0.000000e+00> : vector<16x16xf32>
    %48 = tpu.matmul %33, %47, %cst_22 {dimension_numbers = #tpu.dot_dimension_numbers<[1], [0], [0], [1], [0, 0, 1, 1], [], []>} : vector<16x32xf32>, vector<32x16xf32>, vector<16x16xf32> -> vector<16x16xf32>
    %c1 = arith.constant 1 : index
    %c0_23 = arith.constant 0 : index
    %49 = vector.load %arg5[%c1, %c0_23] : memref<168x128xf32, #tpu.memory_space<vmem>>, vector<1x16xf32>
    %50 = vector.broadcast %49 : vector<1x16xf32> to vector<16x16xf32>
    %51 = arith.addf %48, %50 : vector<16x16xf32>
    %c64_24 = arith.constant 64 : index
    %c0_25 = arith.constant 0 : index
    %52 = vector.load %arg4[%c64_24, %c0_25] : memref<640x64xf32, #tpu.memory_space<vmem>>, vector<32x16xf32>
    %cst_26 = arith.constant dense<0.000000e+00> : vector<16x16xf32>
    %53 = tpu.matmul %33, %52, %cst_26 {dimension_numbers = #tpu.dot_dimension_numbers<[1], [0], [0], [1], [0, 0, 1, 1], [], []>} : vector<16x32xf32>, vector<32x16xf32>, vector<16x16xf32> -> vector<16x16xf32>
    %c2 = arith.constant 2 : index
    %c0_27 = arith.constant 0 : index
    %54 = vector.load %arg5[%c2, %c0_27] : memref<168x128xf32, #tpu.memory_space<vmem>>, vector<1x16xf32>
    %55 = vector.broadcast %54 : vector<1x16xf32> to vector<16x16xf32>
    %56 = arith.addf %53, %55 : vector<16x16xf32>
    %cst_28 = arith.constant dense<0.000000e+00> : vector<16x16xf32>
    %57 = tpu.matmul %46, %51, %cst_28 {dimension_numbers = #tpu.dot_dimension_numbers<[1], [1], [0], [0], [0, 0, 1, 0], [], []>} : vector<16x16xf32>, vector<16x16xf32>, vector<16x16xf32> -> vector<16x16xf32>
    %cst_29 = arith.constant 2.500000e-01 : f32
    %58 = vector.broadcast %cst_29 : f32 to vector<16x16xf32>
    %59 = arith.mulf %57, %58 : vector<16x16xf32>
    %60 = arith.addf %59, %41 : vector<16x16xf32>
    %c96 = arith.constant 96 : index
    %c0_30 = arith.constant 0 : index
    %61 = vector.load %arg4[%c96, %c0_30] : memref<640x64xf32, #tpu.memory_space<vmem>>, vector<32x16xf32>
    %cst_31 = arith.constant dense<0.000000e+00> : vector<16x16xf32>
    %62 = tpu.matmul %33, %61, %cst_31 {dimension_numbers = #tpu.dot_dimension_numbers<[1], [0], [0], [1], [0, 0, 1, 1], [], []>} : vector<16x32xf32>, vector<32x16xf32>, vector<16x16xf32> -> vector<16x16xf32>
    %c3 = arith.constant 3 : index
    %c0_32 = arith.constant 0 : index
    %63 = vector.load %arg5[%c3, %c0_32] : memref<168x128xf32, #tpu.memory_space<vmem>>, vector<1x16xf32>
    %64 = vector.broadcast %63 : vector<1x16xf32> to vector<16x16xf32>
    %65 = arith.addf %62, %64 : vector<16x16xf32>
    %c128 = arith.constant 128 : index
    %c0_33 = arith.constant 0 : index
    %66 = vector.load %arg4[%c128, %c0_33] : memref<640x64xf32, #tpu.memory_space<vmem>>, vector<32x16xf32>
    %cst_34 = arith.constant dense<0.000000e+00> : vector<16x16xf32>
    %67 = tpu.matmul %33, %66, %cst_34 {dimension_numbers = #tpu.dot_dimension_numbers<[1], [0], [0], [1], [0, 0, 1, 1], [], []>} : vector<16x32xf32>, vector<32x16xf32>, vector<16x16xf32> -> vector<16x16xf32>
    %c4 = arith.constant 4 : index
    %c0_35 = arith.constant 0 : index
    %68 = vector.load %arg5[%c4, %c0_35] : memref<168x128xf32, #tpu.memory_space<vmem>>, vector<1x16xf32>
    %69 = vector.broadcast %68 : vector<1x16xf32> to vector<16x16xf32>
    %70 = arith.addf %67, %69 : vector<16x16xf32>
    %c160 = arith.constant 160 : index
    %c0_36 = arith.constant 0 : index
    %71 = vector.load %arg4[%c160, %c0_36] : memref<640x64xf32, #tpu.memory_space<vmem>>, vector<32x16xf32>
    %cst_37 = arith.constant dense<0.000000e+00> : vector<16x16xf32>
    %72 = tpu.matmul %33, %71, %cst_37 {dimension_numbers = #tpu.dot_dimension_numbers<[1], [0], [0], [1], [0, 0, 1, 1], [], []>} : vector<16x32xf32>, vector<32x16xf32>, vector<16x16xf32> -> vector<16x16xf32>
    %c5 = arith.constant 5 : index
    %c0_38 = arith.constant 0 : index
    %73 = vector.load %arg5[%c5, %c0_38] : memref<168x128xf32, #tpu.memory_space<vmem>>, vector<1x16xf32>
    %74 = vector.broadcast %73 : vector<1x16xf32> to vector<16x16xf32>
    %75 = arith.addf %72, %74 : vector<16x16xf32>
    %cst_39 = arith.constant dense<0.000000e+00> : vector<16x16xf32>
    %76 = tpu.matmul %65, %70, %cst_39 {dimension_numbers = #tpu.dot_dimension_numbers<[1], [1], [0], [0], [0, 0, 1, 0], [], []>} : vector<16x16xf32>, vector<16x16xf32>, vector<16x16xf32> -> vector<16x16xf32>
    %cst_40 = arith.constant 2.500000e-01 : f32
    %77 = vector.broadcast %cst_40 : f32 to vector<16x16xf32>
    %78 = arith.mulf %76, %77 : vector<16x16xf32>
    %79 = arith.addf %78, %41 : vector<16x16xf32>
    %80 = tpu.concatenate %60, %79 in 0 : vector<16x16xf32>, vector<16x16xf32> -> vector<32x16xf32>
    %cst_41 = arith.constant dense<0xFF800000> : vector<32xf32>
    %81 = vector.multi_reduction <maximumf>, %80, %cst_41 [1] : vector<32x16xf32> to vector<32xf32>
    %82 = vector.shape_cast %81 : vector<32xf32> to vector<32x1xf32>
    %83 = vector.broadcast %82 : vector<32x1xf32> to vector<32x16xf32>
    %84 = arith.subf %80, %83 : vector<32x16xf32>
    %85 = math.exp %84 : vector<32x16xf32>
    %cst_42 = arith.constant dense<0.000000e+00> : vector<32xf32>
    %86 = vector.multi_reduction <add>, %85, %cst_42 [1] : vector<32x16xf32> to vector<32xf32>
    %87 = vector.shape_cast %86 : vector<32xf32> to vector<32x1xf32>
    %88 = vector.broadcast %87 : vector<32x1xf32> to vector<32x16xf32>
    %89 = arith.divf %85, %88 : vector<32x16xf32>
    %c6 = arith.constant 6 : index
    %c0_43 = arith.constant 0 : index
    %90 = vector.load %arg5[%c6, %c0_43] : memref<168x128xf32, #tpu.memory_space<vmem>>, vector<1x32xf32>
    %91 = vector.extract_strided_slice %89 {offsets = [0, 0], sizes = [16, 16], strides = [1, 1]} : vector<32x16xf32> to vector<16x16xf32>
    %cst_44 = arith.constant dense<0.000000e+00> : vector<16x16xf32>
    %92 = tpu.matmul %91, %56, %cst_44 {dimension_numbers = #tpu.dot_dimension_numbers<[1], [0], [0], [1], [0, 0, 1, 1], [], []>} : vector<16x16xf32>, vector<16x16xf32>, vector<16x16xf32> -> vector<16x16xf32>
    %c192 = arith.constant 192 : index
    %c0_45 = arith.constant 0 : index
    %93 = vector.load %arg4[%c192, %c0_45] : memref<640x64xf32, #tpu.memory_space<vmem>>, vector<16x32xf32>
    %cst_46 = arith.constant dense<0.000000e+00> : vector<16x32xf32>
    %94 = tpu.matmul %92, %93, %cst_46 {dimension_numbers = #tpu.dot_dimension_numbers<[1], [0], [0], [1], [0, 0, 1, 1], [], []>} : vector<16x16xf32>, vector<16x32xf32>, vector<16x32xf32> -> vector<16x32xf32>
    %95 = vector.broadcast %90 : vector<1x32xf32> to vector<16x32xf32>
    %96 = arith.addf %95, %94 : vector<16x32xf32>
    %97 = vector.extract_strided_slice %89 {offsets = [16, 0], sizes = [16, 16], strides = [1, 1]} : vector<32x16xf32> to vector<16x16xf32>
    %cst_47 = arith.constant dense<0.000000e+00> : vector<16x16xf32>
    %98 = tpu.matmul %97, %75, %cst_47 {dimension_numbers = #tpu.dot_dimension_numbers<[1], [0], [0], [1], [0, 0, 1, 1], [], []>} : vector<16x16xf32>, vector<16x16xf32>, vector<16x16xf32> -> vector<16x16xf32>
    %c208 = arith.constant 208 : index
    %c0_48 = arith.constant 0 : index
    %99 = vector.load %arg4[%c208, %c0_48] : memref<640x64xf32, #tpu.memory_space<vmem>>, vector<16x32xf32>
    %cst_49 = arith.constant dense<0.000000e+00> : vector<16x32xf32>
    %100 = tpu.matmul %98, %99, %cst_49 {dimension_numbers = #tpu.dot_dimension_numbers<[1], [0], [0], [1], [0, 0, 1, 1], [], []>} : vector<16x16xf32>, vector<16x32xf32>, vector<16x32xf32> -> vector<16x32xf32>
    %101 = arith.addf %96, %100 : vector<16x32xf32>
    %102 = arith.addf %101, %33 : vector<16x32xf32>
    %c7 = arith.constant 7 : index
    %c0_50 = arith.constant 0 : index
    %103 = vector.load %arg5[%c7, %c0_50] : memref<168x128xf32, #tpu.memory_space<vmem>>, vector<1x32xf32>
    %c8 = arith.constant 8 : index
    %c0_51 = arith.constant 0 : index
    %104 = vector.load %arg5[%c8, %c0_51] : memref<168x128xf32, #tpu.memory_space<vmem>>, vector<1x32xf32>
    %cst_52 = arith.constant dense<0.000000e+00> : vector<16xf32>
    %105 = vector.multi_reduction <add>, %102, %cst_52 [1] : vector<16x32xf32> to vector<16xf32>
    %106 = vector.shape_cast %105 : vector<16xf32> to vector<16x1xf32>
    %cst_53 = arith.constant 3.200000e+01 : f32
    %107 = vector.broadcast %cst_53 : f32 to vector<16x1xf32>
    %108 = arith.divf %106, %107 : vector<16x1xf32>
    %109 = vector.broadcast %108 : vector<16x1xf32> to vector<16x32xf32>
    %110 = arith.subf %102, %109 : vector<16x32xf32>
    %111 = arith.mulf %110, %110 : vector<16x32xf32>
    %cst_54 = arith.constant dense<0.000000e+00> : vector<16xf32>
    %112 = vector.multi_reduction <add>, %111, %cst_54 [1] : vector<16x32xf32> to vector<16xf32>
    %113 = vector.shape_cast %112 : vector<16xf32> to vector<16x1xf32>
    %cst_55 = arith.constant 3.200000e+01 : f32
    %114 = vector.broadcast %cst_55 : f32 to vector<16x1xf32>
    %115 = arith.divf %113, %114 : vector<16x1xf32>
    %116 = vector.broadcast %108 : vector<16x1xf32> to vector<16x32xf32>
    %117 = arith.subf %102, %116 : vector<16x32xf32>
    %cst_56 = arith.constant 9.99999996E-13 : f32
    %118 = vector.broadcast %cst_56 : f32 to vector<16x1xf32>
    %119 = arith.addf %115, %118 : vector<16x1xf32>
    %120 = math.rsqrt %119 : vector<16x1xf32>
    %121 = vector.broadcast %120 : vector<16x1xf32> to vector<16x32xf32>
    %122 = arith.mulf %117, %121 : vector<16x32xf32>
    %123 = vector.broadcast %103 : vector<1x32xf32> to vector<16x32xf32>
    %124 = arith.mulf %122, %123 : vector<16x32xf32>
    %125 = vector.broadcast %104 : vector<1x32xf32> to vector<16x32xf32>
    %126 = arith.addf %124, %125 : vector<16x32xf32>
    %c224 = arith.constant 224 : index
    %c0_57 = arith.constant 0 : index
    %127 = vector.load %arg4[%c224, %c0_57] : memref<640x64xf32, #tpu.memory_space<vmem>>, vector<32x64xf32>
    %cst_58 = arith.constant dense<0.000000e+00> : vector<16x64xf32>
    %128 = tpu.matmul %126, %127, %cst_58 {dimension_numbers = #tpu.dot_dimension_numbers<[1], [0], [0], [1], [0, 0, 1, 1], [], []>} : vector<16x32xf32>, vector<32x64xf32>, vector<16x64xf32> -> vector<16x64xf32>
    %c9 = arith.constant 9 : index
    %c0_59 = arith.constant 0 : index
    %129 = vector.load %arg5[%c9, %c0_59] : memref<168x128xf32, #tpu.memory_space<vmem>>, vector<1x64xf32>
    %130 = vector.broadcast %129 : vector<1x64xf32> to vector<16x64xf32>
    %131 = arith.addf %128, %130 : vector<16x64xf32>
    %132 = arith.mulf %131, %131 : vector<16x64xf32>
    %133 = arith.mulf %131, %132 : vector<16x64xf32>
    %cst_60 = arith.constant 4.471500e-02 : f32
    %134 = vector.broadcast %cst_60 : f32 to vector<16x64xf32>
    %135 = arith.mulf %134, %133 : vector<16x64xf32>
    %136 = arith.addf %131, %135 : vector<16x64xf32>
    %cst_61 = arith.constant 0.797884583 : f32
    %137 = vector.broadcast %cst_61 : f32 to vector<16x64xf32>
    %138 = arith.mulf %137, %136 : vector<16x64xf32>
    %139 = math.tanh %138 : vector<16x64xf32>
    %cst_62 = arith.constant 1.000000e+00 : f32
    %140 = vector.broadcast %cst_62 : f32 to vector<16x64xf32>
    %141 = arith.addf %140, %139 : vector<16x64xf32>
    %cst_63 = arith.constant 5.000000e-01 : f32
    %142 = vector.broadcast %cst_63 : f32 to vector<16x64xf32>
    %143 = arith.mulf %142, %141 : vector<16x64xf32>
    %144 = arith.mulf %131, %143 : vector<16x64xf32>
    %c256 = arith.constant 256 : index
    %c0_64 = arith.constant 0 : index
    %145 = vector.load %arg4[%c256, %c0_64] : memref<640x64xf32, #tpu.memory_space<vmem>>, vector<64x32xf32>
    %cst_65 = arith.constant dense<0.000000e+00> : vector<16x32xf32>
    %146 = tpu.matmul %144, %145, %cst_65 {dimension_numbers = #tpu.dot_dimension_numbers<[1], [0], [0], [1], [0, 0, 1, 1], [], []>} : vector<16x64xf32>, vector<64x32xf32>, vector<16x32xf32> -> vector<16x32xf32>
    %c10 = arith.constant 10 : index
    %c0_66 = arith.constant 0 : index
    %147 = vector.load %arg5[%c10, %c0_66] : memref<168x128xf32, #tpu.memory_space<vmem>>, vector<1x32xf32>
    %148 = vector.broadcast %147 : vector<1x32xf32> to vector<16x32xf32>
    %149 = arith.addf %146, %148 : vector<16x32xf32>
    %150 = arith.addf %149, %126 : vector<16x32xf32>
    %c11 = arith.constant 11 : index
    %c0_67 = arith.constant 0 : index
    %151 = vector.load %arg5[%c11, %c0_67] : memref<168x128xf32, #tpu.memory_space<vmem>>, vector<1x32xf32>
    %c12 = arith.constant 12 : index
    %c0_68 = arith.constant 0 : index
    %152 = vector.load %arg5[%c12, %c0_68] : memref<168x128xf32, #tpu.memory_space<vmem>>, vector<1x32xf32>
    %cst_69 = arith.constant dense<0.000000e+00> : vector<16xf32>
    %153 = vector.multi_reduction <add>, %150, %cst_69 [1] : vector<16x32xf32> to vector<16xf32>
    %154 = vector.shape_cast %153 : vector<16xf32> to vector<16x1xf32>
    %cst_70 = arith.constant 3.200000e+01 : f32
    %155 = vector.broadcast %cst_70 : f32 to vector<16x1xf32>
    %156 = arith.divf %154, %155 : vector<16x1xf32>
    %157 = vector.broadcast %156 : vector<16x1xf32> to vector<16x32xf32>
    %158 = arith.subf %150, %157 : vector<16x32xf32>
    %159 = arith.mulf %158, %158 : vector<16x32xf32>
    %cst_71 = arith.constant dense<0.000000e+00> : vector<16xf32>
    %160 = vector.multi_reduction <add>, %159, %cst_71 [1] : vector<16x32xf32> to vector<16xf32>
    %161 = vector.shape_cast %160 : vector<16xf32> to vector<16x1xf32>
    %cst_72 = arith.constant 3.200000e+01 : f32
    %162 = vector.broadcast %cst_72 : f32 to vector<16x1xf32>
    %163 = arith.divf %161, %162 : vector<16x1xf32>
    %164 = vector.broadcast %156 : vector<16x1xf32> to vector<16x32xf32>
    %165 = arith.subf %150, %164 : vector<16x32xf32>
    %cst_73 = arith.constant 9.99999996E-13 : f32
    %166 = vector.broadcast %cst_73 : f32 to vector<16x1xf32>
    %167 = arith.addf %163, %166 : vector<16x1xf32>
    %168 = math.rsqrt %167 : vector<16x1xf32>
    %169 = vector.broadcast %168 : vector<16x1xf32> to vector<16x32xf32>
    %170 = arith.mulf %165, %169 : vector<16x32xf32>
    %171 = vector.broadcast %151 : vector<1x32xf32> to vector<16x32xf32>
    %172 = arith.mulf %170, %171 : vector<16x32xf32>
    %173 = vector.broadcast %152 : vector<1x32xf32> to vector<16x32xf32>
    %174 = arith.addf %172, %173 : vector<16x32xf32>
    %c320 = arith.constant 320 : index
    %c0_74 = arith.constant 0 : index
    %175 = vector.load %arg4[%c320, %c0_74] : memref<640x64xf32, #tpu.memory_space<vmem>>, vector<32x16xf32>
    %cst_75 = arith.constant dense<0.000000e+00> : vector<16x16xf32>
    %176 = tpu.matmul %174, %175, %cst_75 {dimension_numbers = #tpu.dot_dimension_numbers<[1], [0], [0], [1], [0, 0, 1, 1], [], []>} : vector<16x32xf32>, vector<32x16xf32>, vector<16x16xf32> -> vector<16x16xf32>
    %c16 = arith.constant 16 : index
    %c0_76 = arith.constant 0 : index
    %177 = vector.load %arg5[%c16, %c0_76] : memref<168x128xf32, #tpu.memory_space<vmem>>, vector<1x16xf32>
    %178 = vector.broadcast %177 : vector<1x16xf32> to vector<16x16xf32>
    %179 = arith.addf %176, %178 : vector<16x16xf32>
    %c352 = arith.constant 352 : index
    %c0_77 = arith.constant 0 : index
    %180 = vector.load %arg4[%c352, %c0_77] : memref<640x64xf32, #tpu.memory_space<vmem>>, vector<32x16xf32>
    %cst_78 = arith.constant dense<0.000000e+00> : vector<16x16xf32>
    %181 = tpu.matmul %174, %180, %cst_78 {dimension_numbers = #tpu.dot_dimension_numbers<[1], [0], [0], [1], [0, 0, 1, 1], [], []>} : vector<16x32xf32>, vector<32x16xf32>, vector<16x16xf32> -> vector<16x16xf32>
    %c17 = arith.constant 17 : index
    %c0_79 = arith.constant 0 : index
    %182 = vector.load %arg5[%c17, %c0_79] : memref<168x128xf32, #tpu.memory_space<vmem>>, vector<1x16xf32>
    %183 = vector.broadcast %182 : vector<1x16xf32> to vector<16x16xf32>
    %184 = arith.addf %181, %183 : vector<16x16xf32>
    %c384 = arith.constant 384 : index
    %c0_80 = arith.constant 0 : index
    %185 = vector.load %arg4[%c384, %c0_80] : memref<640x64xf32, #tpu.memory_space<vmem>>, vector<32x16xf32>
    %cst_81 = arith.constant dense<0.000000e+00> : vector<16x16xf32>
    %186 = tpu.matmul %174, %185, %cst_81 {dimension_numbers = #tpu.dot_dimension_numbers<[1], [0], [0], [1], [0, 0, 1, 1], [], []>} : vector<16x32xf32>, vector<32x16xf32>, vector<16x16xf32> -> vector<16x16xf32>
    %c18 = arith.constant 18 : index
    %c0_82 = arith.constant 0 : index
    %187 = vector.load %arg5[%c18, %c0_82] : memref<168x128xf32, #tpu.memory_space<vmem>>, vector<1x16xf32>
    %188 = vector.broadcast %187 : vector<1x16xf32> to vector<16x16xf32>
    %189 = arith.addf %186, %188 : vector<16x16xf32>
    %cst_83 = arith.constant dense<0.000000e+00> : vector<16x16xf32>
    %190 = tpu.matmul %179, %184, %cst_83 {dimension_numbers = #tpu.dot_dimension_numbers<[1], [1], [0], [0], [0, 0, 1, 0], [], []>} : vector<16x16xf32>, vector<16x16xf32>, vector<16x16xf32> -> vector<16x16xf32>
    %cst_84 = arith.constant 2.500000e-01 : f32
    %191 = vector.broadcast %cst_84 : f32 to vector<16x16xf32>
    %192 = arith.mulf %190, %191 : vector<16x16xf32>
    %193 = arith.addf %192, %41 : vector<16x16xf32>
    %c416 = arith.constant 416 : index
    %c0_85 = arith.constant 0 : index
    %194 = vector.load %arg4[%c416, %c0_85] : memref<640x64xf32, #tpu.memory_space<vmem>>, vector<32x16xf32>
    %cst_86 = arith.constant dense<0.000000e+00> : vector<16x16xf32>
    %195 = tpu.matmul %174, %194, %cst_86 {dimension_numbers = #tpu.dot_dimension_numbers<[1], [0], [0], [1], [0, 0, 1, 1], [], []>} : vector<16x32xf32>, vector<32x16xf32>, vector<16x16xf32> -> vector<16x16xf32>
    %c19 = arith.constant 19 : index
    %c0_87 = arith.constant 0 : index
    %196 = vector.load %arg5[%c19, %c0_87] : memref<168x128xf32, #tpu.memory_space<vmem>>, vector<1x16xf32>
    %197 = vector.broadcast %196 : vector<1x16xf32> to vector<16x16xf32>
    %198 = arith.addf %195, %197 : vector<16x16xf32>
    %c448 = arith.constant 448 : index
    %c0_88 = arith.constant 0 : index
    %199 = vector.load %arg4[%c448, %c0_88] : memref<640x64xf32, #tpu.memory_space<vmem>>, vector<32x16xf32>
    %cst_89 = arith.constant dense<0.000000e+00> : vector<16x16xf32>
    %200 = tpu.matmul %174, %199, %cst_89 {dimension_numbers = #tpu.dot_dimension_numbers<[1], [0], [0], [1], [0, 0, 1, 1], [], []>} : vector<16x32xf32>, vector<32x16xf32>, vector<16x16xf32> -> vector<16x16xf32>
    %c20 = arith.constant 20 : index
    %c0_90 = arith.constant 0 : index
    %201 = vector.load %arg5[%c20, %c0_90] : memref<168x128xf32, #tpu.memory_space<vmem>>, vector<1x16xf32>
    %202 = vector.broadcast %201 : vector<1x16xf32> to vector<16x16xf32>
    %203 = arith.addf %200, %202 : vector<16x16xf32>
    %c480 = arith.constant 480 : index
    %c0_91 = arith.constant 0 : index
    %204 = vector.load %arg4[%c480, %c0_91] : memref<640x64xf32, #tpu.memory_space<vmem>>, vector<32x16xf32>
    %cst_92 = arith.constant dense<0.000000e+00> : vector<16x16xf32>
    %205 = tpu.matmul %174, %204, %cst_92 {dimension_numbers = #tpu.dot_dimension_numbers<[1], [0], [0], [1], [0, 0, 1, 1], [], []>} : vector<16x32xf32>, vector<32x16xf32>, vector<16x16xf32> -> vector<16x16xf32>
    %c21 = arith.constant 21 : index
    %c0_93 = arith.constant 0 : index
    %206 = vector.load %arg5[%c21, %c0_93] : memref<168x128xf32, #tpu.memory_space<vmem>>, vector<1x16xf32>
    %207 = vector.broadcast %206 : vector<1x16xf32> to vector<16x16xf32>
    %208 = arith.addf %205, %207 : vector<16x16xf32>
    %cst_94 = arith.constant dense<0.000000e+00> : vector<16x16xf32>
    %209 = tpu.matmul %198, %203, %cst_94 {dimension_numbers = #tpu.dot_dimension_numbers<[1], [1], [0], [0], [0, 0, 1, 0], [], []>} : vector<16x16xf32>, vector<16x16xf32>, vector<16x16xf32> -> vector<16x16xf32>
    %cst_95 = arith.constant 2.500000e-01 : f32
    %210 = vector.broadcast %cst_95 : f32 to vector<16x16xf32>
    %211 = arith.mulf %209, %210 : vector<16x16xf32>
    %212 = arith.addf %211, %41 : vector<16x16xf32>
    %213 = tpu.concatenate %193, %212 in 0 : vector<16x16xf32>, vector<16x16xf32> -> vector<32x16xf32>
    %cst_96 = arith.constant dense<0xFF800000> : vector<32xf32>
    %214 = vector.multi_reduction <maximumf>, %213, %cst_96 [1] : vector<32x16xf32> to vector<32xf32>
    %215 = vector.shape_cast %214 : vector<32xf32> to vector<32x1xf32>
    %216 = vector.broadcast %215 : vector<32x1xf32> to vector<32x16xf32>
    %217 = arith.subf %213, %216 : vector<32x16xf32>
    %218 = math.exp %217 : vector<32x16xf32>
    %cst_97 = arith.constant dense<0.000000e+00> : vector<32xf32>
    %219 = vector.multi_reduction <add>, %218, %cst_97 [1] : vector<32x16xf32> to vector<32xf32>
    %220 = vector.shape_cast %219 : vector<32xf32> to vector<32x1xf32>
    %221 = vector.broadcast %220 : vector<32x1xf32> to vector<32x16xf32>
    %222 = arith.divf %218, %221 : vector<32x16xf32>
    %c22 = arith.constant 22 : index
    %c0_98 = arith.constant 0 : index
    %223 = vector.load %arg5[%c22, %c0_98] : memref<168x128xf32, #tpu.memory_space<vmem>>, vector<1x32xf32>
    %224 = vector.extract_strided_slice %222 {offsets = [0, 0], sizes = [16, 16], strides = [1, 1]} : vector<32x16xf32> to vector<16x16xf32>
    %cst_99 = arith.constant dense<0.000000e+00> : vector<16x16xf32>
    %225 = tpu.matmul %224, %189, %cst_99 {dimension_numbers = #tpu.dot_dimension_numbers<[1], [0], [0], [1], [0, 0, 1, 1], [], []>} : vector<16x16xf32>, vector<16x16xf32>, vector<16x16xf32> -> vector<16x16xf32>
    %c512 = arith.constant 512 : index
    %c0_100 = arith.constant 0 : index
    %226 = vector.load %arg4[%c512, %c0_100] : memref<640x64xf32, #tpu.memory_space<vmem>>, vector<16x32xf32>
    %cst_101 = arith.constant dense<0.000000e+00> : vector<16x32xf32>
    %227 = tpu.matmul %225, %226, %cst_101 {dimension_numbers = #tpu.dot_dimension_numbers<[1], [0], [0], [1], [0, 0, 1, 1], [], []>} : vector<16x16xf32>, vector<16x32xf32>, vector<16x32xf32> -> vector<16x32xf32>
    %228 = vector.broadcast %223 : vector<1x32xf32> to vector<16x32xf32>
    %229 = arith.addf %228, %227 : vector<16x32xf32>
    %230 = vector.extract_strided_slice %222 {offsets = [16, 0], sizes = [16, 16], strides = [1, 1]} : vector<32x16xf32> to vector<16x16xf32>
    %cst_102 = arith.constant dense<0.000000e+00> : vector<16x16xf32>
    %231 = tpu.matmul %230, %208, %cst_102 {dimension_numbers = #tpu.dot_dimension_numbers<[1], [0], [0], [1], [0, 0, 1, 1], [], []>} : vector<16x16xf32>, vector<16x16xf32>, vector<16x16xf32> -> vector<16x16xf32>
    %c528 = arith.constant 528 : index
    %c0_103 = arith.constant 0 : index
    %232 = vector.load %arg4[%c528, %c0_103] : memref<640x64xf32, #tpu.memory_space<vmem>>, vector<16x32xf32>
    %cst_104 = arith.constant dense<0.000000e+00> : vector<16x32xf32>
    %233 = tpu.matmul %231, %232, %cst_104 {dimension_numbers = #tpu.dot_dimension_numbers<[1], [0], [0], [1], [0, 0, 1, 1], [], []>} : vector<16x16xf32>, vector<16x32xf32>, vector<16x32xf32> -> vector<16x32xf32>
    %234 = arith.addf %229, %233 : vector<16x32xf32>
    %235 = arith.addf %234, %174 : vector<16x32xf32>
    %c23 = arith.constant 23 : index
    %c0_105 = arith.constant 0 : index
    %236 = vector.load %arg5[%c23, %c0_105] : memref<168x128xf32, #tpu.memory_space<vmem>>, vector<1x32xf32>
    %c24 = arith.constant 24 : index
    %c0_106 = arith.constant 0 : index
    %237 = vector.load %arg5[%c24, %c0_106] : memref<168x128xf32, #tpu.memory_space<vmem>>, vector<1x32xf32>
    %cst_107 = arith.constant dense<0.000000e+00> : vector<16xf32>
    %238 = vector.multi_reduction <add>, %235, %cst_107 [1] : vector<16x32xf32> to vector<16xf32>
    %239 = vector.shape_cast %238 : vector<16xf32> to vector<16x1xf32>
    %cst_108 = arith.constant 3.200000e+01 : f32
    %240 = vector.broadcast %cst_108 : f32 to vector<16x1xf32>
    %241 = arith.divf %239, %240 : vector<16x1xf32>
    %242 = vector.broadcast %241 : vector<16x1xf32> to vector<16x32xf32>
    %243 = arith.subf %235, %242 : vector<16x32xf32>
    %244 = arith.mulf %243, %243 : vector<16x32xf32>
    %cst_109 = arith.constant dense<0.000000e+00> : vector<16xf32>
    %245 = vector.multi_reduction <add>, %244, %cst_109 [1] : vector<16x32xf32> to vector<16xf32>
    %246 = vector.shape_cast %245 : vector<16xf32> to vector<16x1xf32>
    %cst_110 = arith.constant 3.200000e+01 : f32
    %247 = vector.broadcast %cst_110 : f32 to vector<16x1xf32>
    %248 = arith.divf %246, %247 : vector<16x1xf32>
    %249 = vector.broadcast %241 : vector<16x1xf32> to vector<16x32xf32>
    %250 = arith.subf %235, %249 : vector<16x32xf32>
    %cst_111 = arith.constant 9.99999996E-13 : f32
    %251 = vector.broadcast %cst_111 : f32 to vector<16x1xf32>
    %252 = arith.addf %248, %251 : vector<16x1xf32>
    %253 = math.rsqrt %252 : vector<16x1xf32>
    %254 = vector.broadcast %253 : vector<16x1xf32> to vector<16x32xf32>
    %255 = arith.mulf %250, %254 : vector<16x32xf32>
    %256 = vector.broadcast %236 : vector<1x32xf32> to vector<16x32xf32>
    %257 = arith.mulf %255, %256 : vector<16x32xf32>
    %258 = vector.broadcast %237 : vector<1x32xf32> to vector<16x32xf32>
    %259 = arith.addf %257, %258 : vector<16x32xf32>
    %c544 = arith.constant 544 : index
    %c0_112 = arith.constant 0 : index
    %260 = vector.load %arg4[%c544, %c0_112] : memref<640x64xf32, #tpu.memory_space<vmem>>, vector<32x64xf32>
    %cst_113 = arith.constant dense<0.000000e+00> : vector<16x64xf32>
    %261 = tpu.matmul %259, %260, %cst_113 {dimension_numbers = #tpu.dot_dimension_numbers<[1], [0], [0], [1], [0, 0, 1, 1], [], []>} : vector<16x32xf32>, vector<32x64xf32>, vector<16x64xf32> -> vector<16x64xf32>
    %c25 = arith.constant 25 : index
    %c0_114 = arith.constant 0 : index
    %262 = vector.load %arg5[%c25, %c0_114] : memref<168x128xf32, #tpu.memory_space<vmem>>, vector<1x64xf32>
    %263 = vector.broadcast %262 : vector<1x64xf32> to vector<16x64xf32>
    %264 = arith.addf %261, %263 : vector<16x64xf32>
    %265 = arith.mulf %264, %264 : vector<16x64xf32>
    %266 = arith.mulf %264, %265 : vector<16x64xf32>
    %cst_115 = arith.constant 4.471500e-02 : f32
    %267 = vector.broadcast %cst_115 : f32 to vector<16x64xf32>
    %268 = arith.mulf %267, %266 : vector<16x64xf32>
    %269 = arith.addf %264, %268 : vector<16x64xf32>
    %cst_116 = arith.constant 0.797884583 : f32
    %270 = vector.broadcast %cst_116 : f32 to vector<16x64xf32>
    %271 = arith.mulf %270, %269 : vector<16x64xf32>
    %272 = math.tanh %271 : vector<16x64xf32>
    %cst_117 = arith.constant 1.000000e+00 : f32
    %273 = vector.broadcast %cst_117 : f32 to vector<16x64xf32>
    %274 = arith.addf %273, %272 : vector<16x64xf32>
    %cst_118 = arith.constant 5.000000e-01 : f32
    %275 = vector.broadcast %cst_118 : f32 to vector<16x64xf32>
    %276 = arith.mulf %275, %274 : vector<16x64xf32>
    %277 = arith.mulf %264, %276 : vector<16x64xf32>
    %c576 = arith.constant 576 : index
    %c0_119 = arith.constant 0 : index
    %278 = vector.load %arg4[%c576, %c0_119] : memref<640x64xf32, #tpu.memory_space<vmem>>, vector<64x32xf32>
    %cst_120 = arith.constant dense<0.000000e+00> : vector<16x32xf32>
    %279 = tpu.matmul %277, %278, %cst_120 {dimension_numbers = #tpu.dot_dimension_numbers<[1], [0], [0], [1], [0, 0, 1, 1], [], []>} : vector<16x64xf32>, vector<64x32xf32>, vector<16x32xf32> -> vector<16x32xf32>
    %c26 = arith.constant 26 : index
    %c0_121 = arith.constant 0 : index
    %280 = vector.load %arg5[%c26, %c0_121] : memref<168x128xf32, #tpu.memory_space<vmem>>, vector<1x32xf32>
    %281 = vector.broadcast %280 : vector<1x32xf32> to vector<16x32xf32>
    %282 = arith.addf %279, %281 : vector<16x32xf32>
    %283 = arith.addf %282, %259 : vector<16x32xf32>
    %c27 = arith.constant 27 : index
    %c0_122 = arith.constant 0 : index
    %284 = vector.load %arg5[%c27, %c0_122] : memref<168x128xf32, #tpu.memory_space<vmem>>, vector<1x32xf32>
    %c28 = arith.constant 28 : index
    %c0_123 = arith.constant 0 : index
    %285 = vector.load %arg5[%c28, %c0_123] : memref<168x128xf32, #tpu.memory_space<vmem>>, vector<1x32xf32>
    %cst_124 = arith.constant dense<0.000000e+00> : vector<16xf32>
    %286 = vector.multi_reduction <add>, %283, %cst_124 [1] : vector<16x32xf32> to vector<16xf32>
    %287 = vector.shape_cast %286 : vector<16xf32> to vector<16x1xf32>
    %cst_125 = arith.constant 3.200000e+01 : f32
    %288 = vector.broadcast %cst_125 : f32 to vector<16x1xf32>
    %289 = arith.divf %287, %288 : vector<16x1xf32>
    %290 = vector.broadcast %289 : vector<16x1xf32> to vector<16x32xf32>
    %291 = arith.subf %283, %290 : vector<16x32xf32>
    %292 = arith.mulf %291, %291 : vector<16x32xf32>
    %cst_126 = arith.constant dense<0.000000e+00> : vector<16xf32>
    %293 = vector.multi_reduction <add>, %292, %cst_126 [1] : vector<16x32xf32> to vector<16xf32>
    %294 = vector.shape_cast %293 : vector<16xf32> to vector<16x1xf32>
    %cst_127 = arith.constant 3.200000e+01 : f32
    %295 = vector.broadcast %cst_127 : f32 to vector<16x1xf32>
    %296 = arith.divf %294, %295 : vector<16x1xf32>
    %297 = vector.broadcast %289 : vector<16x1xf32> to vector<16x32xf32>
    %298 = arith.subf %283, %297 : vector<16x32xf32>
    %cst_128 = arith.constant 9.99999996E-13 : f32
    %299 = vector.broadcast %cst_128 : f32 to vector<16x1xf32>
    %300 = arith.addf %296, %299 : vector<16x1xf32>
    %301 = math.rsqrt %300 : vector<16x1xf32>
    %302 = vector.broadcast %301 : vector<16x1xf32> to vector<16x32xf32>
    %303 = arith.mulf %298, %302 : vector<16x32xf32>
    %304 = vector.broadcast %284 : vector<1x32xf32> to vector<16x32xf32>
    %305 = arith.mulf %303, %304 : vector<16x32xf32>
    %306 = vector.broadcast %285 : vector<1x32xf32> to vector<16x32xf32>
    %307 = arith.addf %305, %306 : vector<16x32xf32>
    %308 = tpu.iota {dimensions = array<i32: 1>} : vector<8x16xi32>
    %309 = tpu.iota {dimensions = array<i32: 0>} : vector<8x16xi32>
    %c8_i32 = arith.constant 8 : i32
    %310 = vector.broadcast %c8_i32 : i32 to vector<8x16xi32>
    %311 = arith.muli %310, %309 : vector<8x16xi32>
    %312 = arith.cmpi eq, %308, %311 : vector<8x16xi32>
    %313 = arith.extui %312 : vector<8x16xi1> to vector<8x16xi32>
    %314 = arith.sitofp %313 : vector<8x16xi32> to vector<8x16xf32>
    %cst_129 = arith.constant dense<0.000000e+00> : vector<8x32xf32>
    %315 = tpu.matmul %314, %307, %cst_129 {dimension_numbers = #tpu.dot_dimension_numbers<[1], [0], [0], [1], [0, 0, 1, 1], [], []>} : vector<8x16xf32>, vector<16x32xf32>, vector<8x32xf32> -> vector<8x32xf32>
    %c32_130 = arith.constant 32 : index
    %c0_131 = arith.constant 0 : index
    %316 = vector.load %arg5[%c32_130, %c0_131] : memref<168x128xf32, #tpu.memory_space<vmem>>, vector<32x32xf32>
    %cst_132 = arith.constant dense<0.000000e+00> : vector<8x32xf32>
    %317 = tpu.matmul %315, %316, %cst_132 {dimension_numbers = #tpu.dot_dimension_numbers<[1], [0], [0], [1], [0, 0, 1, 1], [], []>} : vector<8x32xf32>, vector<32x32xf32>, vector<8x32xf32> -> vector<8x32xf32>
    %318 = math.tanh %317 : vector<8x32xf32>
    %c0_133 = arith.constant 0 : index
    %c0_134 = arith.constant 0 : index
    %319 = vector.load %arg2[%c0_133, %c0_134] : memref<8x16xf32, #tpu.memory_space<vmem>>, vector<8x16xf32>
    %c64_135 = arith.constant 64 : index
    %c0_136 = arith.constant 0 : index
    %320 = vector.load %arg5[%c64_135, %c0_136] : memref<168x128xf32, #tpu.memory_space<vmem>>, vector<16x32xf32>
    %cst_137 = arith.constant dense<0.000000e+00> : vector<8x32xf32>
    %321 = tpu.matmul %319, %320, %cst_137 {dimension_numbers = #tpu.dot_dimension_numbers<[1], [0], [0], [1], [0, 0, 1, 1], [], []>} : vector<8x16xf32>, vector<16x32xf32>, vector<8x32xf32> -> vector<8x32xf32>
    %322 = math.tanh %321 : vector<8x32xf32>
    %c160_138 = arith.constant 160 : index
    %c0_139 = arith.constant 0 : index
    %323 = vector.load %arg5[%c160_138, %c0_139] : memref<168x128xf32, #tpu.memory_space<vmem>>, vector<1x32xf32>
    %324 = vector.broadcast %323 : vector<1x32xf32> to vector<8x32xf32>
    %325 = arith.mulf %318, %324 : vector<8x32xf32>
    %cst_140 = arith.constant dense<0.000000e+00> : vector<8xf32>
    %326 = vector.multi_reduction <add>, %325, %cst_140 [1] : vector<8x32xf32> to vector<8xf32>
    %327 = vector.shape_cast %326 : vector<8xf32> to vector<8x1xf32>
    %c161 = arith.constant 161 : index
    %c0_141 = arith.constant 0 : index
    %328 = vector.load %arg5[%c161, %c0_141] : memref<168x128xf32, #tpu.memory_space<vmem>>, vector<1x32xf32>
    %329 = vector.broadcast %328 : vector<1x32xf32> to vector<8x32xf32>
    %330 = arith.mulf %322, %329 : vector<8x32xf32>
    %cst_142 = arith.constant dense<0.000000e+00> : vector<8xf32>
    %331 = vector.multi_reduction <add>, %330, %cst_142 [1] : vector<8x32xf32> to vector<8xf32>
    %332 = vector.shape_cast %331 : vector<8xf32> to vector<8x1xf32>
    %333 = arith.addf %327, %332 : vector<8x1xf32>
    %334 = arith.negf %333 : vector<8x1xf32>
    %335 = math.exp %334 : vector<8x1xf32>
    %cst_143 = arith.constant 1.000000e+00 : f32
    %336 = vector.broadcast %cst_143 : f32 to vector<8x1xf32>
    %337 = arith.addf %336, %335 : vector<8x1xf32>
    %338 = arith.divf %336, %337 : vector<8x1xf32>
    %339 = vector.broadcast %338 : vector<8x1xf32> to vector<8x32xf32>
    %340 = arith.mulf %339, %318 : vector<8x32xf32>
    %cst_144 = arith.constant 1.000000e+00 : f32
    %341 = vector.broadcast %cst_144 : f32 to vector<8x1xf32>
    %342 = arith.subf %341, %338 : vector<8x1xf32>
    %343 = vector.broadcast %342 : vector<8x1xf32> to vector<8x32xf32>
    %344 = arith.mulf %343, %322 : vector<8x32xf32>
    %345 = arith.addf %340, %344 : vector<8x32xf32>
    %346 = arith.mulf %345, %345 : vector<8x32xf32>
    %347 = arith.mulf %345, %346 : vector<8x32xf32>
    %cst_145 = arith.constant 4.471500e-02 : f32
    %348 = vector.broadcast %cst_145 : f32 to vector<8x32xf32>
    %349 = arith.mulf %348, %347 : vector<8x32xf32>
    %350 = arith.addf %345, %349 : vector<8x32xf32>
    %cst_146 = arith.constant 0.797884583 : f32
    %351 = vector.broadcast %cst_146 : f32 to vector<8x32xf32>
    %352 = arith.mulf %351, %350 : vector<8x32xf32>
    %353 = math.tanh %352 : vector<8x32xf32>
    %cst_147 = arith.constant 1.000000e+00 : f32
    %354 = vector.broadcast %cst_147 : f32 to vector<8x32xf32>
    %355 = arith.addf %354, %353 : vector<8x32xf32>
    %cst_148 = arith.constant 5.000000e-01 : f32
    %356 = vector.broadcast %cst_148 : f32 to vector<8x32xf32>
    %357 = arith.mulf %356, %355 : vector<8x32xf32>
    %358 = arith.mulf %345, %357 : vector<8x32xf32>
    %c80 = arith.constant 80 : index
    %c0_149 = arith.constant 0 : index
    %359 = vector.load %arg5[%c80, %c0_149] : memref<168x128xf32, #tpu.memory_space<vmem>>, vector<32x32xf32>
    %cst_150 = arith.constant dense<0.000000e+00> : vector<8x32xf32>
    %360 = tpu.matmul %358, %359, %cst_150 {dimension_numbers = #tpu.dot_dimension_numbers<[1], [0], [0], [1], [0, 0, 1, 1], [], []>} : vector<8x32xf32>, vector<32x32xf32>, vector<8x32xf32> -> vector<8x32xf32>
    %c162 = arith.constant 162 : index
    %c0_151 = arith.constant 0 : index
    %361 = vector.load %arg5[%c162, %c0_151] : memref<168x128xf32, #tpu.memory_space<vmem>>, vector<1x32xf32>
    %362 = vector.broadcast %361 : vector<1x32xf32> to vector<8x32xf32>
    %363 = arith.addf %360, %362 : vector<8x32xf32>
    %364 = arith.mulf %363, %363 : vector<8x32xf32>
    %365 = arith.mulf %363, %364 : vector<8x32xf32>
    %cst_152 = arith.constant 4.471500e-02 : f32
    %366 = vector.broadcast %cst_152 : f32 to vector<8x32xf32>
    %367 = arith.mulf %366, %365 : vector<8x32xf32>
    %368 = arith.addf %363, %367 : vector<8x32xf32>
    %cst_153 = arith.constant 0.797884583 : f32
    %369 = vector.broadcast %cst_153 : f32 to vector<8x32xf32>
    %370 = arith.mulf %369, %368 : vector<8x32xf32>
    %371 = math.tanh %370 : vector<8x32xf32>
    %cst_154 = arith.constant 1.000000e+00 : f32
    %372 = vector.broadcast %cst_154 : f32 to vector<8x32xf32>
    %373 = arith.addf %372, %371 : vector<8x32xf32>
    %cst_155 = arith.constant 5.000000e-01 : f32
    %374 = vector.broadcast %cst_155 : f32 to vector<8x32xf32>
    %375 = arith.mulf %374, %373 : vector<8x32xf32>
    %376 = arith.mulf %363, %375 : vector<8x32xf32>
    %c112 = arith.constant 112 : index
    %c0_156 = arith.constant 0 : index
    %377 = vector.load %arg5[%c112, %c0_156] : memref<168x128xf32, #tpu.memory_space<vmem>>, vector<32x128xf32>
    %cst_157 = arith.constant dense<0.000000e+00> : vector<8x128xf32>
    %378 = tpu.matmul %376, %377, %cst_157 {dimension_numbers = #tpu.dot_dimension_numbers<[1], [0], [0], [1], [0, 0, 1, 1], [], []>} : vector<8x32xf32>, vector<32x128xf32>, vector<8x128xf32> -> vector<8x128xf32>
    %c163 = arith.constant 163 : index
    %c0_158 = arith.constant 0 : index
    %379 = vector.load %arg5[%c163, %c0_158] : memref<168x128xf32, #tpu.memory_space<vmem>>, vector<1x128xf32>
    %380 = vector.broadcast %379 : vector<1x128xf32> to vector<8x128xf32>
    %381 = arith.addf %378, %380 : vector<8x128xf32>
    %c0_159 = arith.constant 0 : index
    %c0_160 = arith.constant 0 : index
    %382 = vector.load %arg6[%c0_159, %c0_160] : memref<8x128xf32, #tpu.memory_space<vmem>>, vector<8x128xf32>
    tpu.vector_store %arg6[%c0_159, %c0_160], %381 {strides = array<i32>} : memref<8x128xf32, #tpu.memory_space<vmem>>, vector<8x128xf32>,
    return
  }
}

</mosaic_0001>

<llo_original>
// kernel: tpu_custom_call.1
$region0: #{tpu_custom_call.1}
  #allocation0 [shape = 'u32[]', space=smem, size = 0x4, offset = 0x4, fixed_abs, tag = 'smem constant byte address 0x4 - core index']
  #allocation1 [shape = 'u32[144,128]{1,0:T(1,128)}', space=vmem, size = 0x12000, scoped, tag = 'internal scratch']
  %s0 = inlined_call_operand.vmem [shape: s32[16,1], index: 0, kind: input, shape index: {}]
  %s1 = inlined_call_operand.vmem [shape: f32[1,16], index: 1, kind: input, shape index: {}]
  %s2 = inlined_call_operand.vmem [shape: f32[8,16], index: 2, kind: input, shape index: {}]
  %s3 = inlined_call_operand.vmem [shape: f32[80,32], index: 3, kind: input, shape index: {}]
  %s4 = inlined_call_operand.vmem [shape: f32[640,64], index: 4, kind: input, shape index: {}]
  %s5 = inlined_call_operand.vmem [shape: f32[168,128], index: 5, kind: input, shape index: {}]
  %s6 = inlined_call_operand.hbm [shape: f32[8,128], index: 6, kind: output, shape index: {}]
  %s7 = sld [smem:[#allocation0]]
  $region34: #{tpu_custom_call.1} parent=0
    _
  %s9 = ssub.s32 1, %s7
  %s10 = scalar_select 0, %s9, %s7
  $region1: #{tpu_custom_call.1} parent=0
    #allocation2 [shape = 'u8[4096]{0}', space=vmem, size = 0x1000, scoped, tag = 'output window, operand 0, single buffered']
    #allocation3 [shape = 's32[1]{0}', space=sflag, size = 0x4, scoped, tag = 'scoped memory for tpu_custom_call.1']
    %11 = vsyncpa [#allocation3], 0
    // Predicated region
    $region2: #{tpu_custom_call.1} parent=1 // pred_check
      _
    $region3: #{tpu_custom_call.1} parent=1 // pred_check_branch
      %13 = sbr.rel (0) target = $region5
    $region4: #{tpu_custom_call.1} parent=1 // pred_region
      _
    $region5: #{tpu_custom_call.1} parent=1 // pred_fallthru
      _
    // Predicated region
    $region6: #{tpu_custom_call.1} parent=1 // pred_check
      _
    $region7: #{tpu_custom_call.1} parent=1 // pred_check_branch
      %15 = sbr.rel (0) target = $region9
    $region8: #{tpu_custom_call.1} parent=1 // pred_region
      _
    $region9: #{tpu_custom_call.1} parent=1 // pred_fallthru
      _
    // Predicated region
    $region10: #{tpu_custom_call.1} parent=1 // pred_check
      _
    $region11: #{tpu_custom_call.1} parent=1 // pred_check_branch
      %17 = sbr.rel (0) target = $region13
    $region12: #{tpu_custom_call.1} parent=1 // pred_region
      _
    $region13: #{tpu_custom_call.1} parent=1 // pred_fallthru
      _
    // Predicated region
    $region14: #{tpu_custom_call.1} parent=1 // pred_check
      _
    $region15: #{tpu_custom_call.1} parent=1 // pred_check_branch
      %19 = sbr.rel (0) target = $region17
    $region16: #{tpu_custom_call.1} parent=1 // pred_region
      _
    $region17: #{tpu_custom_call.1} parent=1 // pred_fallthru
      _
    // Predicated region
    $region18: #{tpu_custom_call.1} parent=1 // pred_check
      _
    $region19: #{tpu_custom_call.1} parent=1 // pred_check_branch
      %21 = sbr.rel (0) target = $region21
    $region20: #{tpu_custom_call.1} parent=1 // pred_region
      _
    $region21: #{tpu_custom_call.1} parent=1 // pred_fallthru
      _
    // Predicated region
    $region22: #{tpu_custom_call.1} parent=1 // pred_check
      _
    $region23: #{tpu_custom_call.1} parent=1 // pred_check_branch
      %23 = sbr.rel (0) target = $region25
    $region24: #{tpu_custom_call.1} parent=1 // pred_region
      _
    $region25: #{tpu_custom_call.1} parent=1 // pred_fallthru
      _
    %v24 = vld [vmem:[%s0] sm:$0xff]
    %v25 = vld [vmem:[%s0 + $0x8] sm:$0xff]
    %v26 = vlaneseq
    %v27 = vand.u32 %v26, 127
    %28 = vset.pattern.permute.xlu0 0
    %29 = vperm.xlu0 %28, %v24
    %v30 = vpop.permute.xlu0 %29
    %31 = vset.pattern.permute.xlu0 0
    %32 = vperm.xlu0 %31, %v25
    %v33 = vpop.permute.xlu0 %32
    %vm34 = vcmp.eq.s32.totalorder %v30, %v27
    %vm35 = vcmp.eq.s32.totalorder %v33, %v27
    %v36 = vsel %vm34, 1, 0
    %v37 = vsel %vm35, 1, 0
    %v38 = vcvt.s32.f32 %v36
    %v39 = vcvt.s32.f32 %v37
    %v40 = vld [vmem:[%s3] sm:$0xff]
    %v41 = vld [vmem:[%s3 + $0x8] sm:$0xff]
    %v42 = vld [vmem:[%s3 + $0x10] sm:$0xff]
    %v43 = vld [vmem:[%s3 + $0x18] sm:$0xff]
    %v44 = vld [vmem:[%s3 + $0x20] sm:$0xff]
    %v45 = vld [vmem:[%s3 + $0x28] sm:$0xff]
    %v46 = vld [vmem:[%s3 + $0x30] sm:$0xff]
    %v47 = vld [vmem:[%s3 + $0x38] sm:$0xff]
    %v48 = vld [vmem:[%s3 + $0x40] sm:$0xff]
    %v49 = vld [vmem:[%s3 + $0x48] sm:$0xff]
    %vm50 = vcmask 523264
    %v52 = vsel %vm50, %v38, 0
    %v55 = vsel %vm50, %v39, 0
    %57 = vmatprep.subr.mxu0 0.0
    %58 = vmatpush1.msra.mxu0 %v40
    %59 = vmatprep.subr.mxu0 0.0
    %60 = vmatpush1.msra.mxu0 %v41
    %61 = vmatprep.subr.mxu0 0.0
    %62 = vmatpush1.msra.mxu0 %v42
    %63 = vmatprep.subr.mxu0 0.0
    %64 = vmatpush1.msra.mxu0 %v43
    %65 = vmatprep.subr.mxu0 0.0
    %66 = vmatpush1.msra.mxu0 %v44
    %67 = vmatprep.subr.mxu0 0.0
    %68 = vmatpush1.msra.mxu0 %v45
    %69 = vmatprep.subr.mxu0 0.0
    %70 = vmatpush1.msra.mxu0 %v46
    %71 = vmatprep.subr.mxu0 0.0
    %72 = vmatpush1.msra.mxu0 %v47
    %73 = vmatprep.subr.mxu0 0.0
    %74 = vmatpush1.msra.mxu0 0.0
    %75 = vmatprep.subr.mxu0 0.0
    %76 = vmatpush1.msra.mxu0 0.0
    %77 = vmatprep.subr.mxu0 0.0
    %78 = vmatpush1.msra.mxu0 0.0
    %79 = vmatprep.subr.mxu0 0.0
    %80 = vmatpush1.msra.mxu0 0.0
    %81 = vmatprep.subr.mxu0 0.0
    %82 = vmatpush1.msra.mxu0 0.0
    %83 = vmatprep.subr.mxu0 0.0
    %84 = vmatpush1.msra.mxu0 0.0
    %85 = vmatprep.subr.mxu0 0.0
    %86 = vmatpush1.msra.mxu0 0.0
    %87 = vmatprep.subr.mxu0 0.0
    %88 = vmatpush1.msra.mxu0 0.0
    %89 = vmatprep.subr.mxu0 0.0
    %90 = vmatpush1.msra.mxu0 0.0
    %91 = vmatprep.subr.mxu0 0.0
    %92 = vmatpush1.msra.mxu0 0.0
    %93 = vmatprep.subr.mxu0 0.0
    %94 = vmatpush1.msra.mxu0 0.0
    %95 = vmatprep.subr.mxu0 0.0
    %96 = vmatpush1.msra.mxu0 0.0
    %97 = vmatprep.subr.mxu0 0.0
    %98 = vmatpush1.msra.mxu0 0.0
    %99 = vmatprep.subr.mxu0 0.0
    %100 = vmatpush1.msra.mxu0 0.0
    %101 = vmatprep.subr.mxu0 0.0
    %102 = vmatpush1.msra.mxu0 0.0
    %103 = vmatprep.subr.mxu0 0.0
    %104 = vmatpush1.msra.mxu0 0.0
    %105 = vmatprep.subr.mxu0 0.0
    %106 = vmatpush1.msra.mxu0 0.0
    %107 = vmatprep.subr.mxu0 0.0
    %108 = vmatpush1.msra.mxu0 0.0
    %109 = vmatprep.subr.mxu0 0.0
    %110 = vmatpush1.msra.mxu0 0.0
    %111 = vmatprep.subr.mxu0 0.0
    %112 = vmatpush1.msra.mxu0 0.0
    %113 = vmatprep.subr.mxu0 0.0
    %114 = vmatpush1.msra.mxu0 0.0
    %115 = vmatprep.subr.mxu0 0.0
    %116 = vmatpush1.msra.mxu0 0.0
    %117 = vmatprep.subr.mxu0 0.0
    %118 = vmatpush1.msra.mxu0 0.0
    %119 = vmatprep.subr.mxu0 0.0
    %120 = vmatpush1.msra.mxu0 0.0
    %121 = vmatprep.mubr.f32.mxu0 0.0
    %122 = vmatmul.mubr.f32.gmra.mrb[0].mxu0 %v52
    %v123 = vpop.f32.mrb[0].mxu0
    %v124 = vadd.f32 %v48, %v123
    %v125 = vpop.f32.mrb[0].mxu0
    %126 = vmatprep.mubr.f32.mxu0 0.0
    %127 = vmatmul.mubr.f32.gmra.mrb[0].mxu0 %v55
    %v128 = vpop.f32.mrb[0].mxu0
    %v129 = vadd.f32 %v49, %v128
    %v130 = vpop.f32.mrb[0].mxu0
    %131 = vdwg.mxu0
    %v132 = vld [vmem:[%s5 + $0xa4] sm:$0x1]
    %v133 = vld [vmem:[%s5 + $0xa5] sm:$0x1]
    %vm134 = vcmask 261120
    %v135 = vsel %vm134, %v124, 0.0
    %136 = vadd.xlane.f32.xlu0 %v135
    %v137 = vpop.xlane.xlu0 %136
    %v138 = vsel %vm134, %v129, 0.0
    %139 = vadd.xlane.f32.xlu0 %v138
    %v140 = vpop.xlane.xlu0 %139
    %v141 = vrcp.pop 32.0
    %v142 = vmul.f32 %v137, %v141
    %v143 = vmul.f32 %v140, %v141
    %v144 = vsub.f32 %v124, %v142
    %v145 = vsub.f32 %v129, %v143
    %v146 = vmul.f32 %v144, %v144
    %v147 = vmul.f32 %v145, %v145
    %v148 = vsel %vm134, %v146, 0.0
    %149 = vadd.xlane.f32.xlu0 %v148
    %v150 = vpop.xlane.xlu0 %149
    %v151 = vsel %vm134, %v147, 0.0
    %152 = vadd.xlane.f32.xlu0 %v151
    %v153 = vpop.xlane.xlu0 %152
    %v154 = vmul.f32 %v150, %v141
    %v155 = vmul.f32 %v153, %v141
    %v156 = vadd.f32 %v154, 1e-12
    %v157 = vadd.f32 %v155, 1e-12
    %v158 = vrsqrt.pop %v156
    %v159 = vrsqrt.pop %v157
    %v160 = vmul.f32 %v144, %v158
    %v161 = vmul.f32 %v145, %v159
    %v162 = vlaneseq
    %v163 = vshrl.u32 %v162, 7
    %v164 = vsub.s32 0, %v163
    %v165 = vrot.slane %v132, %v164
    %v166 = vmul.f32 %v160, %v165
    %v167 = vmul.f32 %v161, %v165
    %v168 = vlaneseq
    %v169 = vshrl.u32 %v168, 7
    %v170 = vsub.s32 0, %v169
    %v171 = vrot.slane %v133, %v170
    %v172 = vadd.f32 %v166, %v171
    %v173 = vadd.f32 %v167, %v171
    %v174 = vld [vmem:[%s5 + $0x90] sm:$0xff]
    %v175 = vld [vmem:[%s5 + $0x98] sm:$0xff]
    %v176 = vld [vmem:[%s1] sm:$0x1]
    %v177 = vsub.f32 1.0, %v176
    %v178 = vmul.f32 %v177, -1e+09
    %v180 = vlaneseq
    %v181 = vshrl.u32 %v180, 7
    %v182 = vsub.s32 0, %v181
    %v183 = vrot.slane %v178, %v182
    %v185 = vadd.f32 %v174, %v183
    %v186 = vadd.f32 %v175, %v183
    %v187 = vld [vmem:[%s4] sm:$0xff]
    %v188 = vld [vmem:[%s4 + $0x8] sm:$0xff]
    %v189 = vld [vmem:[%s4 + $0x10] sm:$0xff]
    %v190 = vld [vmem:[%s4 + $0x18] sm:$0xff]
    %v191 = vld [vmem:[%s5] sm:$0x1]
    %v192 = vlaneseq
    %v193 = vshrl.u32 %v192, 7
    %v194 = vsub.s32 0, %v193
    %v195 = vrot.slane %v191, %v194
    %v197 = vsel %vm134, %v172, 0
    %v200 = vsel %vm134, %v173, 0
    %202 = vmatprep.subr.mxu0 0.0
    %203 = vmatpush1.msra.mxu0 %v187
    %204 = vmatprep.subr.mxu0 0.0
    %205 = vmatpush1.msra.mxu0 %v188
    %206 = vmatprep.subr.mxu0 0.0
    %207 = vmatpush1.msra.mxu0 %v189
    %208 = vmatprep.subr.mxu0 0.0
    %209 = vmatpush1.msra.mxu0 %v190
    %210 = vmatprep.subr.mxu0 0.0
    %211 = vmatpush1.msra.mxu0 0.0
    %212 = vmatprep.subr.mxu0 0.0
    %213 = vmatpush1.msra.mxu0 0.0
    %214 = vmatprep.subr.mxu0 0.0
    %215 = vmatpush1.msra.mxu0 0.0
    %216 = vmatprep.subr.mxu0 0.0
    %217 = vmatpush1.msra.mxu0 0.0
    %218 = vmatprep.subr.mxu0 0.0
    %219 = vmatpush1.msra.mxu0 0.0
    %220 = vmatprep.subr.mxu0 0.0
    %221 = vmatpush1.msra.mxu0 0.0
    %222 = vmatprep.subr.mxu0 0.0
    %223 = vmatpush1.msra.mxu0 0.0
    %224 = vmatprep.subr.mxu0 0.0
    %225 = vmatpush1.msra.mxu0 0.0
    %226 = vmatprep.subr.mxu0 0.0
    %227 = vmatpush1.msra.mxu0 0.0
    %228 = vmatprep.subr.mxu0 0.0
    %229 = vmatpush1.msra.mxu0 0.0
    %230 = vmatprep.subr.mxu0 0.0
    %231 = vmatpush1.msra.mxu0 0.0
    %232 = vmatprep.subr.mxu0 0.0
    %233 = vmatpush1.msra.mxu0 0.0
    %234 = vmatprep.subr.mxu0 0.0
    %235 = vmatpush1.msra.mxu0 0.0
    %236 = vmatprep.subr.mxu0 0.0
    %237 = vmatpush1.msra.mxu0 0.0
    %238 = vmatprep.subr.mxu0 0.0
    %239 = vmatpush1.msra.mxu0 0.0
    %240 = vmatprep.subr.mxu0 0.0
    %241 = vmatpush1.msra.mxu0 0.0
    %242 = vmatprep.subr.mxu0 0.0
    %243 = vmatpush1.msra.mxu0 0.0
    %244 = vmatprep.subr.mxu0 0.0
    %245 = vmatpush1.msra.mxu0 0.0
    %246 = vmatprep.subr.mxu0 0.0
    %247 = vmatpush1.msra.mxu0 0.0
    %248 = vmatprep.subr.mxu0 0.0
    %249 = vmatpush1.msra.mxu0 0.0
    %250 = vmatprep.subr.mxu0 0.0
    %251 = vmatpush1.msra.mxu0 0.0
    %252 = vmatprep.subr.mxu0 0.0
    %253 = vmatpush1.msra.mxu0 0.0
    %254 = vmatprep.subr.mxu0 0.0
    %255 = vmatpush1.msra.mxu0 0.0
    %256 = vmatprep.subr.mxu0 0.0
    %257 = vmatpush1.msra.mxu0 0.0
    %258 = vmatprep.subr.mxu0 0.0
    %259 = vmatpush1.msra.mxu0 0.0
    %260 = vmatprep.subr.mxu0 0.0
    %261 = vmatpush1.msra.mxu0 0.0
    %262 = vmatprep.subr.mxu0 0.0
    %263 = vmatpush1.msra.mxu0 0.0
    %264 = vmatprep.subr.mxu0 0.0
    %265 = vmatpush1.msra.mxu0 0.0
    %266 = vmatprep.mubr.f32.mxu0 0.0
    %267 = vmatmul.mubr.f32.gmra.mrb[0].mxu0 %v197
    %v268 = vpop.f32.mrb[0].mxu0
    %v269 = vadd.f32 %v195, %v268
    %v270 = vpop.f32.mrb[0].mxu0
    %271 = vmatprep.mubr.f32.mxu0 0.0
    %272 = vmatmul.mubr.f32.gmra.mrb[0].mxu0 %v200
    %v273 = vpop.f32.mrb[0].mxu0
    %v274 = vadd.f32 %v195, %v273
    %v275 = vpop.f32.mrb[0].mxu0
    %276 = vdwg.mxu0
    %v277 = vld [vmem:[%s4 + $0x20] sm:$0xff]
    %v278 = vld [vmem:[%s4 + $0x28] sm:$0xff]
    %v279 = vld [vmem:[%s4 + $0x30] sm:$0xff]
    %v280 = vld [vmem:[%s4 + $0x38] sm:$0xff]
    %v281 = vld [vmem:[%s5 + $0x1] sm:$0x1]
    %v282 = vlaneseq
    %v283 = vshrl.u32 %v282, 7
    %v284 = vsub.s32 0, %v283
    %v285 = vrot.slane %v281, %v284
    %286 = vmatprep.subr.mxu0 0.0
    %287 = vmatpush1.msra.mxu0 %v277
    %288 = vmatprep.subr.mxu0 0.0
    %289 = vmatpush1.msra.mxu0 %v278
    %290 = vmatprep.subr.mxu0 0.0
    %291 = vmatpush1.msra.mxu0 %v279
    %292 = vmatprep.subr.mxu0 0.0
    %293 = vmatpush1.msra.mxu0 %v280
    %294 = vmatprep.subr.mxu0 0.0
    %295 = vmatpush1.msra.mxu0 0.0
    %296 = vmatprep.subr.mxu0 0.0
    %297 = vmatpush1.msra.mxu0 0.0
    %298 = vmatprep.subr.mxu0 0.0
    %299 = vmatpush1.msra.mxu0 0.0
    %300 = vmatprep.subr.mxu0 0.0
    %301 = vmatpush1.msra.mxu0 0.0
    %302 = vmatprep.subr.mxu0 0.0
    %303 = vmatpush1.msra.mxu0 0.0
    %304 = vmatprep.subr.mxu0 0.0
    %305 = vmatpush1.msra.mxu0 0.0
    %306 = vmatprep.subr.mxu0 0.0
    %307 = vmatpush1.msra.mxu0 0.0
    %308 = vmatprep.subr.mxu0 0.0
    %309 = vmatpush1.msra.mxu0 0.0
    %310 = vmatprep.subr.mxu0 0.0
    %311 = vmatpush1.msra.mxu0 0.0
    %312 = vmatprep.subr.mxu0 0.0
    %313 = vmatpush1.msra.mxu0 0.0
    %314 = vmatprep.subr.mxu0 0.0
    %315 = vmatpush1.msra.mxu0 0.0
    %316 = vmatprep.subr.mxu0 0.0
    %317 = vmatpush1.msra.mxu0 0.0
    %318 = vmatprep.subr.mxu0 0.0
    %319 = vmatpush1.msra.mxu0 0.0
    %320 = vmatprep.subr.mxu0 0.0
    %321 = vmatpush1.msra.mxu0 0.0
    %322 = vmatprep.subr.mxu0 0.0
    %323 = vmatpush1.msra.mxu0 0.0
    %324 = vmatprep.subr.mxu0 0.0
    %325 = vmatpush1.msra.mxu0 0.0
    %326 = vmatprep.subr.mxu0 0.0
    %327 = vmatpush1.msra.mxu0 0.0
    %328 = vmatprep.subr.mxu0 0.0
    %329 = vmatpush1.msra.mxu0 0.0
    %330 = vmatprep.subr.mxu0 0.0
    %331 = vmatpush1.msra.mxu0 0.0
    %332 = vmatprep.subr.mxu0 0.0
    %333 = vmatpush1.msra.mxu0 0.0
    %334 = vmatprep.subr.mxu0 0.0
    %335 = vmatpush1.msra.mxu0 0.0
    %336 = vmatprep.subr.mxu0 0.0
    %337 = vmatpush1.msra.mxu0 0.0
    %338 = vmatprep.subr.mxu0 0.0
    %339 = vmatpush1.msra.mxu0 0.0
    %340 = vmatprep.subr.mxu0 0.0
    %341 = vmatpush1.msra.mxu0 0.0
    %342 = vmatprep.subr.mxu0 0.0
    %343 = vmatpush1.msra.mxu0 0.0
    %344 = vmatprep.subr.mxu0 0.0
    %345 = vmatpush1.msra.mxu0 0.0
    %346 = vmatprep.subr.mxu0 0.0
    %347 = vmatpush1.msra.mxu0 0.0
    %348 = vmatprep.subr.mxu0 0.0
    %349 = vmatpush1.msra.mxu0 0.0
    %350 = vmatprep.mubr.f32.mxu0 0.0
    %351 = vmatmul.mubr.f32.gmra.mrb[0].mxu0 %v197
    %v352 = vpop.f32.mrb[0].mxu0
    %v353 = vadd.f32 %v285, %v352
    %v354 = vpop.f32.mrb[0].mxu0
    %355 = vmatprep.mubr.f32.mxu0 0.0
    %356 = vmatmul.mubr.f32.gmra.mrb[0].mxu0 %v200
    %v357 = vpop.f32.mrb[0].mxu0
    %v358 = vadd.f32 %v285, %v357
    %v359 = vpop.f32.mrb[0].mxu0
    %360 = vdwg.mxu0
    %v361 = vld [vmem:[%s4 + $0x40] sm:$0xff]
    %v362 = vld [vmem:[%s4 + $0x48] sm:$0xff]
    %v363 = vld [vmem:[%s4 + $0x50] sm:$0xff]
    %v364 = vld [vmem:[%s4 + $0x58] sm:$0xff]
    %v365 = vld [vmem:[%s5 + $0x2] sm:$0x1]
    %v366 = vlaneseq
    %v367 = vshrl.u32 %v366, 7
    %v368 = vsub.s32 0, %v367
    %v369 = vrot.slane %v365, %v368
    %370 = vmatprep.subr.mxu0 0.0
    %371 = vmatpush1.msra.mxu0 %v361
    %372 = vmatprep.subr.mxu0 0.0
    %373 = vmatpush1.msra.mxu0 %v362
    %374 = vmatprep.subr.mxu0 0.0
    %375 = vmatpush1.msra.mxu0 %v363
    %376 = vmatprep.subr.mxu0 0.0
    %377 = vmatpush1.msra.mxu0 %v364
    %378 = vmatprep.subr.mxu0 0.0
    %379 = vmatpush1.msra.mxu0 0.0
    %380 = vmatprep.subr.mxu0 0.0
    %381 = vmatpush1.msra.mxu0 0.0
    %382 = vmatprep.subr.mxu0 0.0
    %383 = vmatpush1.msra.mxu0 0.0
    %384 = vmatprep.subr.mxu0 0.0
    %385 = vmatpush1.msra.mxu0 0.0
    %386 = vmatprep.subr.mxu0 0.0
    %387 = vmatpush1.msra.mxu0 0.0
    %388 = vmatprep.subr.mxu0 0.0
    %389 = vmatpush1.msra.mxu0 0.0
    %390 = vmatprep.subr.mxu0 0.0
    %391 = vmatpush1.msra.mxu0 0.0
    %392 = vmatprep.subr.mxu0 0.0
    %393 = vmatpush1.msra.mxu0 0.0
    %394 = vmatprep.subr.mxu0 0.0
    %395 = vmatpush1.msra.mxu0 0.0
    %396 = vmatprep.subr.mxu0 0.0
    %397 = vmatpush1.msra.mxu0 0.0
    %398 = vmatprep.subr.mxu0 0.0
    %399 = vmatpush1.msra.mxu0 0.0
    %400 = vmatprep.subr.mxu0 0.0
    %401 = vmatpush1.msra.mxu0 0.0
    %402 = vmatprep.subr.mxu0 0.0
    %403 = vmatpush1.msra.mxu0 0.0
    %404 = vmatprep.subr.mxu0 0.0
    %405 = vmatpush1.msra.mxu0 0.0
    %406 = vmatprep.subr.mxu0 0.0
    %407 = vmatpush1.msra.mxu0 0.0
    %408 = vmatprep.subr.mxu0 0.0
    %409 = vmatpush1.msra.mxu0 0.0
    %410 = vmatprep.subr.mxu0 0.0
    %411 = vmatpush1.msra.mxu0 0.0
    %412 = vmatprep.subr.mxu0 0.0
    %413 = vmatpush1.msra.mxu0 0.0
    %414 = vmatprep.subr.mxu0 0.0
    %415 = vmatpush1.msra.mxu0 0.0
    %416 = vmatprep.subr.mxu0 0.0
    %417 = vmatpush1.msra.mxu0 0.0
    %418 = vmatprep.subr.mxu0 0.0
    %419 = vmatpush1.msra.mxu0 0.0
    %420 = vmatprep.subr.mxu0 0.0
    %421 = vmatpush1.msra.mxu0 0.0
    %422 = vmatprep.subr.mxu0 0.0
    %423 = vmatpush1.msra.mxu0 0.0
    %424 = vmatprep.subr.mxu0 0.0
    %425 = vmatpush1.msra.mxu0 0.0
    %426 = vmatprep.subr.mxu0 0.0
    %427 = vmatpush1.msra.mxu0 0.0
    %428 = vmatprep.subr.mxu0 0.0
    %429 = vmatpush1.msra.mxu0 0.0
    %430 = vmatprep.subr.mxu0 0.0
    %431 = vmatpush1.msra.mxu0 0.0
    %432 = vmatprep.subr.mxu0 0.0
    %433 = vmatpush1.msra.mxu0 0.0
    %434 = vmatprep.mubr.f32.mxu0 0.0
    %435 = vmatmul.mubr.f32.gmra.mrb[0].mxu0 %v197
    %v436 = vpop.f32.mrb[0].mxu0
    %v437 = vadd.f32 %v369, %v436
    %v438 = vpop.f32.mrb[0].mxu0
    %439 = vmatprep.mubr.f32.mxu0 0.0
    %440 = vmatmul.mubr.f32.gmra.mrb[0].mxu0 %v200
    %v441 = vpop.f32.mrb[0].mxu0
    %v442 = vadd.f32 %v369, %v441
    %v443 = vpop.f32.mrb[0].mxu0
    %444 = vdwg.mxu0
    %vm445 = vcmask 130048
    %v447 = vsel %vm445, %v269, 0
    %v450 = vsel %vm445, %v274, 0
    %v453 = vsel %vm445, %v353, 0
    %v456 = vsel %vm445, %v358, 0
    %458 = vmatprep.subr.mxu0 0.0
    %459 = vmatpush1.xpose.msra.mxu0 %v453
    %460 = vmatprep.subr.mxu0 0.0
    %461 = vmatpush1.xpose.msra.mxu0 %v456
    %462 = vmatprep.subr.mxu0 0.0
    %463 = vmatpush1.xpose.msra.mxu0 0.0
    %464 = vmatprep.subr.mxu0 0.0
    %465 = vmatpush1.xpose.msra.mxu0 0.0
    %466 = vmatprep.subr.mxu0 0.0
    %467 = vmatpush1.xpose.msra.mxu0 0.0
    %468 = vmatprep.subr.mxu0 0.0
    %469 = vmatpush1.xpose.msra.mxu0 0.0
    %470 = vmatprep.subr.mxu0 0.0
    %471 = vmatpush1.xpose.msra.mxu0 0.0
    %472 = vmatprep.subr.mxu0 0.0
    %473 = vmatpush1.xpose.msra.mxu0 0.0
    %474 = vmatprep.subr.mxu0 0.0
    %475 = vmatpush1.xpose.msra.mxu0 0.0
    %476 = vmatprep.subr.mxu0 0.0
    %477 = vmatpush1.xpose.msra.mxu0 0.0
    %478 = vmatprep.subr.mxu0 0.0
    %479 = vmatpush1.xpose.msra.mxu0 0.0
    %480 = vmatprep.subr.mxu0 0.0
    %481 = vmatpush1.xpose.msra.mxu0 0.0
    %482 = vmatprep.subr.mxu0 0.0
    %483 = vmatpush1.xpose.msra.mxu0 0.0
    %484 = vmatprep.subr.mxu0 0.0
    %485 = vmatpush1.xpose.msra.mxu0 0.0
    %486 = vmatprep.subr.mxu0 0.0
    %487 = vmatpush1.xpose.msra.mxu0 0.0
    %488 = vmatprep.subr.mxu0 0.0
    %489 = vmatpush1.xpose.msra.mxu0 0.0
    %490 = vmatprep.subr.mxu0 0.0
    %491 = vmatpush1.xpose.msra.mxu0 0.0
    %492 = vmatprep.subr.mxu0 0.0
    %493 = vmatpush1.xpose.msra.mxu0 0.0
    %494 = vmatprep.subr.mxu0 0.0
    %495 = vmatpush1.xpose.msra.mxu0 0.0
    %496 = vmatprep.subr.mxu0 0.0
    %497 = vmatpush1.xpose.msra.mxu0 0.0
    %498 = vmatprep.subr.mxu0 0.0
    %499 = vmatpush1.xpose.msra.mxu0 0.0
    %500 = vmatprep.subr.mxu0 0.0
    %501 = vmatpush1.xpose.msra.mxu0 0.0
    %502 = vmatprep.subr.mxu0 0.0
    %503 = vmatpush1.xpose.msra.mxu0 0.0
    %504 = vmatprep.subr.mxu0 0.0
    %505 = vmatpush1.xpose.msra.mxu0 0.0
    %506 = vmatprep.subr.mxu0 0.0
    %507 = vmatpush1.xpose.msra.mxu0 0.0
    %508 = vmatprep.subr.mxu0 0.0
    %509 = vmatpush1.xpose.msra.mxu0 0.0
    %510 = vmatprep.subr.mxu0 0.0
    %511 = vmatpush1.xpose.msra.mxu0 0.0
    %512 = vmatprep.subr.mxu0 0.0
    %513 = vmatpush1.xpose.msra.mxu0 0.0
    %514 = vmatprep.subr.mxu0 0.0
    %515 = vmatpush1.xpose.msra.mxu0 0.0
    %516 = vmatprep.subr.mxu0 0.0
    %517 = vmatpush1.xpose.msra.mxu0 0.0
    %518 = vmatprep.subr.mxu0 0.0
    %519 = vmatpush1.xpose.msra.mxu0 0.0
    %520 = vmatprep.subr.mxu0 0.0
    %521 = vmatpush1.xpose.msra.mxu0 0.0
    %522 = vmatprep.mubr.f32.mxu0 0.0
    %523 = vmatmul.mubr.f32.gmra.mrb[0].mxu0 %v447
    %v524 = vpop.f32.mrb[0].mxu0
    %v525 = vadd.f32 0.0, %v524
    %v526 = vpop.f32.mrb[0].mxu0
    %527 = vmatprep.mubr.f32.mxu0 0.0
    %528 = vmatmul.mubr.f32.gmra.mrb[0].mxu0 %v450
    %v529 = vpop.f32.mrb[0].mxu0
    %v530 = vadd.f32 0.0, %v529
    %v531 = vpop.f32.mrb[0].mxu0
    %532 = vdwg.mxu0
    %v533 = vmul.f32 %v525, 0.25
    %v534 = vmul.f32 %v530, 0.25
    %v535 = vadd.f32 %v533, %v185
    %v536 = vadd.f32 %v534, %v186
    %v537 = vld [vmem:[%s4 + $0x60] sm:$0xff]
    %v538 = vld [vmem:[%s4 + $0x68] sm:$0xff]
    %v539 = vld [vmem:[%s4 + $0x70] sm:$0xff]
    %v540 = vld [vmem:[%s4 + $0x78] sm:$0xff]
    %v541 = vld [vmem:[%s5 + $0x3] sm:$0x1]
    %v542 = vlaneseq
    %v543 = vshrl.u32 %v542, 7
    %v544 = vsub.s32 0, %v543
    %v545 = vrot.slane %v541, %v544
    %546 = vmatprep.subr.mxu0 0.0
    %547 = vmatpush1.msra.mxu0 %v537
    %548 = vmatprep.subr.mxu0 0.0
    %549 = vmatpush1.msra.mxu0 %v538
    %550 = vmatprep.subr.mxu0 0.0
    %551 = vmatpush1.msra.mxu0 %v539
    %552 = vmatprep.subr.mxu0 0.0
    %553 = vmatpush1.msra.mxu0 %v540
    %554 = vmatprep.subr.mxu0 0.0
    %555 = vmatpush1.msra.mxu0 0.0
    %556 = vmatprep.subr.mxu0 0.0
    %557 = vmatpush1.msra.mxu0 0.0
    %558 = vmatprep.subr.mxu0 0.0
    %559 = vmatpush1.msra.mxu0 0.0
    %560 = vmatprep.subr.mxu0 0.0
    %561 = vmatpush1.msra.mxu0 0.0
    %562 = vmatprep.subr.mxu0 0.0
    %563 = vmatpush1.msra.mxu0 0.0
    %564 = vmatprep.subr.mxu0 0.0
    %565 = vmatpush1.msra.mxu0 0.0
    %566 = vmatprep.subr.mxu0 0.0
    %567 = vmatpush1.msra.mxu0 0.0
    %568 = vmatprep.subr.mxu0 0.0
    %569 = vmatpush1.msra.mxu0 0.0
    %570 = vmatprep.subr.mxu0 0.0
    %571 = vmatpush1.msra.mxu0 0.0
    %572 = vmatprep.subr.mxu0 0.0
    %573 = vmatpush1.msra.mxu0 0.0
    %574 = vmatprep.subr.mxu0 0.0
    %575 = vmatpush1.msra.mxu0 0.0
    %576 = vmatprep.subr.mxu0 0.0
    %577 = vmatpush1.msra.mxu0 0.0
    %578 = vmatprep.subr.mxu0 0.0
    %579 = vmatpush1.msra.mxu0 0.0
    %580 = vmatprep.subr.mxu0 0.0
    %581 = vmatpush1.msra.mxu0 0.0
    %582 = vmatprep.subr.mxu0 0.0
    %583 = vmatpush1.msra.mxu0 0.0
    %584 = vmatprep.subr.mxu0 0.0
    %585 = vmatpush1.msra.mxu0 0.0
    %586 = vmatprep.subr.mxu0 0.0
    %587 = vmatpush1.msra.mxu0 0.0
    %588 = vmatprep.subr.mxu0 0.0
    %589 = vmatpush1.msra.mxu0 0.0
    %590 = vmatprep.subr.mxu0 0.0
    %591 = vmatpush1.msra.mxu0 0.0
    %592 = vmatprep.subr.mxu0 0.0
    %593 = vmatpush1.msra.mxu0 0.0
    %594 = vmatprep.subr.mxu0 0.0
    %595 = vmatpush1.msra.mxu0 0.0
    %596 = vmatprep.subr.mxu0 0.0
    %597 = vmatpush1.msra.mxu0 0.0
    %598 = vmatprep.subr.mxu0 0.0
    %599 = vmatpush1.msra.mxu0 0.0
    %600 = vmatprep.subr.mxu0 0.0
    %601 = vmatpush1.msra.mxu0 0.0
    %602 = vmatprep.subr.mxu0 0.0
    %603 = vmatpush1.msra.mxu0 0.0
    %604 = vmatprep.subr.mxu0 0.0
    %605 = vmatpush1.msra.mxu0 0.0
    %606 = vmatprep.subr.mxu0 0.0
    %607 = vmatpush1.msra.mxu0 0.0
    %608 = vmatprep.subr.mxu0 0.0
    %609 = vmatpush1.msra.mxu0 0.0
    %610 = vmatprep.mubr.f32.mxu0 0.0
    %611 = vmatmul.mubr.f32.gmra.mrb[0].mxu0 %v197
    %v612 = vpop.f32.mrb[0].mxu0
    %v613 = vadd.f32 %v545, %v612
    %v614 = vpop.f32.mrb[0].mxu0
    %615 = vmatprep.mubr.f32.mxu0 0.0
    %616 = vmatmul.mubr.f32.gmra.mrb[0].mxu0 %v200
    %v617 = vpop.f32.mrb[0].mxu0
    %v618 = vadd.f32 %v545, %v617
    %v619 = vpop.f32.mrb[0].mxu0
    %620 = vdwg.mxu0
    %v621 = vld [vmem:[%s4 + $0x80] sm:$0xff]
    %v622 = vld [vmem:[%s4 + $0x88] sm:$0xff]
    %v623 = vld [vmem:[%s4 + $0x90] sm:$0xff]
    %v624 = vld [vmem:[%s4 + $0x98] sm:$0xff]
    %v625 = vld [vmem:[%s5 + $0x4] sm:$0x1]
    %v626 = vlaneseq
    %v627 = vshrl.u32 %v626, 7
    %v628 = vsub.s32 0, %v627
    %v629 = vrot.slane %v625, %v628
    %630 = vmatprep.subr.mxu0 0.0
    %631 = vmatpush1.msra.mxu0 %v621
    %632 = vmatprep.subr.mxu0 0.0
    %633 = vmatpush1.msra.mxu0 %v622
    %634 = vmatprep.subr.mxu0 0.0
    %635 = vmatpush1.msra.mxu0 %v623
    %636 = vmatprep.subr.mxu0 0.0
    %637 = vmatpush1.msra.mxu0 %v624
    %638 = vmatprep.subr.mxu0 0.0
    %639 = vmatpush1.msra.mxu0 0.0
    %640 = vmatprep.subr.mxu0 0.0
    %641 = vmatpush1.msra.mxu0 0.0
    %642 = vmatprep.subr.mxu0 0.0
    %643 = vmatpush1.msra.mxu0 0.0
    %644 = vmatprep.subr.mxu0 0.0
    %645 = vmatpush1.msra.mxu0 0.0
    %646 = vmatprep.subr.mxu0 0.0
    %647 = vmatpush1.msra.mxu0 0.0
    %648 = vmatprep.subr.mxu0 0.0
    %649 = vmatpush1.msra.mxu0 0.0
    %650 = vmatprep.subr.mxu0 0.0
    %651 = vmatpush1.msra.mxu0 0.0
    %652 = vmatprep.subr.mxu0 0.0
    %653 = vmatpush1.msra.mxu0 0.0
    %654 = vmatprep.subr.mxu0 0.0
    %655 = vmatpush1.msra.mxu0 0.0
    %656 = vmatprep.subr.mxu0 0.0
    %657 = vmatpush1.msra.mxu0 0.0
    %658 = vmatprep.subr.mxu0 0.0
    %659 = vmatpush1.msra.mxu0 0.0
    %660 = vmatprep.subr.mxu0 0.0
    %661 = vmatpush1.msra.mxu0 0.0
    %662 = vmatprep.subr.mxu0 0.0
    %663 = vmatpush1.msra.mxu0 0.0
    %664 = vmatprep.subr.mxu0 0.0
    %665 = vmatpush1.msra.mxu0 0.0
    %666 = vmatprep.subr.mxu0 0.0
    %667 = vmatpush1.msra.mxu0 0.0
    %668 = vmatprep.subr.mxu0 0.0
    %669 = vmatpush1.msra.mxu0 0.0
    %670 = vmatprep.subr.mxu0 0.0
    %671 = vmatpush1.msra.mxu0 0.0
    %672 = vmatprep.subr.mxu0 0.0
    %673 = vmatpush1.msra.mxu0 0.0
    %674 = vmatprep.subr.mxu0 0.0
    %675 = vmatpush1.msra.mxu0 0.0
    %676 = vmatprep.subr.mxu0 0.0
    %677 = vmatpush1.msra.mxu0 0.0
    %678 = vmatprep.subr.mxu0 0.0
    %679 = vmatpush1.msra.mxu0 0.0
    %680 = vmatprep.subr.mxu0 0.0
    %681 = vmatpush1.msra.mxu0 0.0
    %682 = vmatprep.subr.mxu0 0.0
    %683 = vmatpush1.msra.mxu0 0.0
    %684 = vmatprep.subr.mxu0 0.0
    %685 = vmatpush1.msra.mxu0 0.0
    %686 = vmatprep.subr.mxu0 0.0
    %687 = vmatpush1.msra.mxu0 0.0
    %688 = vmatprep.subr.mxu0 0.0
    %689 = vmatpush1.msra.mxu0 0.0
    %690 = vmatprep.subr.mxu0 0.0
    %691 = vmatpush1.msra.mxu0 0.0
    %692 = vmatprep.subr.mxu0 0.0
    %693 = vmatpush1.msra.mxu0 0.0
    %694 = vmatprep.mubr.f32.mxu0 0.0
    %695 = vmatmul.mubr.f32.gmra.mrb[0].mxu0 %v197
    %v696 = vpop.f32.mrb[0].mxu0
    %v697 = vadd.f32 %v629, %v696
    %v698 = vpop.f32.mrb[0].mxu0
    %699 = vmatprep.mubr.f32.mxu0 0.0
    %700 = vmatmul.mubr.f32.gmra.mrb[0].mxu0 %v200
    %v701 = vpop.f32.mrb[0].mxu0
    %v702 = vadd.f32 %v629, %v701
    %v703 = vpop.f32.mrb[0].mxu0
    %704 = vdwg.mxu0
    %v705 = vld [vmem:[%s4 + $0xa0] sm:$0xff]
    %v706 = vld [vmem:[%s4 + $0xa8] sm:$0xff]
    %v707 = vld [vmem:[%s4 + $0xb0] sm:$0xff]
    %v708 = vld [vmem:[%s4 + $0xb8] sm:$0xff]
    %v709 = vld [vmem:[%s5 + $0x5] sm:$0x1]
    %v710 = vlaneseq
    %v711 = vshrl.u32 %v710, 7
    %v712 = vsub.s32 0, %v711
    %v713 = vrot.slane %v709, %v712
    %714 = vmatprep.subr.mxu0 0.0
    %715 = vmatpush1.msra.mxu0 %v705
    %716 = vmatprep.subr.mxu0 0.0
    %717 = vmatpush1.msra.mxu0 %v706
    %718 = vmatprep.subr.mxu0 0.0
    %719 = vmatpush1.msra.mxu0 %v707
    %720 = vmatprep.subr.mxu0 0.0
    %721 = vmatpush1.msra.mxu0 %v708
    %722 = vmatprep.subr.mxu0 0.0
    %723 = vmatpush1.msra.mxu0 0.0
    %724 = vmatprep.subr.mxu0 0.0
    %725 = vmatpush1.msra.mxu0 0.0
    %726 = vmatprep.subr.mxu0 0.0
    %727 = vmatpush1.msra.mxu0 0.0
    %728 = vmatprep.subr.mxu0 0.0
    %729 = vmatpush1.msra.mxu0 0.0
    %730 = vmatprep.subr.mxu0 0.0
    %731 = vmatpush1.msra.mxu0 0.0
    %732 = vmatprep.subr.mxu0 0.0
    %733 = vmatpush1.msra.mxu0 0.0
    %734 = vmatprep.subr.mxu0 0.0
    %735 = vmatpush1.msra.mxu0 0.0
    %736 = vmatprep.subr.mxu0 0.0
    %737 = vmatpush1.msra.mxu0 0.0
    %738 = vmatprep.subr.mxu0 0.0
    %739 = vmatpush1.msra.mxu0 0.0
    %740 = vmatprep.subr.mxu0 0.0
    %741 = vmatpush1.msra.mxu0 0.0
    %742 = vmatprep.subr.mxu0 0.0
    %743 = vmatpush1.msra.mxu0 0.0
    %744 = vmatprep.subr.mxu0 0.0
    %745 = vmatpush1.msra.mxu0 0.0
    %746 = vmatprep.subr.mxu0 0.0
    %747 = vmatpush1.msra.mxu0 0.0
    %748 = vmatprep.subr.mxu0 0.0
    %749 = vmatpush1.msra.mxu0 0.0
    %750 = vmatprep.subr.mxu0 0.0
    %751 = vmatpush1.msra.mxu0 0.0
    %752 = vmatprep.subr.mxu0 0.0
    %753 = vmatpush1.msra.mxu0 0.0
    %754 = vmatprep.subr.mxu0 0.0
    %755 = vmatpush1.msra.mxu0 0.0
    %756 = vmatprep.subr.mxu0 0.0
    %757 = vmatpush1.msra.mxu0 0.0
    %758 = vmatprep.subr.mxu0 0.0
    %759 = vmatpush1.msra.mxu0 0.0
    %760 = vmatprep.subr.mxu0 0.0
    %761 = vmatpush1.msra.mxu0 0.0
    %762 = vmatprep.subr.mxu0 0.0
    %763 = vmatpush1.msra.mxu0 0.0
    %764 = vmatprep.subr.mxu0 0.0
    %765 = vmatpush1.msra.mxu0 0.0
    %766 = vmatprep.subr.mxu0 0.0
    %767 = vmatpush1.msra.mxu0 0.0
    %768 = vmatprep.subr.mxu0 0.0
    %769 = vmatpush1.msra.mxu0 0.0
    %770 = vmatprep.subr.mxu0 0.0
    %771 = vmatpush1.msra.mxu0 0.0
    %772 = vmatprep.subr.mxu0 0.0
    %773 = vmatpush1.msra.mxu0 0.0
    %774 = vmatprep.subr.mxu0 0.0
    %775 = vmatpush1.msra.mxu0 0.0
    %776 = vmatprep.subr.mxu0 0.0
    %777 = vmatpush1.msra.mxu0 0.0
    %778 = vmatprep.mubr.f32.mxu0 0.0
    %779 = vmatmul.mubr.f32.gmra.mrb[0].mxu0 %v197
    %v780 = vpop.f32.mrb[0].mxu0
    %v781 = vadd.f32 %v713, %v780
    %v782 = vpop.f32.mrb[0].mxu0
    %783 = vmatprep.mubr.f32.mxu0 0.0
    %784 = vmatmul.mubr.f32.gmra.mrb[0].mxu0 %v200
    %v785 = vpop.f32.mrb[0].mxu0
    %v786 = vadd.f32 %v713, %v785
    %v787 = vpop.f32.mrb[0].mxu0
    %788 = vdwg.mxu0
    %v790 = vsel %vm445, %v613, 0
    %v793 = vsel %vm445, %v618, 0
    %v796 = vsel %vm445, %v697, 0
    %v799 = vsel %vm445, %v702, 0
    %801 = vmatprep.subr.mxu0 0.0
    %802 = vmatpush1.xpose.msra.mxu0 %v796
    %803 = vmatprep.subr.mxu0 0.0
    %804 = vmatpush1.xpose.msra.mxu0 %v799
    %805 = vmatprep.subr.mxu0 0.0
    %806 = vmatpush1.xpose.msra.mxu0 0.0
    %807 = vmatprep.subr.mxu0 0.0
    %808 = vmatpush1.xpose.msra.mxu0 0.0
    %809 = vmatprep.subr.mxu0 0.0
    %810 = vmatpush1.xpose.msra.mxu0 0.0
    %811 = vmatprep.subr.mxu0 0.0
    %812 = vmatpush1.xpose.msra.mxu0 0.0
    %813 = vmatprep.subr.mxu0 0.0
    %814 = vmatpush1.xpose.msra.mxu0 0.0
    %815 = vmatprep.subr.mxu0 0.0
    %816 = vmatpush1.xpose.msra.mxu0 0.0
    %817 = vmatprep.subr.mxu0 0.0
    %818 = vmatpush1.xpose.msra.mxu0 0.0
    %819 = vmatprep.subr.mxu0 0.0
    %820 = vmatpush1.xpose.msra.mxu0 0.0
    %821 = vmatprep.subr.mxu0 0.0
    %822 = vmatpush1.xpose.msra.mxu0 0.0
    %823 = vmatprep.subr.mxu0 0.0
    %824 = vmatpush1.xpose.msra.mxu0 0.0
    %825 = vmatprep.subr.mxu0 0.0
    %826 = vmatpush1.xpose.msra.mxu0 0.0
    %827 = vmatprep.subr.mxu0 0.0
    %828 = vmatpush1.xpose.msra.mxu0 0.0
    %829 = vmatprep.subr.mxu0 0.0
    %830 = vmatpush1.xpose.msra.mxu0 0.0
    %831 = vmatprep.subr.mxu0 0.0
    %832 = vmatpush1.xpose.msra.mxu0 0.0
    %833 = vmatprep.subr.mxu0 0.0
    %834 = vmatpush1.xpose.msra.mxu0 0.0
    %835 = vmatprep.subr.mxu0 0.0
    %836 = vmatpush1.xpose.msra.mxu0 0.0
    %837 = vmatprep.subr.mxu0 0.0
    %838 = vmatpush1.xpose.msra.mxu0 0.0
    %839 = vmatprep.subr.mxu0 0.0
    %840 = vmatpush1.xpose.msra.mxu0 0.0
    %841 = vmatprep.subr.mxu0 0.0
    %842 = vmatpush1.xpose.msra.mxu0 0.0
    %843 = vmatprep.subr.mxu0 0.0
    %844 = vmatpush1.xpose.msra.mxu0 0.0
    %845 = vmatprep.subr.mxu0 0.0
    %846 = vmatpush1.xpose.msra.mxu0 0.0
    %847 = vmatprep.subr.mxu0 0.0
    %848 = vmatpush1.xpose.msra.mxu0 0.0
    %849 = vmatprep.subr.mxu0 0.0
    %850 = vmatpush1.xpose.msra.mxu0 0.0
    %851 = vmatprep.subr.mxu0 0.0
    %852 = vmatpush1.xpose.msra.mxu0 0.0
    %853 = vmatprep.subr.mxu0 0.0
    %854 = vmatpush1.xpose.msra.mxu0 0.0
    %855 = vmatprep.subr.mxu0 0.0
    %856 = vmatpush1.xpose.msra.mxu0 0.0
    %857 = vmatprep.subr.mxu0 0.0
    %858 = vmatpush1.xpose.msra.mxu0 0.0
    %859 = vmatprep.subr.mxu0 0.0
    %860 = vmatpush1.xpose.msra.mxu0 0.0
    %861 = vmatprep.subr.mxu0 0.0
    %862 = vmatpush1.xpose.msra.mxu0 0.0
    %863 = vmatprep.subr.mxu0 0.0
    %864 = vmatpush1.xpose.msra.mxu0 0.0
    %865 = vmatprep.mubr.f32.mxu0 0.0
    %866 = vmatmul.mubr.f32.gmra.mrb[0].mxu0 %v790
    %v867 = vpop.f32.mrb[0].mxu0
    %v868 = vadd.f32 0.0, %v867
    %v869 = vpop.f32.mrb[0].mxu0
    %870 = vmatprep.mubr.f32.mxu0 0.0
    %871 = vmatmul.mubr.f32.gmra.mrb[0].mxu0 %v793
    %v872 = vpop.f32.mrb[0].mxu0
    %v873 = vadd.f32 0.0, %v872
    %v874 = vpop.f32.mrb[0].mxu0
    %875 = vdwg.mxu0
    %v876 = vmul.f32 %v868, 0.25
    %v877 = vmul.f32 %v873, 0.25
    %v878 = vadd.f32 %v876, %v185
    %v879 = vadd.f32 %v877, %v186
    %v880 = vsel %vm445, %v535, -inf
    %881 = vmax.xlane.f32.xlu0 %v880
    %v882 = vpop.xlane.xlu0 %881
    %v883 = vsel %vm445, %v536, -inf
    %884 = vmax.xlane.f32.xlu0 %v883
    %v885 = vpop.xlane.xlu0 %884
    %v886 = vsel %vm445, %v878, -inf
    %887 = vmax.xlane.f32.xlu0 %v886
    %v888 = vpop.xlane.xlu0 %887
    %v889 = vsel %vm445, %v879, -inf
    %890 = vmax.xlane.f32.xlu0 %v889
    %v891 = vpop.xlane.xlu0 %890
    %v892 = vsub.f32 %v535, %v882
    %v893 = vsub.f32 %v536, %v885
    %v894 = vsub.f32 %v878, %v888
    %v895 = vsub.f32 %v879, %v891
    %v896 = vmul.f32 %v892, 1.442695
    %v897 = vpow.pop %v896
    %v898 = vmul.f32 %v893, 1.442695
    %v899 = vpow.pop %v898
    %v900 = vmul.f32 %v894, 1.442695
    %v901 = vpow.pop %v900
    %v902 = vmul.f32 %v895, 1.442695
    %v903 = vpow.pop %v902
    %v904 = vsel %vm445, %v897, 0.0
    %905 = vadd.xlane.f32.xlu0 %v904
    %v906 = vpop.xlane.xlu0 %905
    %v907 = vsel %vm445, %v899, 0.0
    %908 = vadd.xlane.f32.xlu0 %v907
    %v909 = vpop.xlane.xlu0 %908
    %v910 = vsel %vm445, %v901, 0.0
    %911 = vadd.xlane.f32.xlu0 %v910
    %v912 = vpop.xlane.xlu0 %911
    %v913 = vsel %vm445, %v903, 0.0
    %914 = vadd.xlane.f32.xlu0 %v913
    %v915 = vpop.xlane.xlu0 %914
    %v916 = vrcp.pop %v906
    %v917 = vmul.f32 %v897, %v916
    %v918 = vrcp.pop %v909
    %v919 = vmul.f32 %v899, %v918
    %v920 = vrcp.pop %v912
    %v921 = vmul.f32 %v901, %v920
    %v922 = vrcp.pop %v915
    %v923 = vmul.f32 %v903, %v922
    %v924 = vld [vmem:[%s5 + $0x6] sm:$0x1]
    %v926 = vsel %vm445, %v917, 0
    %v929 = vsel %vm445, %v919, 0
    %931 = vmatprep.subr.mxu0 0.0
    %932 = vmatpush1.msra.mxu0 %v437
    %933 = vmatprep.subr.mxu0 0.0
    %934 = vmatpush1.msra.mxu0 %v442
    %935 = vmatprep.subr.mxu0 0.0
    %936 = vmatpush1.msra.mxu0 0.0
    %937 = vmatprep.subr.mxu0 0.0
    %938 = vmatpush1.msra.mxu0 0.0
    %939 = vmatprep.subr.mxu0 0.0
    %940 = vmatpush1.msra.mxu0 0.0
    %941 = vmatprep.subr.mxu0 0.0
    %942 = vmatpush1.msra.mxu0 0.0
    %943 = vmatprep.subr.mxu0 0.0
    %944 = vmatpush1.msra.mxu0 0.0
    %945 = vmatprep.subr.mxu0 0.0
    %946 = vmatpush1.msra.mxu0 0.0
    %947 = vmatprep.subr.mxu0 0.0
    %948 = vmatpush1.msra.mxu0 0.0
    %949 = vmatprep.subr.mxu0 0.0
    %950 = vmatpush1.msra.mxu0 0.0
    %951 = vmatprep.subr.mxu0 0.0
    %952 = vmatpush1.msra.mxu0 0.0
    %953 = vmatprep.subr.mxu0 0.0
    %954 = vmatpush1.msra.mxu0 0.0
    %955 = vmatprep.subr.mxu0 0.0
    %956 = vmatpush1.msra.mxu0 0.0
    %957 = vmatprep.subr.mxu0 0.0
    %958 = vmatpush1.msra.mxu0 0.0
    %959 = vmatprep.subr.mxu0 0.0
    %960 = vmatpush1.msra.mxu0 0.0
    %961 = vmatprep.subr.mxu0 0.0
    %962 = vmatpush1.msra.mxu0 0.0
    %963 = vmatprep.subr.mxu0 0.0
    %964 = vmatpush1.msra.mxu0 0.0
    %965 = vmatprep.subr.mxu0 0.0
    %966 = vmatpush1.msra.mxu0 0.0
    %967 = vmatprep.subr.mxu0 0.0
    %968 = vmatpush1.msra.mxu0 0.0
    %969 = vmatprep.subr.mxu0 0.0
    %970 = vmatpush1.msra.mxu0 0.0
    %971 = vmatprep.subr.mxu0 0.0
    %972 = vmatpush1.msra.mxu0 0.0
    %973 = vmatprep.subr.mxu0 0.0
    %974 = vmatpush1.msra.mxu0 0.0
    %975 = vmatprep.subr.mxu0 0.0
    %976 = vmatpush1.msra.mxu0 0.0
    %977 = vmatprep.subr.mxu0 0.0
    %978 = vmatpush1.msra.mxu0 0.0
    %979 = vmatprep.subr.mxu0 0.0
    %980 = vmatpush1.msra.mxu0 0.0
    %981 = vmatprep.subr.mxu0 0.0
    %982 = vmatpush1.msra.mxu0 0.0
    %983 = vmatprep.subr.mxu0 0.0
    %984 = vmatpush1.msra.mxu0 0.0
    %985 = vmatprep.subr.mxu0 0.0
    %986 = vmatpush1.msra.mxu0 0.0
    %987 = vmatprep.subr.mxu0 0.0
    %988 = vmatpush1.msra.mxu0 0.0
    %989 = vmatprep.subr.mxu0 0.0
    %990 = vmatpush1.msra.mxu0 0.0
    %991 = vmatprep.subr.mxu0 0.0
    %992 = vmatpush1.msra.mxu0 0.0
    %993 = vmatprep.subr.mxu0 0.0
    %994 = vmatpush1.msra.mxu0 0.0
    %995 = vmatprep.mubr.f32.mxu0 0.0
    %996 = vmatmul.mubr.f32.gmra.mrb[0].mxu0 %v926
    %v997 = vpop.f32.mrb[0].mxu0
    %v998 = vadd.f32 0.0, %v997
    %v999 = vpop.f32.mrb[0].mxu0
    %1000 = vmatprep.mubr.f32.mxu0 0.0
    %1001 = vmatmul.mubr.f32.gmra.mrb[0].mxu0 %v929
    %v1002 = vpop.f32.mrb[0].mxu0
    %v1003 = vadd.f32 0.0, %v1002
    %v1004 = vpop.f32.mrb[0].mxu0
    %1005 = vdwg.mxu0
    %v1006 = vld [vmem:[%s4 + $0xc0] sm:$0xff]
    %v1007 = vld [vmem:[%s4 + $0xc8] sm:$0xff]
    %v1009 = vsel %vm445, %v998, 0
    %v1012 = vsel %vm445, %v1003, 0
    %1014 = vmatprep.subr.mxu0 0.0
    %1015 = vmatpush1.msra.mxu0 %v1006
    %1016 = vmatprep.subr.mxu0 0.0
    %1017 = vmatpush1.msra.mxu0 %v1007
    %1018 = vmatprep.subr.mxu0 0.0
    %1019 = vmatpush1.msra.mxu0 0.0
    %1020 = vmatprep.subr.mxu0 0.0
    %1021 = vmatpush1.msra.mxu0 0.0
    %1022 = vmatprep.subr.mxu0 0.0
    %1023 = vmatpush1.msra.mxu0 0.0
    %1024 = vmatprep.subr.mxu0 0.0
    %1025 = vmatpush1.msra.mxu0 0.0
    %1026 = vmatprep.subr.mxu0 0.0
    %1027 = vmatpush1.msra.mxu0 0.0
    %1028 = vmatprep.subr.mxu0 0.0
    %1029 = vmatpush1.msra.mxu0 0.0
    %1030 = vmatprep.subr.mxu0 0.0
    %1031 = vmatpush1.msra.mxu0 0.0
    %1032 = vmatprep.subr.mxu0 0.0
    %1033 = vmatpush1.msra.mxu0 0.0
    %1034 = vmatprep.subr.mxu0 0.0
    %1035 = vmatpush1.msra.mxu0 0.0
    %1036 = vmatprep.subr.mxu0 0.0
    %1037 = vmatpush1.msra.mxu0 0.0
    %1038 = vmatprep.subr.mxu0 0.0
    %1039 = vmatpush1.msra.mxu0 0.0
    %1040 = vmatprep.subr.mxu0 0.0
    %1041 = vmatpush1.msra.mxu0 0.0
    %1042 = vmatprep.subr.mxu0 0.0
    %1043 = vmatpush1.msra.mxu0 0.0
    %1044 = vmatprep.subr.mxu0 0.0
    %1045 = vmatpush1.msra.mxu0 0.0
    %1046 = vmatprep.subr.mxu0 0.0
    %1047 = vmatpush1.msra.mxu0 0.0
    %1048 = vmatprep.subr.mxu0 0.0
    %1049 = vmatpush1.msra.mxu0 0.0
    %1050 = vmatprep.subr.mxu0 0.0
    %1051 = vmatpush1.msra.mxu0 0.0
    %1052 = vmatprep.subr.mxu0 0.0
    %1053 = vmatpush1.msra.mxu0 0.0
    %1054 = vmatprep.subr.mxu0 0.0
    %1055 = vmatpush1.msra.mxu0 0.0
    %1056 = vmatprep.subr.mxu0 0.0
    %1057 = vmatpush1.msra.mxu0 0.0
    %1058 = vmatprep.subr.mxu0 0.0
    %1059 = vmatpush1.msra.mxu0 0.0
    %1060 = vmatprep.subr.mxu0 0.0
    %1061 = vmatpush1.msra.mxu0 0.0
    %1062 = vmatprep.subr.mxu0 0.0
    %1063 = vmatpush1.msra.mxu0 0.0
    %1064 = vmatprep.subr.mxu0 0.0
    %1065 = vmatpush1.msra.mxu0 0.0
    %1066 = vmatprep.subr.mxu0 0.0
    %1067 = vmatpush1.msra.mxu0 0.0
    %1068 = vmatprep.subr.mxu0 0.0
    %1069 = vmatpush1.msra.mxu0 0.0
    %1070 = vmatprep.subr.mxu0 0.0
    %1071 = vmatpush1.msra.mxu0 0.0
    %1072 = vmatprep.subr.mxu0 0.0
    %1073 = vmatpush1.msra.mxu0 0.0
    %1074 = vmatprep.subr.mxu0 0.0
    %1075 = vmatpush1.msra.mxu0 0.0
    %1076 = vmatprep.subr.mxu0 0.0
    %1077 = vmatpush1.msra.mxu0 0.0
    %1078 = vmatprep.mubr.f32.mxu0 0.0
    %1079 = vmatmul.mubr.f32.gmra.mrb[0].mxu0 %v1009
    %v1080 = vpop.f32.mrb[0].mxu0
    %v1081 = vadd.f32 0.0, %v1080
    %v1082 = vpop.f32.mrb[0].mxu0
    %1083 = vmatprep.mubr.f32.mxu0 0.0
    %1084 = vmatmul.mubr.f32.gmra.mrb[0].mxu0 %v1012
    %v1085 = vpop.f32.mrb[0].mxu0
    %v1086 = vadd.f32 0.0, %v1085
    %v1087 = vpop.f32.mrb[0].mxu0
    %1088 = vdwg.mxu0
    %v1089 = vlaneseq
    %v1090 = vshrl.u32 %v1089, 7
    %v1091 = vsub.s32 0, %v1090
    %v1092 = vrot.slane %v924, %v1091
    %v1093 = vadd.f32 %v1092, %v1081
    %v1094 = vadd.f32 %v1092, %v1086
    %v1096 = vsel %vm445, %v921, 0
    %v1099 = vsel %vm445, %v923, 0
    %1101 = vmatprep.subr.mxu0 0.0
    %1102 = vmatpush1.msra.mxu0 %v781
    %1103 = vmatprep.subr.mxu0 0.0
    %1104 = vmatpush1.msra.mxu0 %v786
    %1105 = vmatprep.subr.mxu0 0.0
    %1106 = vmatpush1.msra.mxu0 0.0
    %1107 = vmatprep.subr.mxu0 0.0
    %1108 = vmatpush1.msra.mxu0 0.0
    %1109 = vmatprep.subr.mxu0 0.0
    %1110 = vmatpush1.msra.mxu0 0.0
    %1111 = vmatprep.subr.mxu0 0.0
    %1112 = vmatpush1.msra.mxu0 0.0
    %1113 = vmatprep.subr.mxu0 0.0
    %1114 = vmatpush1.msra.mxu0 0.0
    %1115 = vmatprep.subr.mxu0 0.0
    %1116 = vmatpush1.msra.mxu0 0.0
    %1117 = vmatprep.subr.mxu0 0.0
    %1118 = vmatpush1.msra.mxu0 0.0
    %1119 = vmatprep.subr.mxu0 0.0
    %1120 = vmatpush1.msra.mxu0 0.0
    %1121 = vmatprep.subr.mxu0 0.0
    %1122 = vmatpush1.msra.mxu0 0.0
    %1123 = vmatprep.subr.mxu0 0.0
    %1124 = vmatpush1.msra.mxu0 0.0
    %1125 = vmatprep.subr.mxu0 0.0
    %1126 = vmatpush1.msra.mxu0 0.0
    %1127 = vmatprep.subr.mxu0 0.0
    %1128 = vmatpush1.msra.mxu0 0.0
    %1129 = vmatprep.subr.mxu0 0.0
    %1130 = vmatpush1.msra.mxu0 0.0
    %1131 = vmatprep.subr.mxu0 0.0
    %1132 = vmatpush1.msra.mxu0 0.0
    %1133 = vmatprep.subr.mxu0 0.0
    %1134 = vmatpush1.msra.mxu0 0.0
    %1135 = vmatprep.subr.mxu0 0.0
    %1136 = vmatpush1.msra.mxu0 0.0
    %1137 = vmatprep.subr.mxu0 0.0
    %1138 = vmatpush1.msra.mxu0 0.0
    %1139 = vmatprep.subr.mxu0 0.0
    %1140 = vmatpush1.msra.mxu0 0.0
    %1141 = vmatprep.subr.mxu0 0.0
    %1142 = vmatpush1.msra.mxu0 0.0
    %1143 = vmatprep.subr.mxu0 0.0
    %1144 = vmatpush1.msra.mxu0 0.0
    %1145 = vmatprep.subr.mxu0 0.0
    %1146 = vmatpush1.msra.mxu0 0.0
    %1147 = vmatprep.subr.mxu0 0.0
    %1148 = vmatpush1.msra.mxu0 0.0
    %1149 = vmatprep.subr.mxu0 0.0
    %1150 = vmatpush1.msra.mxu0 0.0
    %1151 = vmatprep.subr.mxu0 0.0
    %1152 = vmatpush1.msra.mxu0 0.0
    %1153 = vmatprep.subr.mxu0 0.0
    %1154 = vmatpush1.msra.mxu0 0.0
    %1155 = vmatprep.subr.mxu0 0.0
    %1156 = vmatpush1.msra.mxu0 0.0
    %1157 = vmatprep.subr.mxu0 0.0
    %1158 = vmatpush1.msra.mxu0 0.0
    %1159 = vmatprep.subr.mxu0 0.0
    %1160 = vmatpush1.msra.mxu0 0.0
    %1161 = vmatprep.subr.mxu0 0.0
    %1162 = vmatpush1.msra.mxu0 0.0
    %1163 = vmatprep.subr.mxu0 0.0
    %1164 = vmatpush1.msra.mxu0 0.0
    %1165 = vmatprep.mubr.f32.mxu0 0.0
    %1166 = vmatmul.mubr.f32.gmra.mrb[0].mxu0 %v1096
    %v1167 = vpop.f32.mrb[0].mxu0
    %v1168 = vadd.f32 0.0, %v1167
    %v1169 = vpop.f32.mrb[0].mxu0
    %1170 = vmatprep.mubr.f32.mxu0 0.0
    %1171 = vmatmul.mubr.f32.gmra.mrb[0].mxu0 %v1099
    %v1172 = vpop.f32.mrb[0].mxu0
    %v1173 = vadd.f32 0.0, %v1172
    %v1174 = vpop.f32.mrb[0].mxu0
    %1175 = vdwg.mxu0
    %v1176 = vld [vmem:[%s4 + $0xd0] sm:$0xff]
    %v1177 = vld [vmem:[%s4 + $0xd8] sm:$0xff]
    %v1179 = vsel %vm445, %v1168, 0
    %v1182 = vsel %vm445, %v1173, 0
    %1184 = vmatprep.subr.mxu0 0.0
    %1185 = vmatpush1.msra.mxu0 %v1176
    %1186 = vmatprep.subr.mxu0 0.0
    %1187 = vmatpush1.msra.mxu0 %v1177
    %1188 = vmatprep.subr.mxu0 0.0
    %1189 = vmatpush1.msra.mxu0 0.0
    %1190 = vmatprep.subr.mxu0 0.0
    %1191 = vmatpush1.msra.mxu0 0.0
    %1192 = vmatprep.subr.mxu0 0.0
    %1193 = vmatpush1.msra.mxu0 0.0
    %1194 = vmatprep.subr.mxu0 0.0
    %1195 = vmatpush1.msra.mxu0 0.0
    %1196 = vmatprep.subr.mxu0 0.0
    %1197 = vmatpush1.msra.mxu0 0.0
    %1198 = vmatprep.subr.mxu0 0.0
    %1199 = vmatpush1.msra.mxu0 0.0
    %1200 = vmatprep.subr.mxu0 0.0
    %1201 = vmatpush1.msra.mxu0 0.0
    %1202 = vmatprep.subr.mxu0 0.0
    %1203 = vmatpush1.msra.mxu0 0.0
    %1204 = vmatprep.subr.mxu0 0.0
    %1205 = vmatpush1.msra.mxu0 0.0
    %1206 = vmatprep.subr.mxu0 0.0
    %1207 = vmatpush1.msra.mxu0 0.0
    %1208 = vmatprep.subr.mxu0 0.0
    %1209 = vmatpush1.msra.mxu0 0.0
    %1210 = vmatprep.subr.mxu0 0.0
    %1211 = vmatpush1.msra.mxu0 0.0
    %1212 = vmatprep.subr.mxu0 0.0
    %1213 = vmatpush1.msra.mxu0 0.0
    %1214 = vmatprep.subr.mxu0 0.0
    %1215 = vmatpush1.msra.mxu0 0.0
    %1216 = vmatprep.subr.mxu0 0.0
    %1217 = vmatpush1.msra.mxu0 0.0
    %1218 = vmatprep.subr.mxu0 0.0
    %1219 = vmatpush1.msra.mxu0 0.0
    %1220 = vmatprep.subr.mxu0 0.0
    %1221 = vmatpush1.msra.mxu0 0.0
    %1222 = vmatprep.subr.mxu0 0.0
    %1223 = vmatpush1.msra.mxu0 0.0
    %1224 = vmatprep.subr.mxu0 0.0
    %1225 = vmatpush1.msra.mxu0 0.0
    %1226 = vmatprep.subr.mxu0 0.0
    %1227 = vmatpush1.msra.mxu0 0.0
    %1228 = vmatprep.subr.mxu0 0.0
    %1229 = vmatpush1.msra.mxu0 0.0
    %1230 = vmatprep.subr.mxu0 0.0
    %1231 = vmatpush1.msra.mxu0 0.0
    %1232 = vmatprep.subr.mxu0 0.0
    %1233 = vmatpush1.msra.mxu0 0.0
    %1234 = vmatprep.subr.mxu0 0.0
    %1235 = vmatpush1.msra.mxu0 0.0
    %1236 = vmatprep.subr.mxu0 0.0
    %1237 = vmatpush1.msra.mxu0 0.0
    %1238 = vmatprep.subr.mxu0 0.0
    %1239 = vmatpush1.msra.mxu0 0.0
    %1240 = vmatprep.subr.mxu0 0.0
    %1241 = vmatpush1.msra.mxu0 0.0
    %1242 = vmatprep.subr.mxu0 0.0
    %1243 = vmatpush1.msra.mxu0 0.0
    %1244 = vmatprep.subr.mxu0 0.0
    %1245 = vmatpush1.msra.mxu0 0.0
    %1246 = vmatprep.subr.mxu0 0.0
    %1247 = vmatpush1.msra.mxu0 0.0
    %1248 = vmatprep.mubr.f32.mxu0 0.0
    %1249 = vmatmul.mubr.f32.gmra.mrb[0].mxu0 %v1179
    %v1250 = vpop.f32.mrb[0].mxu0
    %v1251 = vadd.f32 0.0, %v1250
    %v1252 = vpop.f32.mrb[0].mxu0
    %1253 = vmatprep.mubr.f32.mxu0 0.0
    %1254 = vmatmul.mubr.f32.gmra.mrb[0].mxu0 %v1182
    %v1255 = vpop.f32.mrb[0].mxu0
    %v1256 = vadd.f32 0.0, %v1255
    %v1257 = vpop.f32.mrb[0].mxu0
    %1258 = vdwg.mxu0
    %v1259 = vadd.f32 %v1093, %v1251
    %v1260 = vadd.f32 %v1094, %v1256
    %v1261 = vadd.f32 %v1259, %v172
    %v1262 = vadd.f32 %v1260, %v173
    %v1263 = vld [vmem:[%s5 + $0x7] sm:$0x1]
    %v1264 = vld [vmem:[%s5 + $0x8] sm:$0x1]
    %v1265 = vsel %vm134, %v1261, 0.0
    %1266 = vadd.xlane.f32.xlu0 %v1265
    %v1267 = vpop.xlane.xlu0 %1266
    %v1268 = vsel %vm134, %v1262, 0.0
    %1269 = vadd.xlane.f32.xlu0 %v1268
    %v1270 = vpop.xlane.xlu0 %1269
    %v1271 = vmul.f32 %v1267, %v141
    %v1272 = vmul.f32 %v1270, %v141
    %v1273 = vsub.f32 %v1261, %v1271
    %v1274 = vsub.f32 %v1262, %v1272
    %v1275 = vmul.f32 %v1273, %v1273
    %v1276 = vmul.f32 %v1274, %v1274
    %v1277 = vsel %vm134, %v1275, 0.0
    %1278 = vadd.xlane.f32.xlu0 %v1277
    %v1279 = vpop.xlane.xlu0 %1278
    %v1280 = vsel %vm134, %v1276, 0.0
    %1281 = vadd.xlane.f32.xlu0 %v1280
    %v1282 = vpop.xlane.xlu0 %1281
    %v1283 = vmul.f32 %v1279, %v141
    %v1284 = vmul.f32 %v1282, %v141
    %v1285 = vadd.f32 %v1283, 1e-12
    %v1286 = vadd.f32 %v1284, 1e-12
    %v1287 = vrsqrt.pop %v1285
    %v1288 = vrsqrt.pop %v1286
    %v1289 = vmul.f32 %v1273, %v1287
    %v1290 = vmul.f32 %v1274, %v1288
    %v1291 = vlaneseq
    %v1292 = vshrl.u32 %v1291, 7
    %v1293 = vsub.s32 0, %v1292
    %v1294 = vrot.slane %v1263, %v1293
    %v1295 = vmul.f32 %v1289, %v1294
    %v1296 = vmul.f32 %v1290, %v1294
    %v1297 = vlaneseq
    %v1298 = vshrl.u32 %v1297, 7
    %v1299 = vsub.s32 0, %v1298
    %v1300 = vrot.slane %v1264, %v1299
    %v1301 = vadd.f32 %v1295, %v1300
    %v1302 = vadd.f32 %v1296, %v1300
    %v1303 = vld [vmem:[%s4 + $0xe0] sm:$0xff]
    %v1304 = vld [vmem:[%s4 + $0xe8] sm:$0xff]
    %v1305 = vld [vmem:[%s4 + $0xf0] sm:$0xff]
    %v1306 = vld [vmem:[%s4 + $0xf8] sm:$0xff]
    %v1307 = vld [vmem:[%s5 + $0x9] sm:$0x1]
    %v1308 = vlaneseq
    %v1309 = vshrl.u32 %v1308, 7
    %v1310 = vsub.s32 0, %v1309
    %v1311 = vrot.slane %v1307, %v1310
    %v1313 = vsel %vm134, %v1301, 0
    %v1316 = vsel %vm134, %v1302, 0
    %1318 = vmatprep.subr.mxu0 0.0
    %1319 = vmatpush1.msra.mxu0 %v1303
    %1320 = vmatprep.subr.mxu0 0.0
    %1321 = vmatpush1.msra.mxu0 %v1304
    %1322 = vmatprep.subr.mxu0 0.0
    %1323 = vmatpush1.msra.mxu0 %v1305
    %1324 = vmatprep.subr.mxu0 0.0
    %1325 = vmatpush1.msra.mxu0 %v1306
    %1326 = vmatprep.subr.mxu0 0.0
    %1327 = vmatpush1.msra.mxu0 0.0
    %1328 = vmatprep.subr.mxu0 0.0
    %1329 = vmatpush1.msra.mxu0 0.0
    %1330 = vmatprep.subr.mxu0 0.0
    %1331 = vmatpush1.msra.mxu0 0.0
    %1332 = vmatprep.subr.mxu0 0.0
    %1333 = vmatpush1.msra.mxu0 0.0
    %1334 = vmatprep.subr.mxu0 0.0
    %1335 = vmatpush1.msra.mxu0 0.0
    %1336 = vmatprep.subr.mxu0 0.0
    %1337 = vmatpush1.msra.mxu0 0.0
    %1338 = vmatprep.subr.mxu0 0.0
    %1339 = vmatpush1.msra.mxu0 0.0
    %1340 = vmatprep.subr.mxu0 0.0
    %1341 = vmatpush1.msra.mxu0 0.0
    %1342 = vmatprep.subr.mxu0 0.0
    %1343 = vmatpush1.msra.mxu0 0.0
    %1344 = vmatprep.subr.mxu0 0.0
    %1345 = vmatpush1.msra.mxu0 0.0
    %1346 = vmatprep.subr.mxu0 0.0
    %1347 = vmatpush1.msra.mxu0 0.0
    %1348 = vmatprep.subr.mxu0 0.0
    %1349 = vmatpush1.msra.mxu0 0.0
    %1350 = vmatprep.subr.mxu0 0.0
    %1351 = vmatpush1.msra.mxu0 0.0
    %1352 = vmatprep.subr.mxu0 0.0
    %1353 = vmatpush1.msra.mxu0 0.0
    %1354 = vmatprep.subr.mxu0 0.0
    %1355 = vmatpush1.msra.mxu0 0.0
    %1356 = vmatprep.subr.mxu0 0.0
    %1357 = vmatpush1.msra.mxu0 0.0
    %1358 = vmatprep.subr.mxu0 0.0
    %1359 = vmatpush1.msra.mxu0 0.0
    %1360 = vmatprep.subr.mxu0 0.0
    %1361 = vmatpush1.msra.mxu0 0.0
    %1362 = vmatprep.subr.mxu0 0.0
    %1363 = vmatpush1.msra.mxu0 0.0
    %1364 = vmatprep.subr.mxu0 0.0
    %1365 = vmatpush1.msra.mxu0 0.0
    %1366 = vmatprep.subr.mxu0 0.0
    %1367 = vmatpush1.msra.mxu0 0.0
    %1368 = vmatprep.subr.mxu0 0.0
    %1369 = vmatpush1.msra.mxu0 0.0
    %1370 = vmatprep.subr.mxu0 0.0
    %1371 = vmatpush1.msra.mxu0 0.0
    %1372 = vmatprep.subr.mxu0 0.0
    %1373 = vmatpush1.msra.mxu0 0.0
    %1374 = vmatprep.subr.mxu0 0.0
    %1375 = vmatpush1.msra.mxu0 0.0
    %1376 = vmatprep.subr.mxu0 0.0
    %1377 = vmatpush1.msra.mxu0 0.0
    %1378 = vmatprep.subr.mxu0 0.0
    %1379 = vmatpush1.msra.mxu0 0.0
    %1380 = vmatprep.subr.mxu0 0.0
    %1381 = vmatpush1.msra.mxu0 0.0
    %1382 = vmatprep.mubr.f32.mxu0 0.0
    %1383 = vmatmul.mubr.f32.gmra.mrb[0].mxu0 %v1313
    %v1384 = vpop.f32.mrb[0].mxu0
    %v1385 = vadd.f32 %v1311, %v1384
    %v1386 = vpop.f32.mrb[0].mxu0
    %1387 = vmatprep.mubr.f32.mxu0 0.0
    %1388 = vmatmul.mubr.f32.gmra.mrb[0].mxu0 %v1316
    %v1389 = vpop.f32.mrb[0].mxu0
    %v1390 = vadd.f32 %v1311, %v1389
    %v1391 = vpop.f32.mrb[0].mxu0
    %1392 = vdwg.mxu0
    %v1393 = vmul.f32 %v1385, %v1385
    %v1394 = vmul.f32 %v1390, %v1390
    %v1395 = vmul.f32 %v1385, %v1393
    %v1396 = vmul.f32 %v1390, %v1394
    %v1397 = vmul.f32 %v1395, 0.044715
    %v1398 = vmul.f32 %v1396, 0.044715
    %v1399 = vadd.f32 %v1385, %v1397
    %v1400 = vadd.f32 %v1390, %v1398
    %v1401 = vmul.f32 %v1399, 0.7978846
    %v1402 = vmul.f32 %v1400, 0.7978846
    %v1403 = vtanh.pop %v1401
    %v1404 = vtanh.pop %v1402
    %v1405 = vadd.f32 %v1403, 1.0
    %v1406 = vadd.f32 %v1404, 1.0
    %v1407 = vmul.f32 %v1405, 0.5
    %v1408 = vmul.f32 %v1406, 0.5
    %v1409 = vmul.f32 %v1385, %v1407
    %v1410 = vmul.f32 %v1390, %v1408
    %v1411 = vld [vmem:[%s4 + $0x100] sm:$0xff]
    %v1412 = vld [vmem:[%s4 + $0x108] sm:$0xff]
    %v1413 = vld [vmem:[%s4 + $0x110] sm:$0xff]
    %v1414 = vld [vmem:[%s4 + $0x118] sm:$0xff]
    %v1415 = vld [vmem:[%s4 + $0x120] sm:$0xff]
    %v1416 = vld [vmem:[%s4 + $0x128] sm:$0xff]
    %v1417 = vld [vmem:[%s4 + $0x130] sm:$0xff]
    %v1418 = vld [vmem:[%s4 + $0x138] sm:$0xff]
    %v1419 = vld [vmem:[%s5 + $0xa] sm:$0x1]
    %v1420 = vlaneseq
    %v1421 = vshrl.u32 %v1420, 7
    %v1422 = vsub.s32 0, %v1421
    %v1423 = vrot.slane %v1419, %v1422
    %v1425 = vsel %vm50, %v1409, 0
    %v1428 = vsel %vm50, %v1410, 0
    %1430 = vmatprep.subr.mxu0 0.0
    %1431 = vmatpush1.msra.mxu0 %v1411
    %1432 = vmatprep.subr.mxu0 0.0
    %1433 = vmatpush1.msra.mxu0 %v1412
    %1434 = vmatprep.subr.mxu0 0.0
    %1435 = vmatpush1.msra.mxu0 %v1413
    %1436 = vmatprep.subr.mxu0 0.0
    %1437 = vmatpush1.msra.mxu0 %v1414
    %1438 = vmatprep.subr.mxu0 0.0
    %1439 = vmatpush1.msra.mxu0 %v1415
    %1440 = vmatprep.subr.mxu0 0.0
    %1441 = vmatpush1.msra.mxu0 %v1416
    %1442 = vmatprep.subr.mxu0 0.0
    %1443 = vmatpush1.msra.mxu0 %v1417
    %1444 = vmatprep.subr.mxu0 0.0
    %1445 = vmatpush1.msra.mxu0 %v1418
    %1446 = vmatprep.subr.mxu0 0.0
    %1447 = vmatpush1.msra.mxu0 0.0
    %1448 = vmatprep.subr.mxu0 0.0
    %1449 = vmatpush1.msra.mxu0 0.0
    %1450 = vmatprep.subr.mxu0 0.0
    %1451 = vmatpush1.msra.mxu0 0.0
    %1452 = vmatprep.subr.mxu0 0.0
    %1453 = vmatpush1.msra.mxu0 0.0
    %1454 = vmatprep.subr.mxu0 0.0
    %1455 = vmatpush1.msra.mxu0 0.0
    %1456 = vmatprep.subr.mxu0 0.0
    %1457 = vmatpush1.msra.mxu0 0.0
    %1458 = vmatprep.subr.mxu0 0.0
    %1459 = vmatpush1.msra.mxu0 0.0
    %1460 = vmatprep.subr.mxu0 0.0
    %1461 = vmatpush1.msra.mxu0 0.0
    %1462 = vmatprep.subr.mxu0 0.0
    %1463 = vmatpush1.msra.mxu0 0.0
    %1464 = vmatprep.subr.mxu0 0.0
    %1465 = vmatpush1.msra.mxu0 0.0
    %1466 = vmatprep.subr.mxu0 0.0
    %1467 = vmatpush1.msra.mxu0 0.0
    %1468 = vmatprep.subr.mxu0 0.0
    %1469 = vmatpush1.msra.mxu0 0.0
    %1470 = vmatprep.subr.mxu0 0.0
    %1471 = vmatpush1.msra.mxu0 0.0
    %1472 = vmatprep.subr.mxu0 0.0
    %1473 = vmatpush1.msra.mxu0 0.0
    %1474 = vmatprep.subr.mxu0 0.0
    %1475 = vmatpush1.msra.mxu0 0.0
    %1476 = vmatprep.subr.mxu0 0.0
    %1477 = vmatpush1.msra.mxu0 0.0
    %1478 = vmatprep.subr.mxu0 0.0
    %1479 = vmatpush1.msra.mxu0 0.0
    %1480 = vmatprep.subr.mxu0 0.0
    %1481 = vmatpush1.msra.mxu0 0.0
    %1482 = vmatprep.subr.mxu0 0.0
    %1483 = vmatpush1.msra.mxu0 0.0
    %1484 = vmatprep.subr.mxu0 0.0
    %1485 = vmatpush1.msra.mxu0 0.0
    %1486 = vmatprep.subr.mxu0 0.0
    %1487 = vmatpush1.msra.mxu0 0.0
    %1488 = vmatprep.subr.mxu0 0.0
    %1489 = vmatpush1.msra.mxu0 0.0
    %1490 = vmatprep.subr.mxu0 0.0
    %1491 = vmatpush1.msra.mxu0 0.0
    %1492 = vmatprep.subr.mxu0 0.0
    %1493 = vmatpush1.msra.mxu0 0.0
    %1494 = vmatprep.mubr.f32.mxu0 0.0
    %1495 = vmatmul.mubr.f32.gmra.mrb[0].mxu0 %v1425
    %v1496 = vpop.f32.mrb[0].mxu0
    %v1497 = vadd.f32 %v1423, %v1496
    %v1498 = vpop.f32.mrb[0].mxu0
    %1499 = vmatprep.mubr.f32.mxu0 0.0
    %1500 = vmatmul.mubr.f32.gmra.mrb[0].mxu0 %v1428
    %v1501 = vpop.f32.mrb[0].mxu0
    %v1502 = vadd.f32 %v1423, %v1501
    %v1503 = vpop.f32.mrb[0].mxu0
    %1504 = vdwg.mxu0
    %v1505 = vadd.f32 %v1497, %v1301
    %v1506 = vadd.f32 %v1502, %v1302
    %v1507 = vld [vmem:[%s5 + $0xb] sm:$0x1]
    %v1508 = vld [vmem:[%s5 + $0xc] sm:$0x1]
    %v1509 = vsel %vm134, %v1505, 0.0
    %1510 = vadd.xlane.f32.xlu0 %v1509
    %v1511 = vpop.xlane.xlu0 %1510
    %v1512 = vsel %vm134, %v1506, 0.0
    %1513 = vadd.xlane.f32.xlu0 %v1512
    %v1514 = vpop.xlane.xlu0 %1513
    %v1515 = vmul.f32 %v1511, %v141
    %v1516 = vmul.f32 %v1514, %v141
    %v1517 = vsub.f32 %v1505, %v1515
    %v1518 = vsub.f32 %v1506, %v1516
    %v1519 = vmul.f32 %v1517, %v1517
    %v1520 = vmul.f32 %v1518, %v1518
    %v1521 = vsel %vm134, %v1519, 0.0
    %1522 = vadd.xlane.f32.xlu0 %v1521
    %v1523 = vpop.xlane.xlu0 %1522
    %v1524 = vsel %vm134, %v1520, 0.0
    %1525 = vadd.xlane.f32.xlu0 %v1524
    %v1526 = vpop.xlane.xlu0 %1525
    %v1527 = vmul.f32 %v1523, %v141
    %v1528 = vmul.f32 %v1526, %v141
    %v1529 = vadd.f32 %v1527, 1e-12
    %v1530 = vadd.f32 %v1528, 1e-12
    %v1531 = vrsqrt.pop %v1529
    %v1532 = vrsqrt.pop %v1530
    %v1533 = vmul.f32 %v1517, %v1531
    %v1534 = vmul.f32 %v1518, %v1532
    %v1535 = vlaneseq
    %v1536 = vshrl.u32 %v1535, 7
    %v1537 = vsub.s32 0, %v1536
    %v1538 = vrot.slane %v1507, %v1537
    %v1539 = vmul.f32 %v1533, %v1538
    %v1540 = vmul.f32 %v1534, %v1538
    %v1541 = vlaneseq
    %v1542 = vshrl.u32 %v1541, 7
    %v1543 = vsub.s32 0, %v1542
    %v1544 = vrot.slane %v1508, %v1543
    %v1545 = vadd.f32 %v1539, %v1544
    %v1546 = vadd.f32 %v1540, %v1544
    %v1547 = vld [vmem:[%s4 + $0x140] sm:$0xff]
    %v1548 = vld [vmem:[%s4 + $0x148] sm:$0xff]
    %v1549 = vld [vmem:[%s4 + $0x150] sm:$0xff]
    %v1550 = vld [vmem:[%s4 + $0x158] sm:$0xff]
    %v1551 = vld [vmem:[%s5 + $0x10] sm:$0x1]
    %v1552 = vlaneseq
    %v1553 = vshrl.u32 %v1552, 7
    %v1554 = vsub.s32 0, %v1553
    %v1555 = vrot.slane %v1551, %v1554
    %v1557 = vsel %vm134, %v1545, 0
    %v1560 = vsel %vm134, %v1546, 0
    %1562 = vmatprep.subr.mxu0 0.0
    %1563 = vmatpush1.msra.mxu0 %v1547
    %1564 = vmatprep.subr.mxu0 0.0
    %1565 = vmatpush1.msra.mxu0 %v1548
    %1566 = vmatprep.subr.mxu0 0.0
    %1567 = vmatpush1.msra.mxu0 %v1549
    %1568 = vmatprep.subr.mxu0 0.0
    %1569 = vmatpush1.msra.mxu0 %v1550
    %1570 = vmatprep.subr.mxu0 0.0
    %1571 = vmatpush1.msra.mxu0 0.0
    %1572 = vmatprep.subr.mxu0 0.0
    %1573 = vmatpush1.msra.mxu0 0.0
    %1574 = vmatprep.subr.mxu0 0.0
    %1575 = vmatpush1.msra.mxu0 0.0
    %1576 = vmatprep.subr.mxu0 0.0
    %1577 = vmatpush1.msra.mxu0 0.0
    %1578 = vmatprep.subr.mxu0 0.0
    %1579 = vmatpush1.msra.mxu0 0.0
    %1580 = vmatprep.subr.mxu0 0.0
    %1581 = vmatpush1.msra.mxu0 0.0
    %1582 = vmatprep.subr.mxu0 0.0
    %1583 = vmatpush1.msra.mxu0 0.0
    %1584 = vmatprep.subr.mxu0 0.0
    %1585 = vmatpush1.msra.mxu0 0.0
    %1586 = vmatprep.subr.mxu0 0.0
    %1587 = vmatpush1.msra.mxu0 0.0
    %1588 = vmatprep.subr.mxu0 0.0
    %1589 = vmatpush1.msra.mxu0 0.0
    %1590 = vmatprep.subr.mxu0 0.0
    %1591 = vmatpush1.msra.mxu0 0.0
    %1592 = vmatprep.subr.mxu0 0.0
    %1593 = vmatpush1.msra.mxu0 0.0
    %1594 = vmatprep.subr.mxu0 0.0
    %1595 = vmatpush1.msra.mxu0 0.0
    %1596 = vmatprep.subr.mxu0 0.0
    %1597 = vmatpush1.msra.mxu0 0.0
    %1598 = vmatprep.subr.mxu0 0.0
    %1599 = vmatpush1.msra.mxu0 0.0
    %1600 = vmatprep.subr.mxu0 0.0
    %1601 = vmatpush1.msra.mxu0 0.0
    %1602 = vmatprep.subr.mxu0 0.0
    %1603 = vmatpush1.msra.mxu0 0.0
    %1604 = vmatprep.subr.mxu0 0.0
    %1605 = vmatpush1.msra.mxu0 0.0
    %1606 = vmatprep.subr.mxu0 0.0
    %1607 = vmatpush1.msra.mxu0 0.0
    %1608 = vmatprep.subr.mxu0 0.0
    %1609 = vmatpush1.msra.mxu0 0.0
    %1610 = vmatprep.subr.mxu0 0.0
    %1611 = vmatpush1.msra.mxu0 0.0
    %1612 = vmatprep.subr.mxu0 0.0
    %1613 = vmatpush1.msra.mxu0 0.0
    %1614 = vmatprep.subr.mxu0 0.0
    %1615 = vmatpush1.msra.mxu0 0.0
    %1616 = vmatprep.subr.mxu0 0.0
    %1617 = vmatpush1.msra.mxu0 0.0
    %1618 = vmatprep.subr.mxu0 0.0
    %1619 = vmatpush1.msra.mxu0 0.0
    %1620 = vmatprep.subr.mxu0 0.0
    %1621 = vmatpush1.msra.mxu0 0.0
    %1622 = vmatprep.subr.mxu0 0.0
    %1623 = vmatpush1.msra.mxu0 0.0
    %1624 = vmatprep.subr.mxu0 0.0
    %1625 = vmatpush1.msra.mxu0 0.0
    %1626 = vmatprep.mubr.f32.mxu0 0.0
    %1627 = vmatmul.mubr.f32.gmra.mrb[0].mxu0 %v1557
    %v1628 = vpop.f32.mrb[0].mxu0
    %v1629 = vadd.f32 %v1555, %v1628
    %v1630 = vpop.f32.mrb[0].mxu0
    %1631 = vmatprep.mubr.f32.mxu0 0.0
    %1632 = vmatmul.mubr.f32.gmra.mrb[0].mxu0 %v1560
    %v1633 = vpop.f32.mrb[0].mxu0
    %v1634 = vadd.f32 %v1555, %v1633
    %v1635 = vpop.f32.mrb[0].mxu0
    %1636 = vdwg.mxu0
    %v1637 = vld [vmem:[%s4 + $0x160] sm:$0xff]
    %v1638 = vld [vmem:[%s4 + $0x168] sm:$0xff]
    %v1639 = vld [vmem:[%s4 + $0x170] sm:$0xff]
    %v1640 = vld [vmem:[%s4 + $0x178] sm:$0xff]
    %v1641 = vld [vmem:[%s5 + $0x11] sm:$0x1]
    %v1642 = vlaneseq
    %v1643 = vshrl.u32 %v1642, 7
    %v1644 = vsub.s32 0, %v1643
    %v1645 = vrot.slane %v1641, %v1644
    %1646 = vmatprep.subr.mxu0 0.0
    %1647 = vmatpush1.msra.mxu0 %v1637
    %1648 = vmatprep.subr.mxu0 0.0
    %1649 = vmatpush1.msra.mxu0 %v1638
    %1650 = vmatprep.subr.mxu0 0.0
    %1651 = vmatpush1.msra.mxu0 %v1639
    %1652 = vmatprep.subr.mxu0 0.0
    %1653 = vmatpush1.msra.mxu0 %v1640
    %1654 = vmatprep.subr.mxu0 0.0
    %1655 = vmatpush1.msra.mxu0 0.0
    %1656 = vmatprep.subr.mxu0 0.0
    %1657 = vmatpush1.msra.mxu0 0.0
    %1658 = vmatprep.subr.mxu0 0.0
    %1659 = vmatpush1.msra.mxu0 0.0
    %1660 = vmatprep.subr.mxu0 0.0
    %1661 = vmatpush1.msra.mxu0 0.0
    %1662 = vmatprep.subr.mxu0 0.0
    %1663 = vmatpush1.msra.mxu0 0.0
    %1664 = vmatprep.subr.mxu0 0.0
    %1665 = vmatpush1.msra.mxu0 0.0
    %1666 = vmatprep.subr.mxu0 0.0
    %1667 = vmatpush1.msra.mxu0 0.0
    %1668 = vmatprep.subr.mxu0 0.0
    %1669 = vmatpush1.msra.mxu0 0.0
    %1670 = vmatprep.subr.mxu0 0.0
    %1671 = vmatpush1.msra.mxu0 0.0
    %1672 = vmatprep.subr.mxu0 0.0
    %1673 = vmatpush1.msra.mxu0 0.0
    %1674 = vmatprep.subr.mxu0 0.0
    %1675 = vmatpush1.msra.mxu0 0.0
    %1676 = vmatprep.subr.mxu0 0.0
    %1677 = vmatpush1.msra.mxu0 0.0
    %1678 = vmatprep.subr.mxu0 0.0
    %1679 = vmatpush1.msra.mxu0 0.0
    %1680 = vmatprep.subr.mxu0 0.0
    %1681 = vmatpush1.msra.mxu0 0.0
    %1682 = vmatprep.subr.mxu0 0.0
    %1683 = vmatpush1.msra.mxu0 0.0
    %1684 = vmatprep.subr.mxu0 0.0
    %1685 = vmatpush1.msra.mxu0 0.0
    %1686 = vmatprep.subr.mxu0 0.0
    %1687 = vmatpush1.msra.mxu0 0.0
    %1688 = vmatprep.subr.mxu0 0.0
    %1689 = vmatpush1.msra.mxu0 0.0
    %1690 = vmatprep.subr.mxu0 0.0
    %1691 = vmatpush1.msra.mxu0 0.0
    %1692 = vmatprep.subr.mxu0 0.0
    %1693 = vmatpush1.msra.mxu0 0.0
    %1694 = vmatprep.subr.mxu0 0.0
    %1695 = vmatpush1.msra.mxu0 0.0
    %1696 = vmatprep.subr.mxu0 0.0
    %1697 = vmatpush1.msra.mxu0 0.0
    %1698 = vmatprep.subr.mxu0 0.0
    %1699 = vmatpush1.msra.mxu0 0.0
    %1700 = vmatprep.subr.mxu0 0.0
    %1701 = vmatpush1.msra.mxu0 0.0
    %1702 = vmatprep.subr.mxu0 0.0
    %1703 = vmatpush1.msra.mxu0 0.0
    %1704 = vmatprep.subr.mxu0 0.0
    %1705 = vmatpush1.msra.mxu0 0.0
    %1706 = vmatprep.subr.mxu0 0.0
    %1707 = vmatpush1.msra.mxu0 0.0
    %1708 = vmatprep.subr.mxu0 0.0
    %1709 = vmatpush1.msra.mxu0 0.0
    %1710 = vmatprep.mubr.f32.mxu0 0.0
    %1711 = vmatmul.mubr.f32.gmra.mrb[0].mxu0 %v1557
    %v1712 = vpop.f32.mrb[0].mxu0
    %v1713 = vadd.f32 %v1645, %v1712
    %v1714 = vpop.f32.mrb[0].mxu0
    %1715 = vmatprep.mubr.f32.mxu0 0.0
    %1716 = vmatmul.mubr.f32.gmra.mrb[0].mxu0 %v1560
    %v1717 = vpop.f32.mrb[0].mxu0
    %v1718 = vadd.f32 %v1645, %v1717
    %v1719 = vpop.f32.mrb[0].mxu0
    %1720 = vdwg.mxu0
    %v1721 = vld [vmem:[%s4 + $0x180] sm:$0xff]
    %v1722 = vld [vmem:[%s4 + $0x188] sm:$0xff]
    %v1723 = vld [vmem:[%s4 + $0x190] sm:$0xff]
    %v1724 = vld [vmem:[%s4 + $0x198] sm:$0xff]
    %v1725 = vld [vmem:[%s5 + $0x12] sm:$0x1]
    %v1726 = vlaneseq
    %v1727 = vshrl.u32 %v1726, 7
    %v1728 = vsub.s32 0, %v1727
    %v1729 = vrot.slane %v1725, %v1728
    %1730 = vmatprep.subr.mxu0 0.0
    %1731 = vmatpush1.msra.mxu0 %v1721
    %1732 = vmatprep.subr.mxu0 0.0
    %1733 = vmatpush1.msra.mxu0 %v1722
    %1734 = vmatprep.subr.mxu0 0.0
    %1735 = vmatpush1.msra.mxu0 %v1723
    %1736 = vmatprep.subr.mxu0 0.0
    %1737 = vmatpush1.msra.mxu0 %v1724
    %1738 = vmatprep.subr.mxu0 0.0
    %1739 = vmatpush1.msra.mxu0 0.0
    %1740 = vmatprep.subr.mxu0 0.0
    %1741 = vmatpush1.msra.mxu0 0.0
    %1742 = vmatprep.subr.mxu0 0.0
    %1743 = vmatpush1.msra.mxu0 0.0
    %1744 = vmatprep.subr.mxu0 0.0
    %1745 = vmatpush1.msra.mxu0 0.0
    %1746 = vmatprep.subr.mxu0 0.0
    %1747 = vmatpush1.msra.mxu0 0.0
    %1748 = vmatprep.subr.mxu0 0.0
    %1749 = vmatpush1.msra.mxu0 0.0
    %1750 = vmatprep.subr.mxu0 0.0
    %1751 = vmatpush1.msra.mxu0 0.0
    %1752 = vmatprep.subr.mxu0 0.0
    %1753 = vmatpush1.msra.mxu0 0.0
    %1754 = vmatprep.subr.mxu0 0.0
    %1755 = vmatpush1.msra.mxu0 0.0
    %1756 = vmatprep.subr.mxu0 0.0
    %1757 = vmatpush1.msra.mxu0 0.0
    %1758 = vmatprep.subr.mxu0 0.0
    %1759 = vmatpush1.msra.mxu0 0.0
    %1760 = vmatprep.subr.mxu0 0.0
    %1761 = vmatpush1.msra.mxu0 0.0
    %1762 = vmatprep.subr.mxu0 0.0
    %1763 = vmatpush1.msra.mxu0 0.0
    %1764 = vmatprep.subr.mxu0 0.0
    %1765 = vmatpush1.msra.mxu0 0.0
    %1766 = vmatprep.subr.mxu0 0.0
    %1767 = vmatpush1.msra.mxu0 0.0
    %1768 = vmatprep.subr.mxu0 0.0
    %1769 = vmatpush1.msra.mxu0 0.0
    %1770 = vmatprep.subr.mxu0 0.0
    %1771 = vmatpush1.msra.mxu0 0.0
    %1772 = vmatprep.subr.mxu0 0.0
    %1773 = vmatpush1.msra.mxu0 0.0
    %1774 = vmatprep.subr.mxu0 0.0
    %1775 = vmatpush1.msra.mxu0 0.0
    %1776 = vmatprep.subr.mxu0 0.0
    %1777 = vmatpush1.msra.mxu0 0.0
    %1778 = vmatprep.subr.mxu0 0.0
    %1779 = vmatpush1.msra.mxu0 0.0
    %1780 = vmatprep.subr.mxu0 0.0
    %1781 = vmatpush1.msra.mxu0 0.0
    %1782 = vmatprep.subr.mxu0 0.0
    %1783 = vmatpush1.msra.mxu0 0.0
    %1784 = vmatprep.subr.mxu0 0.0
    %1785 = vmatpush1.msra.mxu0 0.0
    %1786 = vmatprep.subr.mxu0 0.0
    %1787 = vmatpush1.msra.mxu0 0.0
    %1788 = vmatprep.subr.mxu0 0.0
    %1789 = vmatpush1.msra.mxu0 0.0
    %1790 = vmatprep.subr.mxu0 0.0
    %1791 = vmatpush1.msra.mxu0 0.0
    %1792 = vmatprep.subr.mxu0 0.0
    %1793 = vmatpush1.msra.mxu0 0.0
    %1794 = vmatprep.mubr.f32.mxu0 0.0
    %1795 = vmatmul.mubr.f32.gmra.mrb[0].mxu0 %v1557
    %v1796 = vpop.f32.mrb[0].mxu0
    %v1797 = vadd.f32 %v1729, %v1796
    %v1798 = vpop.f32.mrb[0].mxu0
    %1799 = vmatprep.mubr.f32.mxu0 0.0
    %1800 = vmatmul.mubr.f32.gmra.mrb[0].mxu0 %v1560
    %v1801 = vpop.f32.mrb[0].mxu0
    %v1802 = vadd.f32 %v1729, %v1801
    %v1803 = vpop.f32.mrb[0].mxu0
    %1804 = vdwg.mxu0
    %v1806 = vsel %vm445, %v1629, 0
    %v1809 = vsel %vm445, %v1634, 0
    %v1812 = vsel %vm445, %v1713, 0
    %v1815 = vsel %vm445, %v1718, 0
    %1817 = vmatprep.subr.mxu0 0.0
    %1818 = vmatpush1.xpose.msra.mxu0 %v1812
    %1819 = vmatprep.subr.mxu0 0.0
    %1820 = vmatpush1.xpose.msra.mxu0 %v1815
    %1821 = vmatprep.subr.mxu0 0.0
    %1822 = vmatpush1.xpose.msra.mxu0 0.0
    %1823 = vmatprep.subr.mxu0 0.0
    %1824 = vmatpush1.xpose.msra.mxu0 0.0
    %1825 = vmatprep.subr.mxu0 0.0
    %1826 = vmatpush1.xpose.msra.mxu0 0.0
    %1827 = vmatprep.subr.mxu0 0.0
    %1828 = vmatpush1.xpose.msra.mxu0 0.0
    %1829 = vmatprep.subr.mxu0 0.0
    %1830 = vmatpush1.xpose.msra.mxu0 0.0
    %1831 = vmatprep.subr.mxu0 0.0
    %1832 = vmatpush1.xpose.msra.mxu0 0.0
    %1833 = vmatprep.subr.mxu0 0.0
    %1834 = vmatpush1.xpose.msra.mxu0 0.0
    %1835 = vmatprep.subr.mxu0 0.0
    %1836 = vmatpush1.xpose.msra.mxu0 0.0
    %1837 = vmatprep.subr.mxu0 0.0
    %1838 = vmatpush1.xpose.msra.mxu0 0.0
    %1839 = vmatprep.subr.mxu0 0.0
    %1840 = vmatpush1.xpose.msra.mxu0 0.0
    %1841 = vmatprep.subr.mxu0 0.0
    %1842 = vmatpush1.xpose.msra.mxu0 0.0
    %1843 = vmatprep.subr.mxu0 0.0
    %1844 = vmatpush1.xpose.msra.mxu0 0.0
    %1845 = vmatprep.subr.mxu0 0.0
    %1846 = vmatpush1.xpose.msra.mxu0 0.0
    %1847 = vmatprep.subr.mxu0 0.0
    %1848 = vmatpush1.xpose.msra.mxu0 0.0
    %1849 = vmatprep.subr.mxu0 0.0
    %1850 = vmatpush1.xpose.msra.mxu0 0.0
    %1851 = vmatprep.subr.mxu0 0.0
    %1852 = vmatpush1.xpose.msra.mxu0 0.0
    %1853 = vmatprep.subr.mxu0 0.0
    %1854 = vmatpush1.xpose.msra.mxu0 0.0
    %1855 = vmatprep.subr.mxu0 0.0
    %1856 = vmatpush1.xpose.msra.mxu0 0.0
    %1857 = vmatprep.subr.mxu0 0.0
    %1858 = vmatpush1.xpose.msra.mxu0 0.0
    %1859 = vmatprep.subr.mxu0 0.0
    %1860 = vmatpush1.xpose.msra.mxu0 0.0
    %1861 = vmatprep.subr.mxu0 0.0
    %1862 = vmatpush1.xpose.msra.mxu0 0.0
    %1863 = vmatprep.subr.mxu0 0.0
    %1864 = vmatpush1.xpose.msra.mxu0 0.0
    %1865 = vmatprep.subr.mxu0 0.0
    %1866 = vmatpush1.xpose.msra.mxu0 0.0
    %1867 = vmatprep.subr.mxu0 0.0
    %1868 = vmatpush1.xpose.msra.mxu0 0.0
    %1869 = vmatprep.subr.mxu0 0.0
    %1870 = vmatpush1.xpose.msra.mxu0 0.0
    %1871 = vmatprep.subr.mxu0 0.0
    %1872 = vmatpush1.xpose.msra.mxu0 0.0
    %1873 = vmatprep.subr.mxu0 0.0
    %1874 = vmatpush1.xpose.msra.mxu0 0.0
    %1875 = vmatprep.subr.mxu0 0.0
    %1876 = vmatpush1.xpose.msra.mxu0 0.0
    %1877 = vmatprep.subr.mxu0 0.0
    %1878 = vmatpush1.xpose.msra.mxu0 0.0
    %1879 = vmatprep.subr.mxu0 0.0
    %1880 = vmatpush1.xpose.msra.mxu0 0.0
    %1881 = vmatprep.mubr.f32.mxu0 0.0
    %1882 = vmatmul.mubr.f32.gmra.mrb[0].mxu0 %v1806
    %v1883 = vpop.f32.mrb[0].mxu0
    %v1884 = vadd.f32 0.0, %v1883
    %v1885 = vpop.f32.mrb[0].mxu0
    %1886 = vmatprep.mubr.f32.mxu0 0.0
    %1887 = vmatmul.mubr.f32.gmra.mrb[0].mxu0 %v1809
    %v1888 = vpop.f32.mrb[0].mxu0
    %v1889 = vadd.f32 0.0, %v1888
    %v1890 = vpop.f32.mrb[0].mxu0
    %1891 = vdwg.mxu0
    %v1892 = vmul.f32 %v1884, 0.25
    %v1893 = vmul.f32 %v1889, 0.25
    %v1894 = vadd.f32 %v1892, %v185
    %v1895 = vadd.f32 %v1893, %v186
    %v1896 = vld [vmem:[%s4 + $0x1a0] sm:$0xff]
    %v1897 = vld [vmem:[%s4 + $0x1a8] sm:$0xff]
    %v1898 = vld [vmem:[%s4 + $0x1b0] sm:$0xff]
    %v1899 = vld [vmem:[%s4 + $0x1b8] sm:$0xff]
    %v1900 = vld [vmem:[%s5 + $0x13] sm:$0x1]
    %v1901 = vlaneseq
    %v1902 = vshrl.u32 %v1901, 7
    %v1903 = vsub.s32 0, %v1902
    %v1904 = vrot.slane %v1900, %v1903
    %1905 = vmatprep.subr.mxu0 0.0
    %1906 = vmatpush1.msra.mxu0 %v1896
    %1907 = vmatprep.subr.mxu0 0.0
    %1908 = vmatpush1.msra.mxu0 %v1897
    %1909 = vmatprep.subr.mxu0 0.0
    %1910 = vmatpush1.msra.mxu0 %v1898
    %1911 = vmatprep.subr.mxu0 0.0
    %1912 = vmatpush1.msra.mxu0 %v1899
    %1913 = vmatprep.subr.mxu0 0.0
    %1914 = vmatpush1.msra.mxu0 0.0
    %1915 = vmatprep.subr.mxu0 0.0
    %1916 = vmatpush1.msra.mxu0 0.0
    %1917 = vmatprep.subr.mxu0 0.0
    %1918 = vmatpush1.msra.mxu0 0.0
    %1919 = vmatprep.subr.mxu0 0.0
    %1920 = vmatpush1.msra.mxu0 0.0
    %1921 = vmatprep.subr.mxu0 0.0
    %1922 = vmatpush1.msra.mxu0 0.0
    %1923 = vmatprep.subr.mxu0 0.0
    %1924 = vmatpush1.msra.mxu0 0.0
    %1925 = vmatprep.subr.mxu0 0.0
    %1926 = vmatpush1.msra.mxu0 0.0
    %1927 = vmatprep.subr.mxu0 0.0
    %1928 = vmatpush1.msra.mxu0 0.0
    %1929 = vmatprep.subr.mxu0 0.0
    %1930 = vmatpush1.msra.mxu0 0.0
    %1931 = vmatprep.subr.mxu0 0.0
    %1932 = vmatpush1.msra.mxu0 0.0
    %1933 = vmatprep.subr.mxu0 0.0
    %1934 = vmatpush1.msra.mxu0 0.0
    %1935 = vmatprep.subr.mxu0 0.0
    %1936 = vmatpush1.msra.mxu0 0.0
    %1937 = vmatprep.subr.mxu0 0.0
    %1938 = vmatpush1.msra.mxu0 0.0
    %1939 = vmatprep.subr.mxu0 0.0
    %1940 = vmatpush1.msra.mxu0 0.0
    %1941 = vmatprep.subr.mxu0 0.0
    %1942 = vmatpush1.msra.mxu0 0.0
    %1943 = vmatprep.subr.mxu0 0.0
    %1944 = vmatpush1.msra.mxu0 0.0
    %1945 = vmatprep.subr.mxu0 0.0
    %1946 = vmatpush1.msra.mxu0 0.0
    %1947 = vmatprep.subr.mxu0 0.0
    %1948 = vmatpush1.msra.mxu0 0.0
    %1949 = vmatprep.subr.mxu0 0.0
    %1950 = vmatpush1.msra.mxu0 0.0
    %1951 = vmatprep.subr.mxu0 0.0
    %1952 = vmatpush1.msra.mxu0 0.0
    %1953 = vmatprep.subr.mxu0 0.0
    %1954 = vmatpush1.msra.mxu0 0.0
    %1955 = vmatprep.subr.mxu0 0.0
    %1956 = vmatpush1.msra.mxu0 0.0
    %1957 = vmatprep.subr.mxu0 0.0
    %1958 = vmatpush1.msra.mxu0 0.0
    %1959 = vmatprep.subr.mxu0 0.0
    %1960 = vmatpush1.msra.mxu0 0.0
    %1961 = vmatprep.subr.mxu0 0.0
    %1962 = vmatpush1.msra.mxu0 0.0
    %1963 = vmatprep.subr.mxu0 0.0
    %1964 = vmatpush1.msra.mxu0 0.0
    %1965 = vmatprep.subr.mxu0 0.0
    %1966 = vmatpush1.msra.mxu0 0.0
    %1967 = vmatprep.subr.mxu0 0.0
    %1968 = vmatpush1.msra.mxu0 0.0
    %1969 = vmatprep.mubr.f32.mxu0 0.0
    %1970 = vmatmul.mubr.f32.gmra.mrb[0].mxu0 %v1557
    %v1971 = vpop.f32.mrb[0].mxu0
    %v1972 = vadd.f32 %v1904, %v1971
    %v1973 = vpop.f32.mrb[0].mxu0
    %1974 = vmatprep.mubr.f32.mxu0 0.0
    %1975 = vmatmul.mubr.f32.gmra.mrb[0].mxu0 %v1560
    %v1976 = vpop.f32.mrb[0].mxu0
    %v1977 = vadd.f32 %v1904, %v1976
    %v1978 = vpop.f32.mrb[0].mxu0
    %1979 = vdwg.mxu0
    %v1980 = vld [vmem:[%s4 + $0x1c0] sm:$0xff]
    %v1981 = vld [vmem:[%s4 + $0x1c8] sm:$0xff]
    %v1982 = vld [vmem:[%s4 + $0x1d0] sm:$0xff]
    %v1983 = vld [vmem:[%s4 + $0x1d8] sm:$0xff]
    %v1984 = vld [vmem:[%s5 + $0x14] sm:$0x1]
    %v1985 = vlaneseq
    %v1986 = vshrl.u32 %v1985, 7
    %v1987 = vsub.s32 0, %v1986
    %v1988 = vrot.slane %v1984, %v1987
    %1989 = vmatprep.subr.mxu0 0.0
    %1990 = vmatpush1.msra.mxu0 %v1980
    %1991 = vmatprep.subr.mxu0 0.0
    %1992 = vmatpush1.msra.mxu0 %v1981
    %1993 = vmatprep.subr.mxu0 0.0
    %1994 = vmatpush1.msra.mxu0 %v1982
    %1995 = vmatprep.subr.mxu0 0.0
    %1996 = vmatpush1.msra.mxu0 %v1983
    %1997 = vmatprep.subr.mxu0 0.0
    %1998 = vmatpush1.msra.mxu0 0.0
    %1999 = vmatprep.subr.mxu0 0.0
    %2000 = vmatpush1.msra.mxu0 0.0
    %2001 = vmatprep.subr.mxu0 0.0
    %2002 = vmatpush1.msra.mxu0 0.0
    %2003 = vmatprep.subr.mxu0 0.0
    %2004 = vmatpush1.msra.mxu0 0.0
    %2005 = vmatprep.subr.mxu0 0.0
    %2006 = vmatpush1.msra.mxu0 0.0
    %2007 = vmatprep.subr.mxu0 0.0
    %2008 = vmatpush1.msra.mxu0 0.0
    %2009 = vmatprep.subr.mxu0 0.0
    %2010 = vmatpush1.msra.mxu0 0.0
    %2011 = vmatprep.subr.mxu0 0.0
    %2012 = vmatpush1.msra.mxu0 0.0
    %2013 = vmatprep.subr.mxu0 0.0
    %2014 = vmatpush1.msra.mxu0 0.0
    %2015 = vmatprep.subr.mxu0 0.0
    %2016 = vmatpush1.msra.mxu0 0.0
    %2017 = vmatprep.subr.mxu0 0.0
    %2018 = vmatpush1.msra.mxu0 0.0
    %2019 = vmatprep.subr.mxu0 0.0
    %2020 = vmatpush1.msra.mxu0 0.0
    %2021 = vmatprep.subr.mxu0 0.0
    %2022 = vmatpush1.msra.mxu0 0.0
    %2023 = vmatprep.subr.mxu0 0.0
    %2024 = vmatpush1.msra.mxu0 0.0
    %2025 = vmatprep.subr.mxu0 0.0
    %2026 = vmatpush1.msra.mxu0 0.0
    %2027 = vmatprep.subr.mxu0 0.0
    %2028 = vmatpush1.msra.mxu0 0.0
    %2029 = vmatprep.subr.mxu0 0.0
    %2030 = vmatpush1.msra.mxu0 0.0
    %2031 = vmatprep.subr.mxu0 0.0
    %2032 = vmatpush1.msra.mxu0 0.0
    %2033 = vmatprep.subr.mxu0 0.0
    %2034 = vmatpush1.msra.mxu0 0.0
    %2035 = vmatprep.subr.mxu0 0.0
    %2036 = vmatpush1.msra.mxu0 0.0
    %2037 = vmatprep.subr.mxu0 0.0
    %2038 = vmatpush1.msra.mxu0 0.0
    %2039 = vmatprep.subr.mxu0 0.0
    %2040 = vmatpush1.msra.mxu0 0.0
    %2041 = vmatprep.subr.mxu0 0.0
    %2042 = vmatpush1.msra.mxu0 0.0
    %2043 = vmatprep.subr.mxu0 0.0
    %2044 = vmatpush1.msra.mxu0 0.0
    %2045 = vmatprep.subr.mxu0 0.0
    %2046 = vmatpush1.msra.mxu0 0.0
    %2047 = vmatprep.subr.mxu0 0.0
    %2048 = vmatpush1.msra.mxu0 0.0
    %2049 = vmatprep.subr.mxu0 0.0
    %2050 = vmatpush1.msra.mxu0 0.0
    %2051 = vmatprep.subr.mxu0 0.0
    %2052 = vmatpush1.msra.mxu0 0.0
    %2053 = vmatprep.mubr.f32.mxu0 0.0
    %2054 = vmatmul.mubr.f32.gmra.mrb[0].mxu0 %v1557
    %v2055 = vpop.f32.mrb[0].mxu0
    %v2056 = vadd.f32 %v1988, %v2055
    %v2057 = vpop.f32.mrb[0].mxu0
    %2058 = vmatprep.mubr.f32.mxu0 0.0
    %2059 = vmatmul.mubr.f32.gmra.mrb[0].mxu0 %v1560
    %v2060 = vpop.f32.mrb[0].mxu0
    %v2061 = vadd.f32 %v1988, %v2060
    %v2062 = vpop.f32.mrb[0].mxu0
    %2063 = vdwg.mxu0
    %v2064 = vld [vmem:[%s4 + $0x1e0] sm:$0xff]
    %v2065 = vld [vmem:[%s4 + $0x1e8] sm:$0xff]
    %v2066 = vld [vmem:[%s4 + $0x1f0] sm:$0xff]
    %v2067 = vld [vmem:[%s4 + $0x1f8] sm:$0xff]
    %v2068 = vld [vmem:[%s5 + $0x15] sm:$0x1]
    %v2069 = vlaneseq
    %v2070 = vshrl.u32 %v2069, 7
    %v2071 = vsub.s32 0, %v2070
    %v2072 = vrot.slane %v2068, %v2071
    %2073 = vmatprep.subr.mxu0 0.0
    %2074 = vmatpush1.msra.mxu0 %v2064
    %2075 = vmatprep.subr.mxu0 0.0
    %2076 = vmatpush1.msra.mxu0 %v2065
    %2077 = vmatprep.subr.mxu0 0.0
    %2078 = vmatpush1.msra.mxu0 %v2066
    %2079 = vmatprep.subr.mxu0 0.0
    %2080 = vmatpush1.msra.mxu0 %v2067
    %2081 = vmatprep.subr.mxu0 0.0
    %2082 = vmatpush1.msra.mxu0 0.0
    %2083 = vmatprep.subr.mxu0 0.0
    %2084 = vmatpush1.msra.mxu0 0.0
    %2085 = vmatprep.subr.mxu0 0.0
    %2086 = vmatpush1.msra.mxu0 0.0
    %2087 = vmatprep.subr.mxu0 0.0
    %2088 = vmatpush1.msra.mxu0 0.0
    %2089 = vmatprep.subr.mxu0 0.0
    %2090 = vmatpush1.msra.mxu0 0.0
    %2091 = vmatprep.subr.mxu0 0.0
    %2092 = vmatpush1.msra.mxu0 0.0
    %2093 = vmatprep.subr.mxu0 0.0
    %2094 = vmatpush1.msra.mxu0 0.0
    %2095 = vmatprep.subr.mxu0 0.0
    %2096 = vmatpush1.msra.mxu0 0.0
    %2097 = vmatprep.subr.mxu0 0.0
    %2098 = vmatpush1.msra.mxu0 0.0
    %2099 = vmatprep.subr.mxu0 0.0
    %2100 = vmatpush1.msra.mxu0 0.0
    %2101 = vmatprep.subr.mxu0 0.0
    %2102 = vmatpush1.msra.mxu0 0.0
    %2103 = vmatprep.subr.mxu0 0.0
    %2104 = vmatpush1.msra.mxu0 0.0
    %2105 = vmatprep.subr.mxu0 0.0
    %2106 = vmatpush1.msra.mxu0 0.0
    %2107 = vmatprep.subr.mxu0 0.0
    %2108 = vmatpush1.msra.mxu0 0.0
    %2109 = vmatprep.subr.mxu0 0.0
    %2110 = vmatpush1.msra.mxu0 0.0
    %2111 = vmatprep.subr.mxu0 0.0
    %2112 = vmatpush1.msra.mxu0 0.0
    %2113 = vmatprep.subr.mxu0 0.0
    %2114 = vmatpush1.msra.mxu0 0.0
    %2115 = vmatprep.subr.mxu0 0.0
    %2116 = vmatpush1.msra.mxu0 0.0
    %2117 = vmatprep.subr.mxu0 0.0
    %2118 = vmatpush1.msra.mxu0 0.0
    %2119 = vmatprep.subr.mxu0 0.0
    %2120 = vmatpush1.msra.mxu0 0.0
    %2121 = vmatprep.subr.mxu0 0.0
    %2122 = vmatpush1.msra.mxu0 0.0
    %2123 = vmatprep.subr.mxu0 0.0
    %2124 = vmatpush1.msra.mxu0 0.0
    %2125 = vmatprep.subr.mxu0 0.0
    %2126 = vmatpush1.msra.mxu0 0.0
    %2127 = vmatprep.subr.mxu0 0.0
    %2128 = vmatpush1.msra.mxu0 0.0
    %2129 = vmatprep.subr.mxu0 0.0
    %2130 = vmatpush1.msra.mxu0 0.0
    %2131 = vmatprep.subr.mxu0 0.0
    %2132 = vmatpush1.msra.mxu0 0.0
    %2133 = vmatprep.subr.mxu0 0.0
    %2134 = vmatpush1.msra.mxu0 0.0
    %2135 = vmatprep.subr.mxu0 0.0
    %2136 = vmatpush1.msra.mxu0 0.0
    %2137 = vmatprep.mubr.f32.mxu0 0.0
    %2138 = vmatmul.mubr.f32.gmra.mrb[0].mxu0 %v1557
    %v2139 = vpop.f32.mrb[0].mxu0
    %v2140 = vadd.f32 %v2072, %v2139
    %v2141 = vpop.f32.mrb[0].mxu0
    %2142 = vmatprep.mubr.f32.mxu0 0.0
    %2143 = vmatmul.mubr.f32.gmra.mrb[0].mxu0 %v1560
    %v2144 = vpop.f32.mrb[0].mxu0
    %v2145 = vadd.f32 %v2072, %v2144
    %v2146 = vpop.f32.mrb[0].mxu0
    %2147 = vdwg.mxu0
    %v2149 = vsel %vm445, %v1972, 0
    %v2152 = vsel %vm445, %v1977, 0
    %v2155 = vsel %vm445, %v2056, 0
    %v2158 = vsel %vm445, %v2061, 0
    %2160 = vmatprep.subr.mxu0 0.0
    %2161 = vmatpush1.xpose.msra.mxu0 %v2155
    %2162 = vmatprep.subr.mxu0 0.0
    %2163 = vmatpush1.xpose.msra.mxu0 %v2158
    %2164 = vmatprep.subr.mxu0 0.0
    %2165 = vmatpush1.xpose.msra.mxu0 0.0
    %2166 = vmatprep.subr.mxu0 0.0
    %2167 = vmatpush1.xpose.msra.mxu0 0.0
    %2168 = vmatprep.subr.mxu0 0.0
    %2169 = vmatpush1.xpose.msra.mxu0 0.0
    %2170 = vmatprep.subr.mxu0 0.0
    %2171 = vmatpush1.xpose.msra.mxu0 0.0
    %2172 = vmatprep.subr.mxu0 0.0
    %2173 = vmatpush1.xpose.msra.mxu0 0.0
    %2174 = vmatprep.subr.mxu0 0.0
    %2175 = vmatpush1.xpose.msra.mxu0 0.0
    %2176 = vmatprep.subr.mxu0 0.0
    %2177 = vmatpush1.xpose.msra.mxu0 0.0
    %2178 = vmatprep.subr.mxu0 0.0
    %2179 = vmatpush1.xpose.msra.mxu0 0.0
    %2180 = vmatprep.subr.mxu0 0.0
    %2181 = vmatpush1.xpose.msra.mxu0 0.0
    %2182 = vmatprep.subr.mxu0 0.0
    %2183 = vmatpush1.xpose.msra.mxu0 0.0
    %2184 = vmatprep.subr.mxu0 0.0
    %2185 = vmatpush1.xpose.msra.mxu0 0.0
    %2186 = vmatprep.subr.mxu0 0.0
    %2187 = vmatpush1.xpose.msra.mxu0 0.0
    %2188 = vmatprep.subr.mxu0 0.0
    %2189 = vmatpush1.xpose.msra.mxu0 0.0
    %2190 = vmatprep.subr.mxu0 0.0
    %2191 = vmatpush1.xpose.msra.mxu0 0.0
    %2192 = vmatprep.subr.mxu0 0.0
    %2193 = vmatpush1.xpose.msra.mxu0 0.0
    %2194 = vmatprep.subr.mxu0 0.0
    %2195 = vmatpush1.xpose.msra.mxu0 0.0
    %2196 = vmatprep.subr.mxu0 0.0
    %2197 = vmatpush1.xpose.msra.mxu0 0.0
    %2198 = vmatprep.subr.mxu0 0.0
    %2199 = vmatpush1.xpose.msra.mxu0 0.0
    %2200 = vmatprep.subr.mxu0 0.0
    %2201 = vmatpush1.xpose.msra.mxu0 0.0
    %2202 = vmatprep.subr.mxu0 0.0
    %2203 = vmatpush1.xpose.msra.mxu0 0.0
    %2204 = vmatprep.subr.mxu0 0.0
    %2205 = vmatpush1.xpose.msra.mxu0 0.0
    %2206 = vmatprep.subr.mxu0 0.0
    %2207 = vmatpush1.xpose.msra.mxu0 0.0
    %2208 = vmatprep.subr.mxu0 0.0
    %2209 = vmatpush1.xpose.msra.mxu0 0.0
    %2210 = vmatprep.subr.mxu0 0.0
    %2211 = vmatpush1.xpose.msra.mxu0 0.0
    %2212 = vmatprep.subr.mxu0 0.0
    %2213 = vmatpush1.xpose.msra.mxu0 0.0
    %2214 = vmatprep.subr.mxu0 0.0
    %2215 = vmatpush1.xpose.msra.mxu0 0.0
    %2216 = vmatprep.subr.mxu0 0.0
    %2217 = vmatpush1.xpose.msra.mxu0 0.0
    %2218 = vmatprep.subr.mxu0 0.0
    %2219 = vmatpush1.xpose.msra.mxu0 0.0
    %2220 = vmatprep.subr.mxu0 0.0
    %2221 = vmatpush1.xpose.msra.mxu0 0.0
    %2222 = vmatprep.subr.mxu0 0.0
    %2223 = vmatpush1.xpose.msra.mxu0 0.0
    %2224 = vmatprep.mubr.f32.mxu0 0.0
    %2225 = vmatmul.mubr.f32.gmra.mrb[0].mxu0 %v2149
    %v2226 = vpop.f32.mrb[0].mxu0
    %v2227 = vadd.f32 0.0, %v2226
    %v2228 = vpop.f32.mrb[0].mxu0
    %2229 = vmatprep.mubr.f32.mxu0 0.0
    %2230 = vmatmul.mubr.f32.gmra.mrb[0].mxu0 %v2152
    %v2231 = vpop.f32.mrb[0].mxu0
    %v2232 = vadd.f32 0.0, %v2231
    %v2233 = vpop.f32.mrb[0].mxu0
    %2234 = vdwg.mxu0
    %v2235 = vmul.f32 %v2227, 0.25
    %v2236 = vmul.f32 %v2232, 0.25
    %v2237 = vadd.f32 %v2235, %v185
    %v2238 = vadd.f32 %v2236, %v186
    %v2239 = vsel %vm445, %v1894, -inf
    %2240 = vmax.xlane.f32.xlu0 %v2239
    %v2241 = vpop.xlane.xlu0 %2240
    %v2242 = vsel %vm445, %v1895, -inf
    %2243 = vmax.xlane.f32.xlu0 %v2242
    %v2244 = vpop.xlane.xlu0 %2243
    %v2245 = vsel %vm445, %v2237, -inf
    %2246 = vmax.xlane.f32.xlu0 %v2245
    %v2247 = vpop.xlane.xlu0 %2246
    %v2248 = vsel %vm445, %v2238, -inf
    %2249 = vmax.xlane.f32.xlu0 %v2248
    %v2250 = vpop.xlane.xlu0 %2249
    %v2251 = vsub.f32 %v1894, %v2241
    %v2252 = vsub.f32 %v1895, %v2244
    %v2253 = vsub.f32 %v2237, %v2247
    %v2254 = vsub.f32 %v2238, %v2250
    %v2255 = vmul.f32 %v2251, 1.442695
    %v2256 = vpow.pop %v2255
    %v2257 = vmul.f32 %v2252, 1.442695
    %v2258 = vpow.pop %v2257
    %v2259 = vmul.f32 %v2253, 1.442695
    %v2260 = vpow.pop %v2259
    %v2261 = vmul.f32 %v2254, 1.442695
    %v2262 = vpow.pop %v2261
    %v2263 = vsel %vm445, %v2256, 0.0
    %2264 = vadd.xlane.f32.xlu0 %v2263
    %v2265 = vpop.xlane.xlu0 %2264
    %v2266 = vsel %vm445, %v2258, 0.0
    %2267 = vadd.xlane.f32.xlu0 %v2266
    %v2268 = vpop.xlane.xlu0 %2267
    %v2269 = vsel %vm445, %v2260, 0.0
    %2270 = vadd.xlane.f32.xlu0 %v2269
    %v2271 = vpop.xlane.xlu0 %2270
    %v2272 = vsel %vm445, %v2262, 0.0
    %2273 = vadd.xlane.f32.xlu0 %v2272
    %v2274 = vpop.xlane.xlu0 %2273
    %v2275 = vrcp.pop %v2265
    %v2276 = vmul.f32 %v2256, %v2275
    %v2277 = vrcp.pop %v2268
    %v2278 = vmul.f32 %v2258, %v2277
    %v2279 = vrcp.pop %v2271
    %v2280 = vmul.f32 %v2260, %v2279
    %v2281 = vrcp.pop %v2274
    %v2282 = vmul.f32 %v2262, %v2281
    %v2283 = vld [vmem:[%s5 + $0x16] sm:$0x1]
    %v2285 = vsel %vm445, %v2276, 0
    %v2288 = vsel %vm445, %v2278, 0
    %2290 = vmatprep.subr.mxu0 0.0
    %2291 = vmatpush1.msra.mxu0 %v1797
    %2292 = vmatprep.subr.mxu0 0.0
    %2293 = vmatpush1.msra.mxu0 %v1802
    %2294 = vmatprep.subr.mxu0 0.0
    %2295 = vmatpush1.msra.mxu0 0.0
    %2296 = vmatprep.subr.mxu0 0.0
    %2297 = vmatpush1.msra.mxu0 0.0
    %2298 = vmatprep.subr.mxu0 0.0
    %2299 = vmatpush1.msra.mxu0 0.0
    %2300 = vmatprep.subr.mxu0 0.0
    %2301 = vmatpush1.msra.mxu0 0.0
    %2302 = vmatprep.subr.mxu0 0.0
    %2303 = vmatpush1.msra.mxu0 0.0
    %2304 = vmatprep.subr.mxu0 0.0
    %2305 = vmatpush1.msra.mxu0 0.0
    %2306 = vmatprep.subr.mxu0 0.0
    %2307 = vmatpush1.msra.mxu0 0.0
    %2308 = vmatprep.subr.mxu0 0.0
    %2309 = vmatpush1.msra.mxu0 0.0
    %2310 = vmatprep.subr.mxu0 0.0
    %2311 = vmatpush1.msra.mxu0 0.0
    %2312 = vmatprep.subr.mxu0 0.0
    %2313 = vmatpush1.msra.mxu0 0.0
    %2314 = vmatprep.subr.mxu0 0.0
    %2315 = vmatpush1.msra.mxu0 0.0
    %2316 = vmatprep.subr.mxu0 0.0
    %2317 = vmatpush1.msra.mxu0 0.0
    %2318 = vmatprep.subr.mxu0 0.0
    %2319 = vmatpush1.msra.mxu0 0.0
    %2320 = vmatprep.subr.mxu0 0.0
    %2321 = vmatpush1.msra.mxu0 0.0
    %2322 = vmatprep.subr.mxu0 0.0
    %2323 = vmatpush1.msra.mxu0 0.0
    %2324 = vmatprep.subr.mxu0 0.0
    %2325 = vmatpush1.msra.mxu0 0.0
    %2326 = vmatprep.subr.mxu0 0.0
    %2327 = vmatpush1.msra.mxu0 0.0
    %2328 = vmatprep.subr.mxu0 0.0
    %2329 = vmatpush1.msra.mxu0 0.0
    %2330 = vmatprep.subr.mxu0 0.0
    %2331 = vmatpush1.msra.mxu0 0.0
    %2332 = vmatprep.subr.mxu0 0.0
    %2333 = vmatpush1.msra.mxu0 0.0
    %2334 = vmatprep.subr.mxu0 0.0
    %2335 = vmatpush1.msra.mxu0 0.0
    %2336 = vmatprep.subr.mxu0 0.0
    %2337 = vmatpush1.msra.mxu0 0.0
    %2338 = vmatprep.subr.mxu0 0.0
    %2339 = vmatpush1.msra.mxu0 0.0
    %2340 = vmatprep.subr.mxu0 0.0
    %2341 = vmatpush1.msra.mxu0 0.0
    %2342 = vmatprep.subr.mxu0 0.0
    %2343 = vmatpush1.msra.mxu0 0.0
    %2344 = vmatprep.subr.mxu0 0.0
    %2345 = vmatpush1.msra.mxu0 0.0
    %2346 = vmatprep.subr.mxu0 0.0
    %2347 = vmatpush1.msra.mxu0 0.0
    %2348 = vmatprep.subr.mxu0 0.0
    %2349 = vmatpush1.msra.mxu0 0.0
    %2350 = vmatprep.subr.mxu0 0.0
    %2351 = vmatpush1.msra.mxu0 0.0
    %2352 = vmatprep.subr.mxu0 0.0
    %2353 = vmatpush1.msra.mxu0 0.0
    %2354 = vmatprep.mubr.f32.mxu0 0.0
    %2355 = vmatmul.mubr.f32.gmra.mrb[0].mxu0 %v2285
    %v2356 = vpop.f32.mrb[0].mxu0
    %v2357 = vadd.f32 0.0, %v2356
    %v2358 = vpop.f32.mrb[0].mxu0
    %2359 = vmatprep.mubr.f32.mxu0 0.0
    %2360 = vmatmul.mubr.f32.gmra.mrb[0].mxu0 %v2288
    %v2361 = vpop.f32.mrb[0].mxu0
    %v2362 = vadd.f32 0.0, %v2361
    %v2363 = vpop.f32.mrb[0].mxu0
    %2364 = vdwg.mxu0
    %v2365 = vld [vmem:[%s4 + $0x200] sm:$0xff]
    %v2366 = vld [vmem:[%s4 + $0x208] sm:$0xff]
    %v2368 = vsel %vm445, %v2357, 0
    %v2371 = vsel %vm445, %v2362, 0
    %2373 = vmatprep.subr.mxu0 0.0
    %2374 = vmatpush1.msra.mxu0 %v2365
    %2375 = vmatprep.subr.mxu0 0.0
    %2376 = vmatpush1.msra.mxu0 %v2366
    %2377 = vmatprep.subr.mxu0 0.0
    %2378 = vmatpush1.msra.mxu0 0.0
    %2379 = vmatprep.subr.mxu0 0.0
    %2380 = vmatpush1.msra.mxu0 0.0
    %2381 = vmatprep.subr.mxu0 0.0
    %2382 = vmatpush1.msra.mxu0 0.0
    %2383 = vmatprep.subr.mxu0 0.0
    %2384 = vmatpush1.msra.mxu0 0.0
    %2385 = vmatprep.subr.mxu0 0.0
    %2386 = vmatpush1.msra.mxu0 0.0
    %2387 = vmatprep.subr.mxu0 0.0
    %2388 = vmatpush1.msra.mxu0 0.0
    %2389 = vmatprep.subr.mxu0 0.0
    %2390 = vmatpush1.msra.mxu0 0.0
    %2391 = vmatprep.subr.mxu0 0.0
    %2392 = vmatpush1.msra.mxu0 0.0
    %2393 = vmatprep.subr.mxu0 0.0
    %2394 = vmatpush1.msra.mxu0 0.0
    %2395 = vmatprep.subr.mxu0 0.0
    %2396 = vmatpush1.msra.mxu0 0.0
    %2397 = vmatprep.subr.mxu0 0.0
    %2398 = vmatpush1.msra.mxu0 0.0
    %2399 = vmatprep.subr.mxu0 0.0
    %2400 = vmatpush1.msra.mxu0 0.0
    %2401 = vmatprep.subr.mxu0 0.0
    %2402 = vmatpush1.msra.mxu0 0.0
    %2403 = vmatprep.subr.mxu0 0.0
    %2404 = vmatpush1.msra.mxu0 0.0
    %2405 = vmatprep.subr.mxu0 0.0
    %2406 = vmatpush1.msra.mxu0 0.0
    %2407 = vmatprep.subr.mxu0 0.0
    %2408 = vmatpush1.msra.mxu0 0.0
    %2409 = vmatprep.subr.mxu0 0.0
    %2410 = vmatpush1.msra.mxu0 0.0
    %2411 = vmatprep.subr.mxu0 0.0
    %2412 = vmatpush1.msra.mxu0 0.0
    %2413 = vmatprep.subr.mxu0 0.0
    %2414 = vmatpush1.msra.mxu0 0.0
    %2415 = vmatprep.subr.mxu0 0.0
    %2416 = vmatpush1.msra.mxu0 0.0
    %2417 = vmatprep.subr.mxu0 0.0
    %2418 = vmatpush1.msra.mxu0 0.0
    %2419 = vmatprep.subr.mxu0 0.0
    %2420 = vmatpush1.msra.mxu0 0.0
    %2421 = vmatprep.subr.mxu0 0.0
    %2422 = vmatpush1.msra.mxu0 0.0
    %2423 = vmatprep.subr.mxu0 0.0
    %2424 = vmatpush1.msra.mxu0 0.0
    %2425 = vmatprep.subr.mxu0 0.0
    %2426 = vmatpush1.msra.mxu0 0.0
    %2427 = vmatprep.subr.mxu0 0.0
    %2428 = vmatpush1.msra.mxu0 0.0
    %2429 = vmatprep.subr.mxu0 0.0
    %2430 = vmatpush1.msra.mxu0 0.0
    %2431 = vmatprep.subr.mxu0 0.0
    %2432 = vmatpush1.msra.mxu0 0.0
    %2433 = vmatprep.subr.mxu0 0.0
    %2434 = vmatpush1.msra.mxu0 0.0
    %2435 = vmatprep.subr.mxu0 0.0
    %2436 = vmatpush1.msra.mxu0 0.0
    %2437 = vmatprep.mubr.f32.mxu0 0.0
    %2438 = vmatmul.mubr.f32.gmra.mrb[0].mxu0 %v2368
    %v2439 = vpop.f32.mrb[0].mxu0
    %v2440 = vadd.f32 0.0, %v2439
    %v2441 = vpop.f32.mrb[0].mxu0
    %2442 = vmatprep.mubr.f32.mxu0 0.0
    %2443 = vmatmul.mubr.f32.gmra.mrb[0].mxu0 %v2371
    %v2444 = vpop.f32.mrb[0].mxu0
    %v2445 = vadd.f32 0.0, %v2444
    %v2446 = vpop.f32.mrb[0].mxu0
    %2447 = vdwg.mxu0
    %v2448 = vlaneseq
    %v2449 = vshrl.u32 %v2448, 7
    %v2450 = vsub.s32 0, %v2449
    %v2451 = vrot.slane %v2283, %v2450
    %v2452 = vadd.f32 %v2451, %v2440
    %v2453 = vadd.f32 %v2451, %v2445
    %v2455 = vsel %vm445, %v2280, 0
    %v2458 = vsel %vm445, %v2282, 0
    %2460 = vmatprep.subr.mxu0 0.0
    %2461 = vmatpush1.msra.mxu0 %v2140
    %2462 = vmatprep.subr.mxu0 0.0
    %2463 = vmatpush1.msra.mxu0 %v2145
    %2464 = vmatprep.subr.mxu0 0.0
    %2465 = vmatpush1.msra.mxu0 0.0
    %2466 = vmatprep.subr.mxu0 0.0
    %2467 = vmatpush1.msra.mxu0 0.0
    %2468 = vmatprep.subr.mxu0 0.0
    %2469 = vmatpush1.msra.mxu0 0.0
    %2470 = vmatprep.subr.mxu0 0.0
    %2471 = vmatpush1.msra.mxu0 0.0
    %2472 = vmatprep.subr.mxu0 0.0
    %2473 = vmatpush1.msra.mxu0 0.0
    %2474 = vmatprep.subr.mxu0 0.0
    %2475 = vmatpush1.msra.mxu0 0.0
    %2476 = vmatprep.subr.mxu0 0.0
    %2477 = vmatpush1.msra.mxu0 0.0
    %2478 = vmatprep.subr.mxu0 0.0
    %2479 = vmatpush1.msra.mxu0 0.0
    %2480 = vmatprep.subr.mxu0 0.0
    %2481 = vmatpush1.msra.mxu0 0.0
    %2482 = vmatprep.subr.mxu0 0.0
    %2483 = vmatpush1.msra.mxu0 0.0
    %2484 = vmatprep.subr.mxu0 0.0
    %2485 = vmatpush1.msra.mxu0 0.0
    %2486 = vmatprep.subr.mxu0 0.0
    %2487 = vmatpush1.msra.mxu0 0.0
    %2488 = vmatprep.subr.mxu0 0.0
    %2489 = vmatpush1.msra.mxu0 0.0
    %2490 = vmatprep.subr.mxu0 0.0
    %2491 = vmatpush1.msra.mxu0 0.0
    %2492 = vmatprep.subr.mxu0 0.0
    %2493 = vmatpush1.msra.mxu0 0.0
    %2494 = vmatprep.subr.mxu0 0.0
    %2495 = vmatpush1.msra.mxu0 0.0
    %2496 = vmatprep.subr.mxu0 0.0
    %2497 = vmatpush1.msra.mxu0 0.0
    %2498 = vmatprep.subr.mxu0 0.0
    %2499 = vmatpush1.msra.mxu0 0.0
    %2500 = vmatprep.subr.mxu0 0.0
    %2501 = vmatpush1.msra.mxu0 0.0
    %2502 = vmatprep.subr.mxu0 0.0
    %2503 = vmatpush1.msra.mxu0 0.0
    %2504 = vmatprep.subr.mxu0 0.0
    %2505 = vmatpush1.msra.mxu0 0.0
    %2506 = vmatprep.subr.mxu0 0.0
    %2507 = vmatpush1.msra.mxu0 0.0
    %2508 = vmatprep.subr.mxu0 0.0
    %2509 = vmatpush1.msra.mxu0 0.0
    %2510 = vmatprep.subr.mxu0 0.0
    %2511 = vmatpush1.msra.mxu0 0.0
    %2512 = vmatprep.subr.mxu0 0.0
    %2513 = vmatpush1.msra.mxu0 0.0
    %2514 = vmatprep.subr.mxu0 0.0
    %2515 = vmatpush1.msra.mxu0 0.0
    %2516 = vmatprep.subr.mxu0 0.0
    %2517 = vmatpush1.msra.mxu0 0.0
    %2518 = vmatprep.subr.mxu0 0.0
    %2519 = vmatpush1.msra.mxu0 0.0
    %2520 = vmatprep.subr.mxu0 0.0
    %2521 = vmatpush1.msra.mxu0 0.0
    %2522 = vmatprep.subr.mxu0 0.0
    %2523 = vmatpush1.msra.mxu0 0.0
    %2524 = vmatprep.mubr.f32.mxu0 0.0
    %2525 = vmatmul.mubr.f32.gmra.mrb[0].mxu0 %v2455
    %v2526 = vpop.f32.mrb[0].mxu0
    %v2527 = vadd.f32 0.0, %v2526
    %v2528 = vpop.f32.mrb[0].mxu0
    %2529 = vmatprep.mubr.f32.mxu0 0.0
    %2530 = vmatmul.mubr.f32.gmra.mrb[0].mxu0 %v2458
    %v2531 = vpop.f32.mrb[0].mxu0
    %v2532 = vadd.f32 0.0, %v2531
    %v2533 = vpop.f32.mrb[0].mxu0
    %2534 = vdwg.mxu0
    %v2535 = vld [vmem:[%s4 + $0x210] sm:$0xff]
    %v2536 = vld [vmem:[%s4 + $0x218] sm:$0xff]
    %v2538 = vsel %vm445, %v2527, 0
    %v2541 = vsel %vm445, %v2532, 0
    %2543 = vmatprep.subr.mxu0 0.0
    %2544 = vmatpush1.msra.mxu0 %v2535
    %2545 = vmatprep.subr.mxu0 0.0
    %2546 = vmatpush1.msra.mxu0 %v2536
    %2547 = vmatprep.subr.mxu0 0.0
    %2548 = vmatpush1.msra.mxu0 0.0
    %2549 = vmatprep.subr.mxu0 0.0
    %2550 = vmatpush1.msra.mxu0 0.0
    %2551 = vmatprep.subr.mxu0 0.0
    %2552 = vmatpush1.msra.mxu0 0.0
    %2553 = vmatprep.subr.mxu0 0.0
    %2554 = vmatpush1.msra.mxu0 0.0
    %2555 = vmatprep.subr.mxu0 0.0
    %2556 = vmatpush1.msra.mxu0 0.0
    %2557 = vmatprep.subr.mxu0 0.0
    %2558 = vmatpush1.msra.mxu0 0.0
    %2559 = vmatprep.subr.mxu0 0.0
    %2560 = vmatpush1.msra.mxu0 0.0
    %2561 = vmatprep.subr.mxu0 0.0
    %2562 = vmatpush1.msra.mxu0 0.0
    %2563 = vmatprep.subr.mxu0 0.0
    %2564 = vmatpush1.msra.mxu0 0.0
    %2565 = vmatprep.subr.mxu0 0.0
    %2566 = vmatpush1.msra.mxu0 0.0
    %2567 = vmatprep.subr.mxu0 0.0
    %2568 = vmatpush1.msra.mxu0 0.0
    %2569 = vmatprep.subr.mxu0 0.0
    %2570 = vmatpush1.msra.mxu0 0.0
    %2571 = vmatprep.subr.mxu0 0.0
    %2572 = vmatpush1.msra.mxu0 0.0
    %2573 = vmatprep.subr.mxu0 0.0
    %2574 = vmatpush1.msra.mxu0 0.0
    %2575 = vmatprep.subr.mxu0 0.0
    %2576 = vmatpush1.msra.mxu0 0.0
    %2577 = vmatprep.subr.mxu0 0.0
    %2578 = vmatpush1.msra.mxu0 0.0
    %2579 = vmatprep.subr.mxu0 0.0
    %2580 = vmatpush1.msra.mxu0 0.0
    %2581 = vmatprep.subr.mxu0 0.0
    %2582 = vmatpush1.msra.mxu0 0.0
    %2583 = vmatprep.subr.mxu0 0.0
    %2584 = vmatpush1.msra.mxu0 0.0
    %2585 = vmatprep.subr.mxu0 0.0
    %2586 = vmatpush1.msra.mxu0 0.0
    %2587 = vmatprep.subr.mxu0 0.0
    %2588 = vmatpush1.msra.mxu0 0.0
    %2589 = vmatprep.subr.mxu0 0.0
    %2590 = vmatpush1.msra.mxu0 0.0
    %2591 = vmatprep.subr.mxu0 0.0
    %2592 = vmatpush1.msra.mxu0 0.0
    %2593 = vmatprep.subr.mxu0 0.0
    %2594 = vmatpush1.msra.mxu0 0.0
    %2595 = vmatprep.subr.mxu0 0.0
    %2596 = vmatpush1.msra.mxu0 0.0
    %2597 = vmatprep.subr.mxu0 0.0
    %2598 = vmatpush1.msra.mxu0 0.0
    %2599 = vmatprep.subr.mxu0 0.0
    %2600 = vmatpush1.msra.mxu0 0.0
    %2601 = vmatprep.subr.mxu0 0.0
    %2602 = vmatpush1.msra.mxu0 0.0
    %2603 = vmatprep.subr.mxu0 0.0
    %2604 = vmatpush1.msra.mxu0 0.0
    %2605 = vmatprep.subr.mxu0 0.0
    %2606 = vmatpush1.msra.mxu0 0.0
    %2607 = vmatprep.mubr.f32.mxu0 0.0
    %2608 = vmatmul.mubr.f32.gmra.mrb[0].mxu0 %v2538
    %v2609 = vpop.f32.mrb[0].mxu0
    %v2610 = vadd.f32 0.0, %v2609
    %v2611 = vpop.f32.mrb[0].mxu0
    %2612 = vmatprep.mubr.f32.mxu0 0.0
    %2613 = vmatmul.mubr.f32.gmra.mrb[0].mxu0 %v2541
    %v2614 = vpop.f32.mrb[0].mxu0
    %v2615 = vadd.f32 0.0, %v2614
    %v2616 = vpop.f32.mrb[0].mxu0
    %2617 = vdwg.mxu0
    %v2618 = vadd.f32 %v2452, %v2610
    %v2619 = vadd.f32 %v2453, %v2615
    %v2620 = vadd.f32 %v2618, %v1545
    %v2621 = vadd.f32 %v2619, %v1546
    %v2622 = vld [vmem:[%s5 + $0x17] sm:$0x1]
    %v2623 = vld [vmem:[%s5 + $0x18] sm:$0x1]
    %v2624 = vsel %vm134, %v2620, 0.0
    %2625 = vadd.xlane.f32.xlu0 %v2624
    %v2626 = vpop.xlane.xlu0 %2625
    %v2627 = vsel %vm134, %v2621, 0.0
    %2628 = vadd.xlane.f32.xlu0 %v2627
    %v2629 = vpop.xlane.xlu0 %2628
    %v2630 = vmul.f32 %v2626, %v141
    %v2631 = vmul.f32 %v2629, %v141
    %v2632 = vsub.f32 %v2620, %v2630
    %v2633 = vsub.f32 %v2621, %v2631
    %v2634 = vmul.f32 %v2632, %v2632
    %v2635 = vmul.f32 %v2633, %v2633
    %v2636 = vsel %vm134, %v2634, 0.0
    %2637 = vadd.xlane.f32.xlu0 %v2636
    %v2638 = vpop.xlane.xlu0 %2637
    %v2639 = vsel %vm134, %v2635, 0.0
    %2640 = vadd.xlane.f32.xlu0 %v2639
    %v2641 = vpop.xlane.xlu0 %2640
    %v2642 = vmul.f32 %v2638, %v141
    %v2643 = vmul.f32 %v2641, %v141
    %v2644 = vadd.f32 %v2642, 1e-12
    %v2645 = vadd.f32 %v2643, 1e-12
    %v2646 = vrsqrt.pop %v2644
    %v2647 = vrsqrt.pop %v2645
    %v2648 = vmul.f32 %v2632, %v2646
    %v2649 = vmul.f32 %v2633, %v2647
    %v2650 = vlaneseq
    %v2651 = vshrl.u32 %v2650, 7
    %v2652 = vsub.s32 0, %v2651
    %v2653 = vrot.slane %v2622, %v2652
    %v2654 = vmul.f32 %v2648, %v2653
    %v2655 = vmul.f32 %v2649, %v2653
    %v2656 = vlaneseq
    %v2657 = vshrl.u32 %v2656, 7
    %v2658 = vsub.s32 0, %v2657
    %v2659 = vrot.slane %v2623, %v2658
    %v2660 = vadd.f32 %v2654, %v2659
    %v2661 = vadd.f32 %v2655, %v2659
    %v2662 = vld [vmem:[%s4 + $0x220] sm:$0xff]
    %v2663 = vld [vmem:[%s4 + $0x228] sm:$0xff]
    %v2664 = vld [vmem:[%s4 + $0x230] sm:$0xff]
    %v2665 = vld [vmem:[%s4 + $0x238] sm:$0xff]
    %v2666 = vld [vmem:[%s5 + $0x19] sm:$0x1]
    %v2667 = vlaneseq
    %v2668 = vshrl.u32 %v2667, 7
    %v2669 = vsub.s32 0, %v2668
    %v2670 = vrot.slane %v2666, %v2669
    %v2672 = vsel %vm134, %v2660, 0
    %v2675 = vsel %vm134, %v2661, 0
    %2677 = vmatprep.subr.mxu0 0.0
    %2678 = vmatpush1.msra.mxu0 %v2662
    %2679 = vmatprep.subr.mxu0 0.0
    %2680 = vmatpush1.msra.mxu0 %v2663
    %2681 = vmatprep.subr.mxu0 0.0
    %2682 = vmatpush1.msra.mxu0 %v2664
    %2683 = vmatprep.subr.mxu0 0.0
    %2684 = vmatpush1.msra.mxu0 %v2665
    %2685 = vmatprep.subr.mxu0 0.0
    %2686 = vmatpush1.msra.mxu0 0.0
    %2687 = vmatprep.subr.mxu0 0.0
    %2688 = vmatpush1.msra.mxu0 0.0
    %2689 = vmatprep.subr.mxu0 0.0
    %2690 = vmatpush1.msra.mxu0 0.0
    %2691 = vmatprep.subr.mxu0 0.0
    %2692 = vmatpush1.msra.mxu0 0.0
    %2693 = vmatprep.subr.mxu0 0.0
    %2694 = vmatpush1.msra.mxu0 0.0
    %2695 = vmatprep.subr.mxu0 0.0
    %2696 = vmatpush1.msra.mxu0 0.0
    %2697 = vmatprep.subr.mxu0 0.0
    %2698 = vmatpush1.msra.mxu0 0.0
    %2699 = vmatprep.subr.mxu0 0.0
    %2700 = vmatpush1.msra.mxu0 0.0
    %2701 = vmatprep.subr.mxu0 0.0
    %2702 = vmatpush1.msra.mxu0 0.0
    %2703 = vmatprep.subr.mxu0 0.0
    %2704 = vmatpush1.msra.mxu0 0.0
    %2705 = vmatprep.subr.mxu0 0.0
    %2706 = vmatpush1.msra.mxu0 0.0
    %2707 = vmatprep.subr.mxu0 0.0
    %2708 = vmatpush1.msra.mxu0 0.0
    %2709 = vmatprep.subr.mxu0 0.0
    %2710 = vmatpush1.msra.mxu0 0.0
    %2711 = vmatprep.subr.mxu0 0.0
    %2712 = vmatpush1.msra.mxu0 0.0
    %2713 = vmatprep.subr.mxu0 0.0
    %2714 = vmatpush1.msra.mxu0 0.0
    %2715 = vmatprep.subr.mxu0 0.0
    %2716 = vmatpush1.msra.mxu0 0.0
    %2717 = vmatprep.subr.mxu0 0.0
    %2718 = vmatpush1.msra.mxu0 0.0
    %2719 = vmatprep.subr.mxu0 0.0
    %2720 = vmatpush1.msra.mxu0 0.0
    %2721 = vmatprep.subr.mxu0 0.0
    %2722 = vmatpush1.msra.mxu0 0.0
    %2723 = vmatprep.subr.mxu0 0.0
    %2724 = vmatpush1.msra.mxu0 0.0
    %2725 = vmatprep.subr.mxu0 0.0
    %2726 = vmatpush1.msra.mxu0 0.0
    %2727 = vmatprep.subr.mxu0 0.0
    %2728 = vmatpush1.msra.mxu0 0.0
    %2729 = vmatprep.subr.mxu0 0.0
    %2730 = vmatpush1.msra.mxu0 0.0
    %2731 = vmatprep.subr.mxu0 0.0
    %2732 = vmatpush1.msra.mxu0 0.0
    %2733 = vmatprep.subr.mxu0 0.0
    %2734 = vmatpush1.msra.mxu0 0.0
    %2735 = vmatprep.subr.mxu0 0.0
    %2736 = vmatpush1.msra.mxu0 0.0
    %2737 = vmatprep.subr.mxu0 0.0
    %2738 = vmatpush1.msra.mxu0 0.0
    %2739 = vmatprep.subr.mxu0 0.0
    %2740 = vmatpush1.msra.mxu0 0.0
    %2741 = vmatprep.mubr.f32.mxu0 0.0
    %2742 = vmatmul.mubr.f32.gmra.mrb[0].mxu0 %v2672
    %v2743 = vpop.f32.mrb[0].mxu0
    %v2744 = vadd.f32 %v2670, %v2743
    %v2745 = vpop.f32.mrb[0].mxu0
    %2746 = vmatprep.mubr.f32.mxu0 0.0
    %2747 = vmatmul.mubr.f32.gmra.mrb[0].mxu0 %v2675
    %v2748 = vpop.f32.mrb[0].mxu0
    %v2749 = vadd.f32 %v2670, %v2748
    %v2750 = vpop.f32.mrb[0].mxu0
    %2751 = vdwg.mxu0
    %v2752 = vmul.f32 %v2744, %v2744
    %v2753 = vmul.f32 %v2749, %v2749
    %v2754 = vmul.f32 %v2744, %v2752
    %v2755 = vmul.f32 %v2749, %v2753
    %v2756 = vmul.f32 %v2754, 0.044715
    %v2757 = vmul.f32 %v2755, 0.044715
    %v2758 = vadd.f32 %v2744, %v2756
    %v2759 = vadd.f32 %v2749, %v2757
    %v2760 = vmul.f32 %v2758, 0.7978846
    %v2761 = vmul.f32 %v2759, 0.7978846
    %v2762 = vtanh.pop %v2760
    %v2763 = vtanh.pop %v2761
    %v2764 = vadd.f32 %v2762, 1.0
    %v2765 = vadd.f32 %v2763, 1.0
    %v2766 = vmul.f32 %v2764, 0.5
    %v2767 = vmul.f32 %v2765, 0.5
    %v2768 = vmul.f32 %v2744, %v2766
    %v2769 = vmul.f32 %v2749, %v2767
    %v2770 = vld [vmem:[%s4 + $0x240] sm:$0xff]
    %v2771 = vld [vmem:[%s4 + $0x248] sm:$0xff]
    %v2772 = vld [vmem:[%s4 + $0x250] sm:$0xff]
    %v2773 = vld [vmem:[%s4 + $0x258] sm:$0xff]
    %v2774 = vld [vmem:[%s4 + $0x260] sm:$0xff]
    %v2775 = vld [vmem:[%s4 + $0x268] sm:$0xff]
    %v2776 = vld [vmem:[%s4 + $0x270] sm:$0xff]
    %v2777 = vld [vmem:[%s4 + $0x278] sm:$0xff]
    %v2778 = vld [vmem:[%s5 + $0x1a] sm:$0x1]
    %v2779 = vlaneseq
    %v2780 = vshrl.u32 %v2779, 7
    %v2781 = vsub.s32 0, %v2780
    %v2782 = vrot.slane %v2778, %v2781
    %v2784 = vsel %vm50, %v2768, 0
    %v2787 = vsel %vm50, %v2769, 0
    %2789 = vmatprep.subr.mxu0 0.0
    %2790 = vmatpush1.msra.mxu0 %v2770
    %2791 = vmatprep.subr.mxu0 0.0
    %2792 = vmatpush1.msra.mxu0 %v2771
    %2793 = vmatprep.subr.mxu0 0.0
    %2794 = vmatpush1.msra.mxu0 %v2772
    %2795 = vmatprep.subr.mxu0 0.0
    %2796 = vmatpush1.msra.mxu0 %v2773
    %2797 = vmatprep.subr.mxu0 0.0
    %2798 = vmatpush1.msra.mxu0 %v2774
    %2799 = vmatprep.subr.mxu0 0.0
    %2800 = vmatpush1.msra.mxu0 %v2775
    %2801 = vmatprep.subr.mxu0 0.0
    %2802 = vmatpush1.msra.mxu0 %v2776
    %2803 = vmatprep.subr.mxu0 0.0
    %2804 = vmatpush1.msra.mxu0 %v2777
    %2805 = vmatprep.subr.mxu0 0.0
    %2806 = vmatpush1.msra.mxu0 0.0
    %2807 = vmatprep.subr.mxu0 0.0
    %2808 = vmatpush1.msra.mxu0 0.0
    %2809 = vmatprep.subr.mxu0 0.0
    %2810 = vmatpush1.msra.mxu0 0.0
    %2811 = vmatprep.subr.mxu0 0.0
    %2812 = vmatpush1.msra.mxu0 0.0
    %2813 = vmatprep.subr.mxu0 0.0
    %2814 = vmatpush1.msra.mxu0 0.0
    %2815 = vmatprep.subr.mxu0 0.0
    %2816 = vmatpush1.msra.mxu0 0.0
    %2817 = vmatprep.subr.mxu0 0.0
    %2818 = vmatpush1.msra.mxu0 0.0
    %2819 = vmatprep.subr.mxu0 0.0
    %2820 = vmatpush1.msra.mxu0 0.0
    %2821 = vmatprep.subr.mxu0 0.0
    %2822 = vmatpush1.msra.mxu0 0.0
    %2823 = vmatprep.subr.mxu0 0.0
    %2824 = vmatpush1.msra.mxu0 0.0
    %2825 = vmatprep.subr.mxu0 0.0
    %2826 = vmatpush1.msra.mxu0 0.0
    %2827 = vmatprep.subr.mxu0 0.0
    %2828 = vmatpush1.msra.mxu0 0.0
    %2829 = vmatprep.subr.mxu0 0.0
    %2830 = vmatpush1.msra.mxu0 0.0
    %2831 = vmatprep.subr.mxu0 0.0
    %2832 = vmatpush1.msra.mxu0 0.0
    %2833 = vmatprep.subr.mxu0 0.0
    %2834 = vmatpush1.msra.mxu0 0.0
    %2835 = vmatprep.subr.mxu0 0.0
    %2836 = vmatpush1.msra.mxu0 0.0
    %2837 = vmatprep.subr.mxu0 0.0
    %2838 = vmatpush1.msra.mxu0 0.0
    %2839 = vmatprep.subr.mxu0 0.0
    %2840 = vmatpush1.msra.mxu0 0.0
    %2841 = vmatprep.subr.mxu0 0.0
    %2842 = vmatpush1.msra.mxu0 0.0
    %2843 = vmatprep.subr.mxu0 0.0
    %2844 = vmatpush1.msra.mxu0 0.0
    %2845 = vmatprep.subr.mxu0 0.0
    %2846 = vmatpush1.msra.mxu0 0.0
    %2847 = vmatprep.subr.mxu0 0.0
    %2848 = vmatpush1.msra.mxu0 0.0
    %2849 = vmatprep.subr.mxu0 0.0
    %2850 = vmatpush1.msra.mxu0 0.0
    %2851 = vmatprep.subr.mxu0 0.0
    %2852 = vmatpush1.msra.mxu0 0.0
    %2853 = vmatprep.mubr.f32.mxu0 0.0
    %2854 = vmatmul.mubr.f32.gmra.mrb[0].mxu0 %v2784
    %v2855 = vpop.f32.mrb[0].mxu0
    %v2856 = vadd.f32 %v2782, %v2855
    %v2857 = vpop.f32.mrb[0].mxu0
    %2858 = vmatprep.mubr.f32.mxu0 0.0
    %2859 = vmatmul.mubr.f32.gmra.mrb[0].mxu0 %v2787
    %v2860 = vpop.f32.mrb[0].mxu0
    %v2861 = vadd.f32 %v2782, %v2860
    %v2862 = vpop.f32.mrb[0].mxu0
    %2863 = vdwg.mxu0
    %v2864 = vadd.f32 %v2856, %v2660
    %v2865 = vadd.f32 %v2861, %v2661
    %v2866 = vld [vmem:[%s5 + $0x1b] sm:$0x1]
    %v2867 = vld [vmem:[%s5 + $0x1c] sm:$0x1]
    %v2868 = vsel %vm134, %v2864, 0.0
    %2869 = vadd.xlane.f32.xlu0 %v2868
    %v2870 = vpop.xlane.xlu0 %2869
    %v2871 = vsel %vm134, %v2865, 0.0
    %2872 = vadd.xlane.f32.xlu0 %v2871
    %v2873 = vpop.xlane.xlu0 %2872
    %v2874 = vmul.f32 %v2870, %v141
    %v2875 = vmul.f32 %v2873, %v141
    %v2876 = vsub.f32 %v2864, %v2874
    %v2877 = vsub.f32 %v2865, %v2875
    %v2878 = vmul.f32 %v2876, %v2876
    %v2879 = vmul.f32 %v2877, %v2877
    %v2880 = vsel %vm134, %v2878, 0.0
    %2881 = vadd.xlane.f32.xlu0 %v2880
    %v2882 = vpop.xlane.xlu0 %2881
    %v2883 = vsel %vm134, %v2879, 0.0
    %2884 = vadd.xlane.f32.xlu0 %v2883
    %v2885 = vpop.xlane.xlu0 %2884
    %v2886 = vmul.f32 %v2882, %v141
    %v2887 = vmul.f32 %v2885, %v141
    %v2888 = vadd.f32 %v2886, 1e-12
    %v2889 = vadd.f32 %v2887, 1e-12
    %v2890 = vrsqrt.pop %v2888
    %v2891 = vrsqrt.pop %v2889
    %v2892 = vmul.f32 %v2876, %v2890
    %v2893 = vmul.f32 %v2877, %v2891
    %v2894 = vlaneseq
    %v2895 = vshrl.u32 %v2894, 7
    %v2896 = vsub.s32 0, %v2895
    %v2897 = vrot.slane %v2866, %v2896
    %v2898 = vmul.f32 %v2892, %v2897
    %v2899 = vmul.f32 %v2893, %v2897
    %v2900 = vlaneseq
    %v2901 = vshrl.u32 %v2900, 7
    %v2902 = vsub.s32 0, %v2901
    %v2903 = vrot.slane %v2867, %v2902
    %v2904 = vadd.f32 %v2898, %v2903
    %v2905 = vadd.f32 %v2899, %v2903
    %v2906 = vlaneseq
    %v2907 = vshrl.u32 %v2906, 7
    %v2908 = vmul.u32 %v2907, 8
    %vm2909 = vcmp.eq.s32.totalorder %v27, %v2908
    %v2910 = vsel %vm2909, 1, 0
    %v2911 = vcvt.s32.f32 %v2910
    %v2913 = vsel %vm445, %v2911, 0
    %2915 = vmatprep.subr.mxu0 0.0
    %2916 = vmatpush1.msra.mxu0 %v2904
    %2917 = vmatprep.subr.mxu0 0.0
    %2918 = vmatpush1.msra.mxu0 %v2905
    %2919 = vmatprep.subr.mxu0 0.0
    %2920 = vmatpush1.msra.mxu0 0.0
    %2921 = vmatprep.subr.mxu0 0.0
    %2922 = vmatpush1.msra.mxu0 0.0
    %2923 = vmatprep.subr.mxu0 0.0
    %2924 = vmatpush1.msra.mxu0 0.0
    %2925 = vmatprep.subr.mxu0 0.0
    %2926 = vmatpush1.msra.mxu0 0.0
    %2927 = vmatprep.subr.mxu0 0.0
    %2928 = vmatpush1.msra.mxu0 0.0
    %2929 = vmatprep.subr.mxu0 0.0
    %2930 = vmatpush1.msra.mxu0 0.0
    %2931 = vmatprep.subr.mxu0 0.0
    %2932 = vmatpush1.msra.mxu0 0.0
    %2933 = vmatprep.subr.mxu0 0.0
    %2934 = vmatpush1.msra.mxu0 0.0
    %2935 = vmatprep.subr.mxu0 0.0
    %2936 = vmatpush1.msra.mxu0 0.0
    %2937 = vmatprep.subr.mxu0 0.0
    %2938 = vmatpush1.msra.mxu0 0.0
    %2939 = vmatprep.subr.mxu0 0.0
    %2940 = vmatpush1.msra.mxu0 0.0
    %2941 = vmatprep.subr.mxu0 0.0
    %2942 = vmatpush1.msra.mxu0 0.0
    %2943 = vmatprep.subr.mxu0 0.0
    %2944 = vmatpush1.msra.mxu0 0.0
    %2945 = vmatprep.subr.mxu0 0.0
    %2946 = vmatpush1.msra.mxu0 0.0
    %2947 = vmatprep.subr.mxu0 0.0
    %2948 = vmatpush1.msra.mxu0 0.0
    %2949 = vmatprep.subr.mxu0 0.0
    %2950 = vmatpush1.msra.mxu0 0.0
    %2951 = vmatprep.subr.mxu0 0.0
    %2952 = vmatpush1.msra.mxu0 0.0
    %2953 = vmatprep.subr.mxu0 0.0
    %2954 = vmatpush1.msra.mxu0 0.0
    %2955 = vmatprep.subr.mxu0 0.0
    %2956 = vmatpush1.msra.mxu0 0.0
    %2957 = vmatprep.subr.mxu0 0.0
    %2958 = vmatpush1.msra.mxu0 0.0
    %2959 = vmatprep.subr.mxu0 0.0
    %2960 = vmatpush1.msra.mxu0 0.0
    %2961 = vmatprep.subr.mxu0 0.0
    %2962 = vmatpush1.msra.mxu0 0.0
    %2963 = vmatprep.subr.mxu0 0.0
    %2964 = vmatpush1.msra.mxu0 0.0
    %2965 = vmatprep.subr.mxu0 0.0
    %2966 = vmatpush1.msra.mxu0 0.0
    %2967 = vmatprep.subr.mxu0 0.0
    %2968 = vmatpush1.msra.mxu0 0.0
    %2969 = vmatprep.subr.mxu0 0.0
    %2970 = vmatpush1.msra.mxu0 0.0
    %2971 = vmatprep.subr.mxu0 0.0
    %2972 = vmatpush1.msra.mxu0 0.0
    %2973 = vmatprep.subr.mxu0 0.0
    %2974 = vmatpush1.msra.mxu0 0.0
    %2975 = vmatprep.subr.mxu0 0.0
    %2976 = vmatpush1.msra.mxu0 0.0
    %2977 = vmatprep.subr.mxu0 0.0
    %2978 = vmatpush1.msra.mxu0 0.0
    %2979 = vmatprep.mubr.f32.mxu0 0.0
    %2980 = vmatmul.mubr.f32.gmra.mrb[0].mxu0 %v2913
    %v2981 = vpop.f32.mrb[0].mxu0
    %v2982 = vadd.f32 0.0, %v2981
    %v2983 = vpop.f32.mrb[0].mxu0
    %2984 = vdwg.mxu0
    %v2985 = vld [vmem:[%s5 + $0x20] sm:$0xff]
    %v2986 = vld [vmem:[%s5 + $0x28] sm:$0xff]
    %v2987 = vld [vmem:[%s5 + $0x30] sm:$0xff]
    %v2988 = vld [vmem:[%s5 + $0x38] sm:$0xff]
    %v2990 = vsel %vm134, %v2982, 0
    %2992 = vmatprep.subr.mxu0 0.0
    %2993 = vmatpush1.msra.mxu0 %v2985
    %2994 = vmatprep.subr.mxu0 0.0
    %2995 = vmatpush1.msra.mxu0 %v2986
    %2996 = vmatprep.subr.mxu0 0.0
    %2997 = vmatpush1.msra.mxu0 %v2987
    %2998 = vmatprep.subr.mxu0 0.0
    %2999 = vmatpush1.msra.mxu0 %v2988
    %3000 = vmatprep.subr.mxu0 0.0
    %3001 = vmatpush1.msra.mxu0 0.0
    %3002 = vmatprep.subr.mxu0 0.0
    %3003 = vmatpush1.msra.mxu0 0.0
    %3004 = vmatprep.subr.mxu0 0.0
    %3005 = vmatpush1.msra.mxu0 0.0
    %3006 = vmatprep.subr.mxu0 0.0
    %3007 = vmatpush1.msra.mxu0 0.0
    %3008 = vmatprep.subr.mxu0 0.0
    %3009 = vmatpush1.msra.mxu0 0.0
    %3010 = vmatprep.subr.mxu0 0.0
    %3011 = vmatpush1.msra.mxu0 0.0
    %3012 = vmatprep.subr.mxu0 0.0
    %3013 = vmatpush1.msra.mxu0 0.0
    %3014 = vmatprep.subr.mxu0 0.0
    %3015 = vmatpush1.msra.mxu0 0.0
    %3016 = vmatprep.subr.mxu0 0.0
    %3017 = vmatpush1.msra.mxu0 0.0
    %3018 = vmatprep.subr.mxu0 0.0
    %3019 = vmatpush1.msra.mxu0 0.0
    %3020 = vmatprep.subr.mxu0 0.0
    %3021 = vmatpush1.msra.mxu0 0.0
    %3022 = vmatprep.subr.mxu0 0.0
    %3023 = vmatpush1.msra.mxu0 0.0
    %3024 = vmatprep.subr.mxu0 0.0
    %3025 = vmatpush1.msra.mxu0 0.0
    %3026 = vmatprep.subr.mxu0 0.0
    %3027 = vmatpush1.msra.mxu0 0.0
    %3028 = vmatprep.subr.mxu0 0.0
    %3029 = vmatpush1.msra.mxu0 0.0
    %3030 = vmatprep.subr.mxu0 0.0
    %3031 = vmatpush1.msra.mxu0 0.0
    %3032 = vmatprep.subr.mxu0 0.0
    %3033 = vmatpush1.msra.mxu0 0.0
    %3034 = vmatprep.subr.mxu0 0.0
    %3035 = vmatpush1.msra.mxu0 0.0
    %3036 = vmatprep.subr.mxu0 0.0
    %3037 = vmatpush1.msra.mxu0 0.0
    %3038 = vmatprep.subr.mxu0 0.0
    %3039 = vmatpush1.msra.mxu0 0.0
    %3040 = vmatprep.subr.mxu0 0.0
    %3041 = vmatpush1.msra.mxu0 0.0
    %3042 = vmatprep.subr.mxu0 0.0
    %3043 = vmatpush1.msra.mxu0 0.0
    %3044 = vmatprep.subr.mxu0 0.0
    %3045 = vmatpush1.msra.mxu0 0.0
    %3046 = vmatprep.subr.mxu0 0.0
    %3047 = vmatpush1.msra.mxu0 0.0
    %3048 = vmatprep.subr.mxu0 0.0
    %3049 = vmatpush1.msra.mxu0 0.0
    %3050 = vmatprep.subr.mxu0 0.0
    %3051 = vmatpush1.msra.mxu0 0.0
    %3052 = vmatprep.subr.mxu0 0.0
    %3053 = vmatpush1.msra.mxu0 0.0
    %3054 = vmatprep.subr.mxu0 0.0
    %3055 = vmatpush1.msra.mxu0 0.0
    %3056 = vmatprep.mubr.f32.mxu0 0.0
    %3057 = vmatmul.mubr.f32.gmra.mrb[0].mxu0 %v2990
    %v3058 = vpop.f32.mrb[0].mxu0
    %v3059 = vadd.f32 0.0, %v3058
    %v3060 = vpop.f32.mrb[0].mxu0
    %3061 = vdwg.mxu0
    %v3062 = vtanh.pop %v3059
    %v3063 = vld [vmem:[%s2] sm:$0xff]
    %v3064 = vld [vmem:[%s5 + $0x40] sm:$0xff]
    %v3065 = vld [vmem:[%s5 + $0x48] sm:$0xff]
    %v3067 = vsel %vm445, %v3063, 0
    %3069 = vmatprep.subr.mxu0 0.0
    %3070 = vmatpush1.msra.mxu0 %v3064
    %3071 = vmatprep.subr.mxu0 0.0
    %3072 = vmatpush1.msra.mxu0 %v3065
    %3073 = vmatprep.subr.mxu0 0.0
    %3074 = vmatpush1.msra.mxu0 0.0
    %3075 = vmatprep.subr.mxu0 0.0
    %3076 = vmatpush1.msra.mxu0 0.0
    %3077 = vmatprep.subr.mxu0 0.0
    %3078 = vmatpush1.msra.mxu0 0.0
    %3079 = vmatprep.subr.mxu0 0.0
    %3080 = vmatpush1.msra.mxu0 0.0
    %3081 = vmatprep.subr.mxu0 0.0
    %3082 = vmatpush1.msra.mxu0 0.0
    %3083 = vmatprep.subr.mxu0 0.0
    %3084 = vmatpush1.msra.mxu0 0.0
    %3085 = vmatprep.subr.mxu0 0.0
    %3086 = vmatpush1.msra.mxu0 0.0
    %3087 = vmatprep.subr.mxu0 0.0
    %3088 = vmatpush1.msra.mxu0 0.0
    %3089 = vmatprep.subr.mxu0 0.0
    %3090 = vmatpush1.msra.mxu0 0.0
    %3091 = vmatprep.subr.mxu0 0.0
    %3092 = vmatpush1.msra.mxu0 0.0
    %3093 = vmatprep.subr.mxu0 0.0
    %3094 = vmatpush1.msra.mxu0 0.0
    %3095 = vmatprep.subr.mxu0 0.0
    %3096 = vmatpush1.msra.mxu0 0.0
    %3097 = vmatprep.subr.mxu0 0.0
    %3098 = vmatpush1.msra.mxu0 0.0
    %3099 = vmatprep.subr.mxu0 0.0
    %3100 = vmatpush1.msra.mxu0 0.0
    %3101 = vmatprep.subr.mxu0 0.0
    %3102 = vmatpush1.msra.mxu0 0.0
    %3103 = vmatprep.subr.mxu0 0.0
    %3104 = vmatpush1.msra.mxu0 0.0
    %3105 = vmatprep.subr.mxu0 0.0
    %3106 = vmatpush1.msra.mxu0 0.0
    %3107 = vmatprep.subr.mxu0 0.0
    %3108 = vmatpush1.msra.mxu0 0.0
    %3109 = vmatprep.subr.mxu0 0.0
    %3110 = vmatpush1.msra.mxu0 0.0
    %3111 = vmatprep.subr.mxu0 0.0
    %3112 = vmatpush1.msra.mxu0 0.0
    %3113 = vmatprep.subr.mxu0 0.0
    %3114 = vmatpush1.msra.mxu0 0.0
    %3115 = vmatprep.subr.mxu0 0.0
    %3116 = vmatpush1.msra.mxu0 0.0
    %3117 = vmatprep.subr.mxu0 0.0
    %3118 = vmatpush1.msra.mxu0 0.0
    %3119 = vmatprep.subr.mxu0 0.0
    %3120 = vmatpush1.msra.mxu0 0.0
    %3121 = vmatprep.subr.mxu0 0.0
    %3122 = vmatpush1.msra.mxu0 0.0
    %3123 = vmatprep.subr.mxu0 0.0
    %3124 = vmatpush1.msra.mxu0 0.0
    %3125 = vmatprep.subr.mxu0 0.0
    %3126 = vmatpush1.msra.mxu0 0.0
    %3127 = vmatprep.subr.mxu0 0.0
    %3128 = vmatpush1.msra.mxu0 0.0
    %3129 = vmatprep.subr.mxu0 0.0
    %3130 = vmatpush1.msra.mxu0 0.0
    %3131 = vmatprep.subr.mxu0 0.0
    %3132 = vmatpush1.msra.mxu0 0.0
    %3133 = vmatprep.mubr.f32.mxu0 0.0
    %3134 = vmatmul.mubr.f32.gmra.mrb[0].mxu0 %v3067
    %v3135 = vpop.f32.mrb[0].mxu0
    %v3136 = vadd.f32 0.0, %v3135
    %v3137 = vpop.f32.mrb[0].mxu0
    %3138 = vdwg.mxu0
    %v3139 = vtanh.pop %v3136
    %v3140 = vld [vmem:[%s5 + $0xa0] sm:$0x1]
    %v3141 = vlaneseq
    %v3142 = vshrl.u32 %v3141, 7
    %v3143 = vsub.s32 0, %v3142
    %v3144 = vrot.slane %v3140, %v3143
    %v3145 = vmul.f32 %v3062, %v3144
    %v3146 = vsel %vm134, %v3145, 0.0
    %3147 = vadd.xlane.f32.xlu0 %v3146
    %v3148 = vpop.xlane.xlu0 %3147
    %v3149 = vld [vmem:[%s5 + $0xa1] sm:$0x1]
    %v3150 = vlaneseq
    %v3151 = vshrl.u32 %v3150, 7
    %v3152 = vsub.s32 0, %v3151
    %v3153 = vrot.slane %v3149, %v3152
    %v3154 = vmul.f32 %v3139, %v3153
    %v3155 = vsel %vm134, %v3154, 0.0
    %3156 = vadd.xlane.f32.xlu0 %v3155
    %v3157 = vpop.xlane.xlu0 %3156
    %v3158 = vadd.f32 %v3148, %v3157
    %v3159 = vxor.u32 %v3158, 2147483648
    %v3160 = vmul.f32 %v3159, 1.442695
    %v3161 = vpow.pop %v3160
    %v3162 = vadd.f32 %v3161, 1.0
    %v3163 = vrcp.pop %v3162
    %v3164 = vmul.f32 1.0, %v3163
    %v3165 = vmul.f32 %v3164, %v3062
    %v3166 = vsub.f32 1.0, %v3164
    %v3167 = vmul.f32 %v3166, %v3139
    %v3168 = vadd.f32 %v3165, %v3167
    %v3169 = vmul.f32 %v3168, %v3168
    %v3170 = vmul.f32 %v3168, %v3169
    %v3171 = vmul.f32 %v3170, 0.044715
    %v3172 = vadd.f32 %v3168, %v3171
    %v3173 = vmul.f32 %v3172, 0.7978846
    %v3174 = vtanh.pop %v3173
    %v3175 = vadd.f32 %v3174, 1.0
    %v3176 = vmul.f32 %v3175, 0.5
    %v3177 = vmul.f32 %v3168, %v3176
    %v3178 = vld [vmem:[%s5 + $0x50] sm:$0xff]
    %v3179 = vld [vmem:[%s5 + $0x58] sm:$0xff]
    %v3180 = vld [vmem:[%s5 + $0x60] sm:$0xff]
    %v3181 = vld [vmem:[%s5 + $0x68] sm:$0xff]
    %v3182 = vld [vmem:[%s5 + $0xa2] sm:$0x1]
    %v3183 = vlaneseq
    %v3184 = vshrl.u32 %v3183, 7
    %v3185 = vsub.s32 0, %v3184
    %v3186 = vrot.slane %v3182, %v3185
    %v3188 = vsel %vm134, %v3177, 0
    %3190 = vmatprep.subr.mxu0 0.0
    %3191 = vmatpush1.msra.mxu0 %v3178
    %3192 = vmatprep.subr.mxu0 0.0
    %3193 = vmatpush1.msra.mxu0 %v3179
    %3194 = vmatprep.subr.mxu0 0.0
    %3195 = vmatpush1.msra.mxu0 %v3180
    %3196 = vmatprep.subr.mxu0 0.0
    %3197 = vmatpush1.msra.mxu0 %v3181
    %3198 = vmatprep.subr.mxu0 0.0
    %3199 = vmatpush1.msra.mxu0 0.0
    %3200 = vmatprep.subr.mxu0 0.0
    %3201 = vmatpush1.msra.mxu0 0.0
    %3202 = vmatprep.subr.mxu0 0.0
    %3203 = vmatpush1.msra.mxu0 0.0
    %3204 = vmatprep.subr.mxu0 0.0
    %3205 = vmatpush1.msra.mxu0 0.0
    %3206 = vmatprep.subr.mxu0 0.0
    %3207 = vmatpush1.msra.mxu0 0.0
    %3208 = vmatprep.subr.mxu0 0.0
    %3209 = vmatpush1.msra.mxu0 0.0
    %3210 = vmatprep.subr.mxu0 0.0
    %3211 = vmatpush1.msra.mxu0 0.0
    %3212 = vmatprep.subr.mxu0 0.0
    %3213 = vmatpush1.msra.mxu0 0.0
    %3214 = vmatprep.subr.mxu0 0.0
    %3215 = vmatpush1.msra.mxu0 0.0
    %3216 = vmatprep.subr.mxu0 0.0
    %3217 = vmatpush1.msra.mxu0 0.0
    %3218 = vmatprep.subr.mxu0 0.0
    %3219 = vmatpush1.msra.mxu0 0.0
    %3220 = vmatprep.subr.mxu0 0.0
    %3221 = vmatpush1.msra.mxu0 0.0
    %3222 = vmatprep.subr.mxu0 0.0
    %3223 = vmatpush1.msra.mxu0 0.0
    %3224 = vmatprep.subr.mxu0 0.0
    %3225 = vmatpush1.msra.mxu0 0.0
    %3226 = vmatprep.subr.mxu0 0.0
    %3227 = vmatpush1.msra.mxu0 0.0
    %3228 = vmatprep.subr.mxu0 0.0
    %3229 = vmatpush1.msra.mxu0 0.0
    %3230 = vmatprep.subr.mxu0 0.0
    %3231 = vmatpush1.msra.mxu0 0.0
    %3232 = vmatprep.subr.mxu0 0.0
    %3233 = vmatpush1.msra.mxu0 0.0
    %3234 = vmatprep.subr.mxu0 0.0
    %3235 = vmatpush1.msra.mxu0 0.0
    %3236 = vmatprep.subr.mxu0 0.0
    %3237 = vmatpush1.msra.mxu0 0.0
    %3238 = vmatprep.subr.mxu0 0.0
    %3239 = vmatpush1.msra.mxu0 0.0
    %3240 = vmatprep.subr.mxu0 0.0
    %3241 = vmatpush1.msra.mxu0 0.0
    %3242 = vmatprep.subr.mxu0 0.0
    %3243 = vmatpush1.msra.mxu0 0.0
    %3244 = vmatprep.subr.mxu0 0.0
    %3245 = vmatpush1.msra.mxu0 0.0
    %3246 = vmatprep.subr.mxu0 0.0
    %3247 = vmatpush1.msra.mxu0 0.0
    %3248 = vmatprep.subr.mxu0 0.0
    %3249 = vmatpush1.msra.mxu0 0.0
    %3250 = vmatprep.subr.mxu0 0.0
    %3251 = vmatpush1.msra.mxu0 0.0
    %3252 = vmatprep.subr.mxu0 0.0
    %3253 = vmatpush1.msra.mxu0 0.0
    %3254 = vmatprep.mubr.f32.mxu0 0.0
    %3255 = vmatmul.mubr.f32.gmra.mrb[0].mxu0 %v3188
    %v3256 = vpop.f32.mrb[0].mxu0
    %v3257 = vadd.f32 %v3186, %v3256
    %v3258 = vpop.f32.mrb[0].mxu0
    %3259 = vdwg.mxu0
    %v3260 = vmul.f32 %v3257, %v3257
    %v3261 = vmul.f32 %v3257, %v3260
    %v3262 = vmul.f32 %v3261, 0.044715
    %v3263 = vadd.f32 %v3257, %v3262
    %v3264 = vmul.f32 %v3263, 0.7978846
    %v3265 = vtanh.pop %v3264
    %v3266 = vadd.f32 %v3265, 1.0
    %v3267 = vmul.f32 %v3266, 0.5
    %v3268 = vmul.f32 %v3257, %v3267
    %v3269 = vld [vmem:[%s5 + $0x70] sm:$0xff]
    %v3270 = vld [vmem:[%s5 + $0x78] sm:$0xff]
    %v3271 = vld [vmem:[%s5 + $0x80] sm:$0xff]
    %v3272 = vld [vmem:[%s5 + $0x88] sm:$0xff]
    %v3273 = vld [vmem:[%s5 + $0xa3] sm:$0x1]
    %v3274 = vlaneseq
    %v3275 = vshrl.u32 %v3274, 7
    %v3276 = vsub.s32 0, %v3275
    %v3277 = vrot.slane %v3273, %v3276
    %v3279 = vsel %vm134, %v3268, 0
    %3281 = vmatprep.subr.mxu0 0.0
    %3282 = vmatpush1.msra.mxu0 %v3269
    %3283 = vmatprep.subr.mxu0 0.0
    %3284 = vmatpush1.msra.mxu0 %v3270
    %3285 = vmatprep.subr.mxu0 0.0
    %3286 = vmatpush1.msra.mxu0 %v3271
    %3287 = vmatprep.subr.mxu0 0.0
    %3288 = vmatpush1.msra.mxu0 %v3272
    %3289 = vmatprep.subr.mxu0 0.0
    %3290 = vmatpush1.msra.mxu0 0.0
    %3291 = vmatprep.subr.mxu0 0.0
    %3292 = vmatpush1.msra.mxu0 0.0
    %3293 = vmatprep.subr.mxu0 0.0
    %3294 = vmatpush1.msra.mxu0 0.0
    %3295 = vmatprep.subr.mxu0 0.0
    %3296 = vmatpush1.msra.mxu0 0.0
    %3297 = vmatprep.subr.mxu0 0.0
    %3298 = vmatpush1.msra.mxu0 0.0
    %3299 = vmatprep.subr.mxu0 0.0
    %3300 = vmatpush1.msra.mxu0 0.0
    %3301 = vmatprep.subr.mxu0 0.0
    %3302 = vmatpush1.msra.mxu0 0.0
    %3303 = vmatprep.subr.mxu0 0.0
    %3304 = vmatpush1.msra.mxu0 0.0
    %3305 = vmatprep.subr.mxu0 0.0
    %3306 = vmatpush1.msra.mxu0 0.0
    %3307 = vmatprep.subr.mxu0 0.0
    %3308 = vmatpush1.msra.mxu0 0.0
    %3309 = vmatprep.subr.mxu0 0.0
    %3310 = vmatpush1.msra.mxu0 0.0
    %3311 = vmatprep.subr.mxu0 0.0
    %3312 = vmatpush1.msra.mxu0 0.0
    %3313 = vmatprep.subr.mxu0 0.0
    %3314 = vmatpush1.msra.mxu0 0.0
    %3315 = vmatprep.subr.mxu0 0.0
    %3316 = vmatpush1.msra.mxu0 0.0
    %3317 = vmatprep.subr.mxu0 0.0
    %3318 = vmatpush1.msra.mxu0 0.0
    %3319 = vmatprep.subr.mxu0 0.0
    %3320 = vmatpush1.msra.mxu0 0.0
    %3321 = vmatprep.subr.mxu0 0.0
    %3322 = vmatpush1.msra.mxu0 0.0
    %3323 = vmatprep.subr.mxu0 0.0
    %3324 = vmatpush1.msra.mxu0 0.0
    %3325 = vmatprep.subr.mxu0 0.0
    %3326 = vmatpush1.msra.mxu0 0.0
    %3327 = vmatprep.subr.mxu0 0.0
    %3328 = vmatpush1.msra.mxu0 0.0
    %3329 = vmatprep.subr.mxu0 0.0
    %3330 = vmatpush1.msra.mxu0 0.0
    %3331 = vmatprep.subr.mxu0 0.0
    %3332 = vmatpush1.msra.mxu0 0.0
    %3333 = vmatprep.subr.mxu0 0.0
    %3334 = vmatpush1.msra.mxu0 0.0
    %3335 = vmatprep.subr.mxu0 0.0
    %3336 = vmatpush1.msra.mxu0 0.0
    %3337 = vmatprep.subr.mxu0 0.0
    %3338 = vmatpush1.msra.mxu0 0.0
    %3339 = vmatprep.subr.mxu0 0.0
    %3340 = vmatpush1.msra.mxu0 0.0
    %3341 = vmatprep.subr.mxu0 0.0
    %3342 = vmatpush1.msra.mxu0 0.0
    %3343 = vmatprep.subr.mxu0 0.0
    %3344 = vmatpush1.msra.mxu0 0.0
    %3345 = vmatprep.mubr.f32.mxu0 0.0
    %3346 = vmatmul.mubr.f32.gmra.mrb[0].mxu0 %v3279
    %v3347 = vpop.f32.mrb[0].mxu0
    %v3348 = vadd.f32 %v3277, %v3347
    %v3349 = vpop.f32.mrb[0].mxu0
    %3350 = vdwg.mxu0
    %3351 = vst [vmem:[#allocation2] sm:$0xff] %v3348
    // Predicated region
    $region26: #{tpu_custom_call.1} parent=1 // pred_check
      _
    $region27: #{tpu_custom_call.1} parent=1 // pred_check_branch
      %3353 = sbr.rel (0) target = $region29
    $region28: #{tpu_custom_call.1} parent=1 // pred_region
      %s3355 = ssub.s32 128, 128
      %3356 = vsyncadd [#allocation3], %s3355
      %s3358 = sshll.u32 [#allocation2], 4
      %s3359 = int_to_ptr.vmem [resolvable:$true] %s3358
      %3361 = dma.vmem_to_hbm [thread:$0]  %s3359, 128, %s6, [#allocation3]
    $region29: #{tpu_custom_call.1} parent=1 // pred_fallthru
      _
    // Predicated region
    $region30: #{tpu_custom_call.1} parent=1 // pred_check
      _
    $region31: #{tpu_custom_call.1} parent=1 // pred_check_branch
      %3363 = sbr.rel (0) target = $region33
    $region32: #{tpu_custom_call.1} parent=1 // pred_region
      %3364 = dma.done [#allocation3], 128
    $region33: #{tpu_custom_call.1} parent=1 // pred_fallthru
      _
    %3365 = vsyncpa [#allocation3], 1

</llo_original>
